<compile_context>
chip_gen: v6e
topology: v6e:2x2x1
jax: 0.10.0
libtpu: 0.0.40
codegen_flags: <defaults>
</compile_context>

<pallas_src>
import jax
import jax.numpy as jnp
from jax import lax
from jax.experimental import pallas as pl
from jax.experimental.pallas import tpu as pltpu


def _round_up(x, m):
    return (x + m - 1) // m * m


def _make_glove_loss_kernel(v, tm, tn, needs_mask):
    """Kernel for one (tm, tn) tile of sum(Xw * (W*Wc^T + b + bc^T - log X)^2).

    Accumulates an (8, 128) vreg-shaped partial into the row-tile-resident
    output block across the j (reduction) grid axis.
    """

    def kernel(stats_ref, x_ref, w_ref, wc_ref, b_ref, bct_ref, out_ref):
        j = pl.program_id(1)

        @pl.when(j == 0)
        def _():
            out_ref[...] = jnp.zeros_like(out_ref)

        max_x = stats_ref[0]      # scalar max(X)      (SMEM)
        inv_max = stats_ref[1]    # scalar 1 / max(X)  (SMEM)

        # Upcast per-tile; inputs stream from HBM in their native dtype.
        x = x_ref[...].astype(jnp.float32)                 # (tm, tn)
        w = w_ref[...].astype(jnp.float32)                 # (tm, tn)
        wc_t = wc_ref[...].astype(jnp.float32).T           # (tn, tm) -> (tm, tn), XLU
        b = b_ref[...].astype(jnp.float32)                 # (tm, 1)
        bc_t = bct_ref[...].astype(jnp.float32)            # (1, tn)

        # Fused X_weighted: keep X at the max, scale by 1/max elsewhere.
        xw = jnp.where(x == max_x, x, x * inv_max)
        diff = w * wc_t + b + bc_t - jnp.log(x)
        term = xw * diff * diff                            # (tm, tn)

        if needs_mask:
            # Tail mask for partial edge tiles (cdiv grid); garbage (possibly
            # NaN) values in the padded VMEM region are selected away.
            i = pl.program_id(0)
            rows = i * tm + lax.broadcasted_iota(jnp.int32, (tm, tn), 0)
            cols = j * tn + lax.broadcasted_iota(jnp.int32, (tm, tn), 1)
            term = jnp.where((rows < v) & (cols < v), term, 0.0)

        # Pure-VALU reduction: fold the "which vreg" axes, keep the (8, 128)
        # native vreg shape as the accumulator.
        partial = term.reshape(tm // 8, 8, tn // 128, 128).sum(axis=(0, 2))
        out_ref[...] += partial[None, :, :]

    return kernel


def word_embedding_forward(x, w, wc, b, bc, *, x_max=None, tm=1024, tn=1024):
    """JAX/Pallas equivalent of word_embedding.forward(X_weighted(X), X).

    X_weighted is recomputed inside the kernel from X and max(X); pass a
    precomputed `x_max` (X is constant during GloVe training) to avoid an
    extra full read of X per step.
    """
    v, e = w.shape
    assert e == v, "torch.mul(W, Wc.T) only broadcasts when num_emb == len(vocab)"
    assert x.shape == (v, v)
    assert wc.shape == (v, e)
    assert b.shape == (v, 1) and bc.shape == (v, 1)

    # Tile sizes: multiples of 128 on both axes (Wc's transposed fetch puts tm
    # on the lane axis), clamped so a single block never exceeds round_up(V).
    tm = min(_round_up(tm, 128), _round_up(v, 128))
    tn = min(_round_up(tn, 128), _round_up(v, 128))
    grid_m = pl.cdiv(v, tm)
    grid_n = pl.cdiv(v, tn)
    needs_mask = (v % tm != 0) or (v % tn != 0)

    if x_max is None:
        # Fallback only: prefer passing a cached x_max (X is constant in GloVe).
        x_max = jnp.max(x)
    x_max = jnp.asarray(x_max, jnp.float32)
    stats = jnp.stack([x_max, 1.0 / x_max])               # (2,) -> SMEM

    bc_t = bc.reshape(1, v)                                # (V,1)->(1,V): free

    # Explicit scoped-VMEM budget: 2 buffers per big stream in native dtype,
    # plus f32 temporaries (casts / Wc transpose / term), capped by physical.
    stream_bytes = 2 * tm * tn * (x.dtype.itemsize + w.dtype.itemsize + wc.dtype.itemsize)
    temp_bytes = 3 * tm * tn * 4
    needed = stream_bytes + temp_bytes + (8 << 20)
    try:
        cap = int(pltpu.get_tpu_info().vmem_capacity_bytes) - (8 << 20)
    except Exception:
        cap = 48 << 20                                     # safe on v5e/v6e/v7x
    vmem_limit = int(min(max(needed, 32 << 20), cap))

    kernel = _make_glove_loss_kernel(v, tm, tn, needs_mask)

    partials = pl.pallas_call(
        kernel,
        out_shape=jax.ShapeDtypeStruct((grid_m, 8, 128), jnp.float32),
        grid_spec=pltpu.PrefetchScalarGridSpec(
            num_scalar_prefetch=0,
            grid=(grid_m, grid_n),
            in_specs=[
                pl.BlockSpec(memory_space=pltpu.MemorySpace.SMEM),  # [max, 1/max]
                pl.BlockSpec((tm, tn), lambda i, j: (i, j)),        # X
                pl.BlockSpec((tm, tn), lambda i, j: (i, j)),        # W
                pl.BlockSpec((tn, tm), lambda i, j: (j, i)),        # Wc (T in kernel)
                pl.BlockSpec((tm, 1), lambda i, j: (i, 0)),         # b
                pl.BlockSpec((1, tn), lambda i, j: (0, j)),         # bc^T
            ],
            out_specs=pl.BlockSpec((1, 8, 128), lambda i, j: (i, 0, 0)),
        ),
        compiler_params=pltpu.CompilerParams(
            dimension_semantics=("parallel", "arbitrary"),
            vmem_limit_bytes=vmem_limit,
        ),
    )(stats, x, w, wc, b, bc_t)

    # Each row tile produced an (8,128) slab of partial sums; fold them all.
    return jnp.sum(partials)


def x_weighted_fn(x):
    """Keep X where X == X.max(); otherwise X / X.max() (matches torch ref)."""
    max_value = jnp.max(x)
    return jnp.where(x == max_value, x, x / max_value)


def _reference_loss(x_weighted, x, w, wc, b, bc):
    diff = w * wc.T + b + bc.T - jnp.log(x)
    return jnp.sum(x_weighted * diff * diff)


if __name__ == "__main__":
    # torch.mul(W, Wc.T) requires num_emb == len(vocab); use V == E.
    # V = 640 with 256x256 tiles -> 3x3 cdiv grid with partial edge tiles,
    # exercising pipelining, the resident accumulator, and the tail mask.
    V = 640
    E = V

    key = jax.random.PRNGKey(0)
    k_w, k_wc, k_b, k_bc, k_x = jax.random.split(key, 5)

    W = jax.random.normal(k_w, (V, E), dtype=jnp.float32)
    Wc = jax.random.normal(k_wc, (V, E), dtype=jnp.float32)
    b = jax.random.normal(k_b, (V, 1), dtype=jnp.float32)
    bc = jax.random.normal(k_bc, (V, 1), dtype=jnp.float32)

    # Strictly positive co-occurrence matrix so log(X) is finite.
    X = jax.random.uniform(k_x, (V, V), dtype=jnp.float32, minval=0.5, maxval=5.0)

    # X is constant across GloVe training steps: compute max once, reuse it.
    X_MAX = jnp.max(X)

    loss = word_embedding_forward(X, W, Wc, b, bc, x_max=X_MAX, tm=256, tn=256)
    loss = jax.block_until_ready(loss)

    Xw = x_weighted_fn(X)
    ref = _reference_loss(Xw, X, W, Wc, b, bc)
    assert jnp.allclose(loss, ref, rtol=2e-4, atol=1e-2), (loss, ref)

    print("KERNEL_OK")
</pallas_src>

<mosaic_0001>
module attributes {stable_mosaic.version = 11 : i64} {
  func.func @kernel(%arg0: i32, %arg1: i32, %arg2: memref<2xf32, #tpu.memory_space<smem>>, %arg3: memref<256x256xf32, #tpu.memory_space<vmem>>, %arg4: memref<256x256xf32, #tpu.memory_space<vmem>>, %arg5: memref<256x256xf32, #tpu.memory_space<vmem>>, %arg6: memref<256x1xf32, #tpu.memory_space<vmem>>, %arg7: memref<1x256xf32, #tpu.memory_space<vmem>>, %arg8: memref<1x8x128xf32, #tpu.memory_space<vmem>>) attributes {dimension_semantics = [#tpu.dimension_semantics<parallel>, #tpu.dimension_semantics<arbitrary>], iteration_bounds = array<i64: 3, 3>, scalar_prefetch = 0 : i64, scratch_operands = 0 : i64, tpu.core_type = #tpu.core_type<tc>, window_params = [{transform_indices = @transform_0, window_bounds = array<i64: 2>}, {transform_indices = @transform_1, window_bounds = array<i64: 256, 256>}, {transform_indices = @transform_2, window_bounds = array<i64: 256, 256>}, {transform_indices = @transform_3, window_bounds = array<i64: 256, 256>}, {transform_indices = @transform_4, window_bounds = array<i64: 256, 1>}, {transform_indices = @transform_5, window_bounds = array<i64: 1, 256>}, {transform_indices = @transform_6, window_bounds = array<i64: 1, 8, 128>}]} {
    %c0_i32 = arith.constant 0 : i32
    %0 = arith.cmpi eq, %arg1, %c0_i32 : i32
    %1 = arith.extui %0 : i1 to i32
    %c0_i32_0 = arith.constant 0 : i32
    %2 = arith.cmpi ne, %1, %c0_i32_0 : i32
    scf.if %2 {
      %cst_20 = arith.constant 0.000000e+00 : f32
      %46 = vector.broadcast %cst_20 : f32 to vector<1x8x128xf32>
      %c0_21 = arith.constant 0 : index
      %c0_22 = arith.constant 0 : index
      %c0_23 = arith.constant 0 : index
      %47 = vector.load %arg8[%c0_21, %c0_22, %c0_23] : memref<1x8x128xf32, #tpu.memory_space<vmem>>, vector<1x8x128xf32>
      tpu.vector_store %arg8[%c0_21, %c0_22, %c0_23], %46 {strides = array<i32>} : memref<1x8x128xf32, #tpu.memory_space<vmem>>, vector<1x8x128xf32>,
    } else {
    }
    %c0 = arith.constant 0 : index
    %3 = memref.load %arg2[%c0] : memref<2xf32, #tpu.memory_space<smem>>
    %c1 = arith.constant 1 : index
    %4 = memref.load %arg2[%c1] : memref<2xf32, #tpu.memory_space<smem>>
    %c0_1 = arith.constant 0 : index
    %c0_2 = arith.constant 0 : index
    %5 = vector.load %arg3[%c0_1, %c0_2] : memref<256x256xf32, #tpu.memory_space<vmem>>, vector<256x256xf32>
    %c0_3 = arith.constant 0 : index
    %c0_4 = arith.constant 0 : index
    %6 = vector.load %arg4[%c0_3, %c0_4] : memref<256x256xf32, #tpu.memory_space<vmem>>, vector<256x256xf32>
    %c0_5 = arith.constant 0 : index
    %c0_6 = arith.constant 0 : index
    %7 = vector.load %arg5[%c0_5, %c0_6] : memref<256x256xf32, #tpu.memory_space<vmem>>, vector<256x256xf32>
    %8 = tpu.transpose %7, [1, 0] : vector<256x256xf32> -> vector<256x256xf32>
    %c0_7 = arith.constant 0 : index
    %c0_8 = arith.constant 0 : index
    %9 = vector.load %arg6[%c0_7, %c0_8] : memref<256x1xf32, #tpu.memory_space<vmem>>, vector<256x1xf32>
    %c0_9 = arith.constant 0 : index
    %c0_10 = arith.constant 0 : index
    %10 = vector.load %arg7[%c0_9, %c0_10] : memref<1x256xf32, #tpu.memory_space<vmem>>, vector<1x256xf32>
    %11 = vector.broadcast %3 : f32 to vector<256x256xf32>
    %12 = arith.cmpf oeq, %5, %11 : vector<256x256xf32>
    %13 = vector.broadcast %4 : f32 to vector<256x256xf32>
    %14 = arith.mulf %5, %13 : vector<256x256xf32>
    %15 = arith.select %12, %5, %14 : vector<256x256xi1>, vector<256x256xf32>
    %16 = arith.mulf %6, %8 : vector<256x256xf32>
    %17 = vector.broadcast %9 : vector<256x1xf32> to vector<256x256xf32>
    %18 = arith.addf %16, %17 : vector<256x256xf32>
    %19 = vector.broadcast %10 : vector<1x256xf32> to vector<256x256xf32>
    %20 = arith.addf %18, %19 : vector<256x256xf32>
    %21 = math.log %5 : vector<256x256xf32>
    %22 = arith.subf %20, %21 : vector<256x256xf32>
    %23 = arith.mulf %15, %22 : vector<256x256xf32>
    %24 = arith.mulf %23, %22 : vector<256x256xf32>
    %c256_i32 = arith.constant 256 : i32
    %25 = arith.muli %arg0, %c256_i32 : i32
    %26 = tpu.iota {dimensions = array<i32: 0>} : vector<256x256xi32>
    %27 = vector.broadcast %25 : i32 to vector<256x256xi32>
    %28 = arith.addi %27, %26 : vector<256x256xi32>
    %c256_i32_11 = arith.constant 256 : i32
    %29 = arith.muli %arg1, %c256_i32_11 : i32
    %30 = tpu.iota {dimensions = array<i32: 1>} : vector<256x256xi32>
    %31 = vector.broadcast %29 : i32 to vector<256x256xi32>
    %32 = arith.addi %31, %30 : vector<256x256xi32>
    %c640_i32 = arith.constant 640 : i32
    %33 = vector.broadcast %c640_i32 : i32 to vector<256x256xi32>
    %34 = arith.cmpi slt, %28, %33 : vector<256x256xi32>
    %c640_i32_12 = arith.constant 640 : i32
    %35 = vector.broadcast %c640_i32_12 : i32 to vector<256x256xi32>
    %36 = arith.cmpi slt, %32, %35 : vector<256x256xi32>
    %37 = arith.andi %34, %36 : vector<256x256xi1>
    %cst = arith.constant 0.000000e+00 : f32
    %38 = vector.broadcast %cst : f32 to vector<256x256xf32>
    %39 = arith.select %37, %24, %38 : vector<256x256xi1>, vector<256x256xf32>
    %40 = vector.shape_cast %39 : vector<256x256xf32> to vector<32x8x2x128xf32>
    %cst_13 = arith.constant dense<0.000000e+00> : vector<8x128xf32>
    %41 = vector.multi_reduction <add>, %40, %cst_13 [0, 2] : vector<32x8x2x128xf32> to vector<8x128xf32>
    %c0_14 = arith.constant 0 : index
    %c0_15 = arith.constant 0 : index
    %c0_16 = arith.constant 0 : index
    %42 = vector.load %arg8[%c0_14, %c0_15, %c0_16] : memref<1x8x128xf32, #tpu.memory_space<vmem>>, vector<1x8x128xf32>
    %43 = vector.shape_cast %41 : vector<8x128xf32> to vector<1x8x128xf32>
    %44 = arith.addf %42, %43 : vector<1x8x128xf32>
    %c0_17 = arith.constant 0 : index
    %c0_18 = arith.constant 0 : index
    %c0_19 = arith.constant 0 : index
    %45 = vector.load %arg8[%c0_17, %c0_18, %c0_19] : memref<1x8x128xf32, #tpu.memory_space<vmem>>, vector<1x8x128xf32>
    tpu.vector_store %arg8[%c0_17, %c0_18, %c0_19], %44 {strides = array<i32>} : memref<1x8x128xf32, #tpu.memory_space<vmem>>, vector<1x8x128xf32>,
    return
  }
  func.func @transform_0(%arg0: i32, %arg1: i32) -> i32 {
    %c0_i32 = arith.constant 0 : i32
    %c0_i32_0 = arith.constant 0 : i32
    return %c0_i32 : i32
  }
  func.func @transform_1(%arg0: i32, %arg1: i32) -> (i32, i32) {
    %c0_i32 = arith.constant 0 : i32
    return %arg0, %arg1 : i32, i32
  }
  func.func @transform_2(%arg0: i32, %arg1: i32) -> (i32, i32) {
    %c0_i32 = arith.constant 0 : i32
    return %arg0, %arg1 : i32, i32
  }
  func.func @transform_3(%arg0: i32, %arg1: i32) -> (i32, i32) {
    %c0_i32 = arith.constant 0 : i32
    return %arg1, %arg0 : i32, i32
  }
  func.func @transform_4(%arg0: i32, %arg1: i32) -> (i32, i32) {
    %c0_i32 = arith.constant 0 : i32
    %c0_i32_0 = arith.constant 0 : i32
    return %arg0, %c0_i32 : i32, i32
  }
  func.func @transform_5(%arg0: i32, %arg1: i32) -> (i32, i32) {
    %c0_i32 = arith.constant 0 : i32
    %c0_i32_0 = arith.constant 0 : i32
    return %c0_i32, %arg1 : i32, i32
  }
  func.func @transform_6(%arg0: i32, %arg1: i32) -> (i32, i32, i32) {
    %c0_i32 = arith.constant 0 : i32
    %c0_i32_0 = arith.constant 0 : i32
    %c0_i32_1 = arith.constant 0 : i32
    return %arg0, %c0_i32, %c0_i32_0 : i32, i32, i32
  }
}

</mosaic_0001>

<llo_original>
// kernel: tpu_custom_call.1
$region0: #{tpu_custom_call.1}
  #allocation0 [shape = 'u32[]', space=smem, size = 0x4, offset = 0x4, fixed_abs, tag = 'smem constant byte address 0x4 - core index']
  #allocation1 [shape = 'u32[144,128]{1,0:T(1,128)}', space=vmem, size = 0x12000, scoped, tag = 'internal scratch']
  %s0 = inlined_call_operand.hbm [shape: f32[2], index: 0, kind: input, shape index: {}]
  %s1 = inlined_call_operand.hbm [shape: f32[640,640], index: 1, kind: input, shape index: {}]
  %s2 = inlined_call_operand.hbm [shape: f32[640,640], index: 2, kind: input, shape index: {}]
  %s3 = inlined_call_operand.hbm [shape: f32[640,640], index: 3, kind: input, shape index: {}]
  %s4 = inlined_call_operand.vmem [shape: f32[640,1], index: 4, kind: input, shape index: {}]
  %s5 = inlined_call_operand.hbm [shape: f32[1,640], index: 5, kind: input, shape index: {}]
  %s6 = inlined_call_operand.hbm [shape: f32[3,8,128], index: 6, kind: output, shape index: {}]
  %s7 = sld [smem:[#allocation0]]
  $region81: #{tpu_custom_call.1} parent=0
    _
  %s9 = ssub.s32 1, %s7
  %s10 = scalar_select 0, %s9, %s7
  $region1: #{tpu_custom_call.1} parent=0
    #allocation2 [shape = 'u8[512]{0}', space=smem, size = 0x200, scoped, tag = 'input window, operand 0, single buffered']
    #allocation3 [shape = 's32[2]{0}', space=sflag, size = 0x8, scoped, tag = 'scoped memory for tpu_custom_call.1']
    #allocation4 [shape = 's32[2]{0}', space=sflag, size = 0x8, scoped, tag = 'scoped memory for tpu_custom_call.1']
    #allocation5 [shape = 's32[2]{0}', space=sflag, size = 0x8, scoped, tag = 'scoped memory for tpu_custom_call.1']
    #allocation6 [shape = 'u8[524288]{0}', space=vmem, size = 0x80000, scoped, tag = 'input window, operand 1']
    #allocation7 [shape = 'u8[524288]{0}', space=vmem, size = 0x80000, scoped, tag = 'input window, operand 2']
    #allocation8 [shape = 's32[2]{0}', space=sflag, size = 0x8, scoped, tag = 'scoped memory for tpu_custom_call.1']
    #allocation9 [shape = 'u8[524288]{0}', space=vmem, size = 0x80000, scoped, tag = 'input window, operand 3']
    #allocation10 [shape = 'u8[2048]{0}', space=vmem, size = 0x800, scoped, tag = 'input window, operand 5']
    #allocation11 [shape = 's32[2]{0}', space=sflag, size = 0x8, scoped, tag = 'scoped memory for tpu_custom_call.1']
    #allocation12 [shape = 'u8[8192]{0}', space=vmem, size = 0x2000, scoped, tag = 'output window, operand 0']
    %11 = vsyncpa [#allocation5], 0
    %12 = vsyncpa [#allocation3], 0
    %s13 = scalar_lea.sflag [#allocation3], 1
    %14 = vsyncpa %s13, 0
    %15 = vsyncpa [#allocation8], 0
    %s16 = scalar_lea.sflag [#allocation8], 1
    %17 = vsyncpa %s16, 0
    %18 = vsyncpa [#allocation11], 0
    %s19 = scalar_lea.sflag [#allocation11], 1
    %20 = vsyncpa %s19, 0
    %21 = vsyncpa [#allocation4], 0
    %s22 = scalar_lea.sflag [#allocation4], 1
    %23 = vsyncpa %s22, 0
    loop: start=0, step=1, limit=11
    $region2: #{tpu_custom_call.1} parent=1 // loop_pre_header
      _
    $region3: #{tpu_custom_call.1} parent=1 // loop_header
      %s25 = sphi 0, %s29
      %p26 = scmp.ge.s32.totalorder %s25, 11
      %s32 = sphi 0, %s44
      %s33 = sphi 0, %s40
      %s34 = sphi 0, %s32
      %s35 = sphi 0, %s33
      %s36 = sphi 0, %s34
      %s37 = sphi 0, %s35
      %s45 = sphi 0, %s45
      %s47 = sphi 0, %s45
      %s48 = sphi 0, %s47
      %s62 = sphi 0, %s48
      %s70 = sphi 0, %s72
      %s73 = sphi 0, %s70
      %s74 = sphi 0, %s73
      %s90 = sphi 0, %s74
      %s98 = sphi 0, %s100
      %s101 = sphi 0, %s98
      %s102 = sphi 0, %s101
      %s118 = sphi 0, %s102
      %s126 = sphi 0, %s128
      %s129 = sphi 0, %s126
      %s130 = sphi 0, %s129
      %s146 = sphi 0, %s130
      %s152 = sphi 0, %s154
      %s155 = sphi 0, %s152
      %s156 = sphi 0, %s155
      %s172 = sphi 0, %s156
      %s178 = sphi 0, %s180
      %s181 = sphi 0, %s178
      %s182 = sphi 0, %s181
      %s198 = sphi 0, %s182
      %s204 = sphi 0, %s206
      %s207 = sphi 0, %s204
      %s208 = sphi 0, %s207
      %s224 = sphi 0, %s208
    $region4: #{tpu_custom_call.1} parent=1 // loop_header_branch
      %28 = sbr.rel (%p26) target = $region8
    $region5: #{tpu_custom_call.1} parent=1 // loop_body
      %s30 = ssub.s32 %s25, 1
      %s31 = ssub.s32 %s25, 2
      %s38 = sadd.s32 1, %s33
      %p39 = scmp.ge.s32.totalorder %s38, 3
      %s40 = scalar_select %p39, 0, %s38
      %s41 = sadd.s32 1, %s32
      %s42 = scalar_select %p39, %s41, %s32
      %p43 = scmp.ge.s32.totalorder %s42, 3
      %s44 = scalar_select %p43, 0, %s42
      %s46 = sadd.s32 %s45, 1
      %p49 = scmp.eq.s32.totalorder %s25, 8
      %p50 = scmp.ne.s32.totalorder %s45, %s47
      %p51 = scmp.eq.s32.totalorder %s25, 0
      %p52 = por %p50, %p51
      %p53 = scmp.ne.s32.totalorder %s45, %s47
      %p54 = scmp.eq.s32.totalorder %s30, 8
      %p55 = por %p53, %p54
      %p56 = scmp.ne.s32.totalorder %s47, %s48
      %p57 = scmp.eq.s32.totalorder %s30, 0
      %p58 = por %p56, %p57
      %p59 = scmp.ne.s32.totalorder %s47, %s48
      %p60 = scmp.eq.s32.totalorder %s31, 8
      %p61 = por %p59, %p60
      %p63 = scmp.ne.s32.totalorder %s48, %s62
      %p64 = scmp.eq.s32.totalorder %s31, 0
      %p65 = por %p63, %p64
      %s66 = ssub.s32 %s32, %s44
      %s67 = ssub.s32 %s33, %s40
      %s68 = sor.u32 %s66, %s67
      %p69 = scmp.eq.s32.totalorder %s68, 0
      %s71 = sadd.s32 %s70, 1
      %s72 = scalar_select %p69, %s70, %s71
      %p75 = pneg %p69
      %p76 = scmp.eq.s32.totalorder %s25, 8
      %p77 = por %p75, %p76
      %p78 = scmp.ne.s32.totalorder %s70, %s73
      %p79 = scmp.eq.s32.totalorder %s25, 0
      %p80 = por %p78, %p79
      %p81 = scmp.ne.s32.totalorder %s70, %s73
      %p82 = scmp.eq.s32.totalorder %s30, 8
      %p83 = por %p81, %p82
      %p84 = scmp.ne.s32.totalorder %s73, %s74
      %p85 = scmp.eq.s32.totalorder %s30, 0
      %p86 = por %p84, %p85
      %p87 = scmp.ne.s32.totalorder %s73, %s74
      %p88 = scmp.eq.s32.totalorder %s31, 8
      %p89 = por %p87, %p88
      %p91 = scmp.ne.s32.totalorder %s74, %s90
      %p92 = scmp.eq.s32.totalorder %s31, 0
      %p93 = por %p91, %p92
      %s94 = ssub.s32 %s32, %s44
      %s95 = ssub.s32 %s33, %s40
      %s96 = sor.u32 %s94, %s95
      %p97 = scmp.eq.s32.totalorder %s96, 0
      %s99 = sadd.s32 %s98, 1
      %s100 = scalar_select %p97, %s98, %s99
      %p103 = pneg %p97
      %p104 = scmp.eq.s32.totalorder %s25, 8
      %p105 = por %p103, %p104
      %p106 = scmp.ne.s32.totalorder %s98, %s101
      %p107 = scmp.eq.s32.totalorder %s25, 0
      %p108 = por %p106, %p107
      %p109 = scmp.ne.s32.totalorder %s98, %s101
      %p110 = scmp.eq.s32.totalorder %s30, 8
      %p111 = por %p109, %p110
      %p112 = scmp.ne.s32.totalorder %s101, %s102
      %p113 = scmp.eq.s32.totalorder %s30, 0
      %p114 = por %p112, %p113
      %p115 = scmp.ne.s32.totalorder %s101, %s102
      %p116 = scmp.eq.s32.totalorder %s31, 8
      %p117 = por %p115, %p116
      %p119 = scmp.ne.s32.totalorder %s102, %s118
      %p120 = scmp.eq.s32.totalorder %s31, 0
      %p121 = por %p119, %p120
      %s122 = ssub.s32 %s33, %s40
      %s123 = ssub.s32 %s32, %s44
      %s124 = sor.u32 %s122, %s123
      %p125 = scmp.eq.s32.totalorder %s124, 0
      %s127 = sadd.s32 %s126, 1
      %s128 = scalar_select %p125, %s126, %s127
      %p131 = pneg %p125
      %p132 = scmp.eq.s32.totalorder %s25, 8
      %p133 = por %p131, %p132
      %p134 = scmp.ne.s32.totalorder %s126, %s129
      %p135 = scmp.eq.s32.totalorder %s25, 0
      %p136 = por %p134, %p135
      %p137 = scmp.ne.s32.totalorder %s126, %s129
      %p138 = scmp.eq.s32.totalorder %s30, 8
      %p139 = por %p137, %p138
      %p140 = scmp.ne.s32.totalorder %s129, %s130
      %p141 = scmp.eq.s32.totalorder %s30, 0
      %p142 = por %p140, %p141
      %p143 = scmp.ne.s32.totalorder %s129, %s130
      %p144 = scmp.eq.s32.totalorder %s31, 8
      %p145 = por %p143, %p144
      %p147 = scmp.ne.s32.totalorder %s130, %s146
      %p148 = scmp.eq.s32.totalorder %s31, 0
      %p149 = por %p147, %p148
      %s150 = ssub.s32 %s32, %s44
      %p151 = scmp.eq.s32.totalorder %s150, 0
      %s153 = sadd.s32 %s152, 1
      %s154 = scalar_select %p151, %s152, %s153
      %p157 = pneg %p151
      %p158 = scmp.eq.s32.totalorder %s25, 8
      %p159 = por %p157, %p158
      %p160 = scmp.ne.s32.totalorder %s152, %s155
      %p161 = scmp.eq.s32.totalorder %s25, 0
      %p162 = por %p160, %p161
      %p163 = scmp.ne.s32.totalorder %s152, %s155
      %p164 = scmp.eq.s32.totalorder %s30, 8
      %p165 = por %p163, %p164
      %p166 = scmp.ne.s32.totalorder %s155, %s156
      %p167 = scmp.eq.s32.totalorder %s30, 0
      %p168 = por %p166, %p167
      %p169 = scmp.ne.s32.totalorder %s155, %s156
      %p170 = scmp.eq.s32.totalorder %s31, 8
      %p171 = por %p169, %p170
      %p173 = scmp.ne.s32.totalorder %s156, %s172
      %p174 = scmp.eq.s32.totalorder %s31, 0
      %p175 = por %p173, %p174
      %s176 = ssub.s32 %s33, %s40
      %p177 = scmp.eq.s32.totalorder %s176, 0
      %s179 = sadd.s32 %s178, 1
      %s180 = scalar_select %p177, %s178, %s179
      %p183 = pneg %p177
      %p184 = scmp.eq.s32.totalorder %s25, 8
      %p185 = por %p183, %p184
      %p186 = scmp.ne.s32.totalorder %s178, %s181
      %p187 = scmp.eq.s32.totalorder %s25, 0
      %p188 = por %p186, %p187
      %p189 = scmp.ne.s32.totalorder %s178, %s181
      %p190 = scmp.eq.s32.totalorder %s30, 8
      %p191 = por %p189, %p190
      %p192 = scmp.ne.s32.totalorder %s181, %s182
      %p193 = scmp.eq.s32.totalorder %s30, 0
      %p194 = por %p192, %p193
      %p195 = scmp.ne.s32.totalorder %s181, %s182
      %p196 = scmp.eq.s32.totalorder %s31, 8
      %p197 = por %p195, %p196
      %p199 = scmp.ne.s32.totalorder %s182, %s198
      %p200 = scmp.eq.s32.totalorder %s31, 0
      %p201 = por %p199, %p200
      %s202 = ssub.s32 %s32, %s44
      %p203 = scmp.eq.s32.totalorder %s202, 0
      %s205 = sadd.s32 %s204, 1
      %s206 = scalar_select %p203, %s204, %s205
      %p209 = pneg %p203
      %p210 = scmp.eq.s32.totalorder %s25, 8
      %p211 = por %p209, %p210
      %p212 = scmp.ne.s32.totalorder %s204, %s207
      %p213 = scmp.eq.s32.totalorder %s25, 0
      %p214 = por %p212, %p213
      %p215 = scmp.ne.s32.totalorder %s204, %s207
      %p216 = scmp.eq.s32.totalorder %s30, 8
      %p217 = por %p215, %p216
      %p218 = scmp.ne.s32.totalorder %s207, %s208
      %p219 = scmp.eq.s32.totalorder %s30, 0
      %p220 = por %p218, %p219
      %p221 = scmp.ne.s32.totalorder %s207, %s208
      %p222 = scmp.eq.s32.totalorder %s31, 8
      %p223 = por %p221, %p222
      %p225 = scmp.ne.s32.totalorder %s208, %s224
      %p226 = scmp.eq.s32.totalorder %s31, 0
      %p227 = por %p225, %p226
      %p228 = scmp.le.s32.totalorder 1, %s25
      %p229 = scmp.lt.s32.totalorder %s25, 10
      %p230 = pnand %p228, %p229
      %p231 = pneg %p230
      // Predicated region
      $region9: #{tpu_custom_call.1} parent=5 // pred_check
        _
      $region10: #{tpu_custom_call.1} parent=5 // pred_check_branch
        %233 = sbr.rel (%p230) target = $region12
      $region11: #{tpu_custom_call.1} parent=5 // pred_region
        %s234 = ssub.s32 %s25, 1
        // Predicated region
        $region13: #{tpu_custom_call.1} parent=11 // pred_check
          %p235 = pneg %p58
        $region14: #{tpu_custom_call.1} parent=11 // pred_check_branch
          %237 = sbr.rel (%p235) target = $region16
        $region15: #{tpu_custom_call.1} parent=11 // pred_region
          %s239 = ssub.s32 16, 16
          %240 = vsyncadd [#allocation5], %s239
          %243 = dma.hbm_to_smem %s0, 16, [#allocation2], [#allocation5]
        $region16: #{tpu_custom_call.1} parent=11 // pred_fallthru
          _
      $region12: #{tpu_custom_call.1} parent=5 // pred_fallthru
        _
      %p244 = scmp.lt.s32.totalorder %s25, 9
      // Predicated region
      $region17: #{tpu_custom_call.1} parent=5 // pred_check
        %p245 = pneg %p244
      $region18: #{tpu_custom_call.1} parent=5 // pred_check_branch
        %247 = sbr.rel (%p245) target = $region20
      $region19: #{tpu_custom_call.1} parent=5 // pred_region
        // Predicated region
        $region21: #{tpu_custom_call.1} parent=19 // pred_check
          %p248 = pneg %p80
        $region22: #{tpu_custom_call.1} parent=19 // pred_check_branch
          %250 = sbr.rel (%p248) target = $region24
        $region23: #{tpu_custom_call.1} parent=19 // pred_region
          %s251 = sand.u32 %s70, 1
          %s252 = scalar_lea.sflag [#allocation3], %s251
          %s253 = sand.u32 %s70, 1
          %s254 = smul.addr %s253, 512
          %s255 = scalar_lea.vmem [#allocation6], %s254
          %s256 = smul.u32 32, %s32
          %s257 = smul.u32 2, %s33
          %s258 = ssub.s32 80, %s256
          %p259 = scmp.lt.s32.totalorder %s258, 32
          %s260 = scalar_select %p259, %s258, 32
          %s261 = smul.u32 128, %s260
          %s262 = ssub.s32 5, %s257
          %p263 = scmp.lt.s32.totalorder %s262, 2
          %s264 = scalar_select %p263, %s262, 2
          %s265 = smul.u32 %s261, %s264
          %s267 = ssub.s32 8192, %s265
          %268 = vsyncadd %s252, %s267
          %p269 = scmp.ne.s32.totalorder 0, %s265
          %s270 = smul.addr %s256, 5
          %s271 = sadd.s32 %s257, %s270
          %s272 = smul.addr %s271, 128
          %s273 = scalar_lea.hbm %s1, %s272
          %s274 = smul.u32 %s264, 8
          %s275 = smul.u32 %s274, %s260
          %s276 = sshll.u32 %s255, 4
          %s277 = int_to_ptr.vmem [resolvable:$true] %s276
          %s278 = sshll.u32 %s275, 4
          %282 = dma.hbm_to_vmem [thread:$0]  (%p269), %s273, %s278, %s277, %s252, 640, 256, %s274
        $region24: #{tpu_custom_call.1} parent=19 // pred_fallthru
          _
        // Predicated region
        $region25: #{tpu_custom_call.1} parent=19 // pred_check
          %p283 = pneg %p108
        $region26: #{tpu_custom_call.1} parent=19 // pred_check_branch
          %285 = sbr.rel (%p283) target = $region28
        $region27: #{tpu_custom_call.1} parent=19 // pred_region
          %s286 = sand.u32 %s25, 1
          %s287 = scalar_lea.sflag [#allocation8], %s286
          %s288 = sand.u32 %s98, 1
          %s289 = smul.addr %s288, 512
          %s290 = scalar_lea.vmem [#allocation7], %s289
          %s291 = smul.u32 32, %s32
          %s292 = smul.u32 2, %s33
          %s293 = ssub.s32 80, %s291
          %p294 = scmp.lt.s32.totalorder %s293, 32
          %s295 = scalar_select %p294, %s293, 32
          %s296 = smul.u32 128, %s295
          %s297 = ssub.s32 5, %s292
          %p298 = scmp.lt.s32.totalorder %s297, 2
          %s299 = scalar_select %p298, %s297, 2
          %s300 = smul.u32 %s296, %s299
          %s302 = ssub.s32 8192, %s300
          %303 = vsyncadd %s287, %s302
          %p304 = scmp.ne.s32.totalorder 0, %s300
          %s305 = smul.addr %s291, 5
          %s306 = sadd.s32 %s292, %s305
          %s307 = smul.addr %s306, 128
          %s308 = scalar_lea.hbm %s2, %s307
          %s309 = smul.u32 %s299, 8
          %s310 = smul.u32 %s309, %s295
          %s311 = sshll.u32 %s290, 4
          %s312 = int_to_ptr.vmem [resolvable:$true] %s311
          %s313 = sshll.u32 %s310, 4
          %317 = dma.hbm_to_vmem [thread:$0]  (%p304), %s308, %s313, %s312, %s287, 640, 256, %s309
        $region28: #{tpu_custom_call.1} parent=19 // pred_fallthru
          _
        // Predicated region
        $region29: #{tpu_custom_call.1} parent=19 // pred_check
          %p318 = pneg %p136
        $region30: #{tpu_custom_call.1} parent=19 // pred_check_branch
          %320 = sbr.rel (%p318) target = $region32
        $region31: #{tpu_custom_call.1} parent=19 // pred_region
          %s321 = sand.u32 %s25, 1
          %s322 = scalar_lea.sflag [#allocation8], %s321
          %s323 = sand.u32 %s126, 1
          %s324 = smul.addr %s323, 512
          %s325 = scalar_lea.vmem [#allocation9], %s324
          %s326 = smul.u32 32, %s33
          %s327 = smul.u32 2, %s32
          %s328 = ssub.s32 80, %s326
          %p329 = scmp.lt.s32.totalorder %s328, 32
          %s330 = scalar_select %p329, %s328, 32
          %s331 = smul.u32 128, %s330
          %s332 = ssub.s32 5, %s327
          %p333 = scmp.lt.s32.totalorder %s332, 2
          %s334 = scalar_select %p333, %s332, 2
          %s335 = smul.u32 %s331, %s334
          %s337 = ssub.s32 8192, %s335
          %338 = vsyncadd %s322, %s337
          %p339 = scmp.ne.s32.totalorder 0, %s335
          %s340 = smul.addr %s326, 5
          %s341 = sadd.s32 %s327, %s340
          %s342 = smul.addr %s341, 128
          %s343 = scalar_lea.hbm %s3, %s342
          %s344 = smul.u32 %s334, 8
          %s345 = smul.u32 %s344, %s330
          %s346 = sshll.u32 %s325, 4
          %s347 = int_to_ptr.vmem [resolvable:$true] %s346
          %s348 = sshll.u32 %s345, 4
          %352 = dma.hbm_to_vmem [thread:$0]  (%p339), %s343, %s348, %s347, %s322, 640, 256, %s344
        $region32: #{tpu_custom_call.1} parent=19 // pred_fallthru
          _
        // Predicated region
        $region33: #{tpu_custom_call.1} parent=19 // pred_check
          %p353 = pneg %p162
        $region34: #{tpu_custom_call.1} parent=19 // pred_check_branch
          %355 = sbr.rel (%p353) target = $region36
        $region35: #{tpu_custom_call.1} parent=19 // pred_region
          %s356 = smul.u32 32, %s32
          %s357 = ssub.s32 80, %s356
          %p358 = scmp.lt.s32.totalorder %s357, 32
          %s359 = scalar_select %p358, %s357, 32
          %s360 = smul.u32 128, %s359
          %p361 = scmp.lt.s32.totalorder %s356, 79
          %s362 = scalar_select %p361, %s356, 79
          %s363 = smul.addr %s362, 8
          %s364 = scalar_lea.vmem %s4, %s363
          %s365 = smul.u32 32, %s32
          %s366 = ssub.s32 80, %s365
          %p367 = scmp.lt.s32.totalorder %s366, 32
          %s368 = scalar_select %p367, %s366, 32
          %s369 = smul.u32 128, %s368
        $region36: #{tpu_custom_call.1} parent=19 // pred_fallthru
          _
        // Predicated region
        $region37: #{tpu_custom_call.1} parent=19 // pred_check
          %p370 = pneg %p188
        $region38: #{tpu_custom_call.1} parent=19 // pred_check_branch
          %372 = sbr.rel (%p370) target = $region40
        $region39: #{tpu_custom_call.1} parent=19 // pred_region
          %s373 = sand.u32 %s178, 1
          %s374 = scalar_lea.sflag [#allocation11], %s373
          %s375 = sand.u32 %s178, 1
          %s376 = smul.addr %s375, 2
          %s377 = scalar_lea.vmem [#allocation10], %s376
          %s378 = smul.u32 2, %s33
          %s379 = ssub.s32 5, %s378
          %p380 = scmp.lt.s32.totalorder %s379, 2
          %s381 = scalar_select %p380, %s379, 2
          %s382 = smul.u32 16, %s381
          %s384 = ssub.s32 32, %s382
          %385 = vsyncadd %s374, %s384
          %p386 = scmp.ne.s32.totalorder 0, %s382
          %s387 = smul.addr %s378, 16
          %s388 = scalar_lea.hbm %s5, %s387
          %s389 = sshll.u32 %s381, 4
          %s390 = sshll.u32 %s377, 4
          %s391 = int_to_ptr.vmem [resolvable:$true] %s390
          %393 = dma.hbm_to_vmem [thread:$0]  (%p386), %s388, %s389, %s391, %s374
        $region40: #{tpu_custom_call.1} parent=19 // pred_fallthru
          _
      $region20: #{tpu_custom_call.1} parent=5 // pred_fallthru
        _
      %p394 = scmp.le.s32.totalorder 1, %s25
      %p395 = scmp.lt.s32.totalorder %s25, 10
      %p396 = pnand %p394, %p395
      %p397 = pneg %p396
      // Predicated region
      $region41: #{tpu_custom_call.1} parent=5 // pred_check
        _
      $region42: #{tpu_custom_call.1} parent=5 // pred_check_branch
        %399 = sbr.rel (%p396) target = $region44
      $region43: #{tpu_custom_call.1} parent=5 // pred_region
        %s400 = ssub.s32 %s25, 1
        // Predicated region
        $region45: #{tpu_custom_call.1} parent=43 // pred_check
          %p401 = pneg %p58
        $region46: #{tpu_custom_call.1} parent=43 // pred_check_branch
          %403 = sbr.rel (%p401) target = $region48
        $region47: #{tpu_custom_call.1} parent=43 // pred_region
          %404 = dma.done [#allocation5], 16
        $region48: #{tpu_custom_call.1} parent=43 // pred_fallthru
          _
        %s405 = sand.u32 %s73, 1
        %s406 = scalar_lea.sflag [#allocation3], %s405
        %s407 = sand.u32 %s73, 1
        %s408 = smul.addr %s407, 512
        %s409 = scalar_lea.vmem [#allocation6], %s408
        // Predicated region
        $region49: #{tpu_custom_call.1} parent=43 // pred_check
          %p410 = pneg %p86
        $region50: #{tpu_custom_call.1} parent=43 // pred_check_branch
          %412 = sbr.rel (%p410) target = $region52
        $region51: #{tpu_custom_call.1} parent=43 // pred_region
          %413 = dma.done %s406, 8192
        $region52: #{tpu_custom_call.1} parent=43 // pred_fallthru
          _
        %s414 = sand.u32 %s30, 1
        %s415 = scalar_lea.sflag [#allocation8], %s414
        %s416 = sand.u32 %s101, 1
        %s417 = smul.addr %s416, 512
        %s418 = scalar_lea.vmem [#allocation7], %s417
        // Predicated region
        $region53: #{tpu_custom_call.1} parent=43 // pred_check
          %p419 = pneg %p114
        $region54: #{tpu_custom_call.1} parent=43 // pred_check_branch
          %421 = sbr.rel (%p419) target = $region56
        $region55: #{tpu_custom_call.1} parent=43 // pred_region
          %422 = dma.done %s415, 8192
        $region56: #{tpu_custom_call.1} parent=43 // pred_fallthru
          _
        %s423 = sand.u32 %s30, 1
        %s424 = scalar_lea.sflag [#allocation8], %s423
        %s425 = sand.u32 %s129, 1
        %s426 = smul.addr %s425, 512
        %s427 = scalar_lea.vmem [#allocation9], %s426
        // Predicated region
        $region57: #{tpu_custom_call.1} parent=43 // pred_check
          %p428 = pneg %p142
        $region58: #{tpu_custom_call.1} parent=43 // pred_check_branch
          %430 = sbr.rel (%p428) target = $region60
        $region59: #{tpu_custom_call.1} parent=43 // pred_region
          %431 = dma.done %s424, 8192
        $region60: #{tpu_custom_call.1} parent=43 // pred_fallthru
          _
        %s432 = sand.u32 %s181, 1
        %s433 = scalar_lea.sflag [#allocation11], %s432
        %s434 = sand.u32 %s181, 1
        %s435 = smul.addr %s434, 2
        %s436 = scalar_lea.vmem [#allocation10], %s435
        // Predicated region
        $region61: #{tpu_custom_call.1} parent=43 // pred_check
          %p437 = pneg %p194
        $region62: #{tpu_custom_call.1} parent=43 // pred_check_branch
          %439 = sbr.rel (%p437) target = $region64
        $region63: #{tpu_custom_call.1} parent=43 // pred_region
          %440 = dma.done %s433, 32
        $region64: #{tpu_custom_call.1} parent=43 // pred_fallthru
          _
        %441 = sfence
        %p442 = pneg %p58
        %p443 = pneg %p55
        %s444 = sand.u32 %s73, 1
        %s445 = scalar_lea.sflag [#allocation3], %s444
        %s446 = sand.u32 %s73, 1
        %s447 = smul.addr %s446, 512
        %s448 = scalar_lea.vmem [#allocation6], %s447
        %p449 = pneg %p86
        %p450 = pneg %p83
        %s451 = sand.u32 %s30, 1
        %s452 = scalar_lea.sflag [#allocation8], %s451
        %s453 = sand.u32 %s101, 1
        %s454 = smul.addr %s453, 512
        %s455 = scalar_lea.vmem [#allocation7], %s454
        %p456 = pneg %p114
        %p457 = pneg %p111
        %s458 = sand.u32 %s30, 1
        %s459 = scalar_lea.sflag [#allocation8], %s458
        %s460 = sand.u32 %s129, 1
        %s461 = smul.addr %s460, 512
        %s462 = scalar_lea.vmem [#allocation9], %s461
        %p463 = pneg %p142
        %p464 = pneg %p139
        %s465 = smul.u32 32, %s34
        %s466 = ssub.s32 80, %s465
        %p467 = scmp.lt.s32.totalorder %s466, 32
        %s468 = scalar_select %p467, %s466, 32
        %s469 = smul.u32 128, %s468
        %p470 = scmp.lt.s32.totalorder %s465, 79
        %s471 = scalar_select %p470, %s465, 79
        %s472 = smul.addr %s471, 8
        %s473 = scalar_lea.vmem %s4, %s472
        %p474 = pneg %p168
        %p475 = pneg %p165
        %s476 = sand.u32 %s181, 1
        %s477 = scalar_lea.sflag [#allocation11], %s476
        %s478 = sand.u32 %s181, 1
        %s479 = smul.addr %s478, 2
        %s480 = scalar_lea.vmem [#allocation10], %s479
        %p481 = pneg %p194
        %p482 = pneg %p191
        %p483 = pneg %p220
        %p484 = pneg %p217
        %s485 = sand.u32 %s207, 1
        %s486 = scalar_lea.sflag [#allocation4], %s485
        %s487 = sand.u32 %s207, 1
        %s488 = smul.addr %s487, 8
        %s489 = scalar_lea.vmem [#allocation12], %s488
        %s490 = smul.u32 32, %s34
        %s491 = smul.u32 2, %s35
        %s492 = ssub.s32 80, %s490
        %p493 = scmp.lt.s32.totalorder %s492, 32
        %s494 = scalar_select %p493, %s492, 32
        %s495 = smul.u32 128, %s494
        %s496 = ssub.s32 5, %s491
        %p497 = scmp.lt.s32.totalorder %s496, 2
        %s498 = scalar_select %p497, %s496, 2
        %s499 = smul.u32 %s495, %s498
        %s500 = smul.u32 32, %s34
        %s501 = smul.u32 2, %s35
        %s502 = ssub.s32 80, %s500
        %p503 = scmp.lt.s32.totalorder %s502, 32
        %s504 = scalar_select %p503, %s502, 32
        %s505 = smul.u32 128, %s504
        %s506 = ssub.s32 5, %s501
        %p507 = scmp.lt.s32.totalorder %s506, 2
        %s508 = scalar_select %p507, %s506, 2
        %s509 = smul.u32 %s505, %s508
        %s510 = smul.u32 32, %s35
        %s511 = smul.u32 2, %s34
        %s512 = ssub.s32 80, %s510
        %p513 = scmp.lt.s32.totalorder %s512, 32
        %s514 = scalar_select %p513, %s512, 32
        %s515 = smul.u32 128, %s514
        %s516 = ssub.s32 5, %s511
        %p517 = scmp.lt.s32.totalorder %s516, 2
        %s518 = scalar_select %p517, %s516, 2
        %s519 = smul.u32 %s515, %s518
        %s520 = smul.u32 32, %s34
        %s521 = ssub.s32 80, %s520
        %p522 = scmp.lt.s32.totalorder %s521, 32
        %s523 = scalar_select %p522, %s521, 32
        %s524 = smul.u32 128, %s523
        %p525 = scmp.lt.s32.totalorder %s520, 79
        %s526 = scalar_select %p525, %s520, 79
        %s527 = smul.addr %s526, 8
        %s528 = scalar_lea.vmem %s4, %s527
        %s529 = smul.u32 32, %s34
        %s530 = ssub.s32 80, %s529
        %p531 = scmp.lt.s32.totalorder %s530, 32
        %s532 = scalar_select %p531, %s530, 32
        %s533 = smul.u32 128, %s532
        %s534 = smul.u32 2, %s35
        %s535 = ssub.s32 5, %s534
        %p536 = scmp.lt.s32.totalorder %s535, 2
        %s537 = scalar_select %p536, %s535, 2
        %s538 = smul.u32 16, %s537
        %p539 = scmp.eq.s32.totalorder %s35, 0
        // Predicated region
        $region65: #{tpu_custom_call.1} parent=43 // pred_check
          %p540 = pneg %p539
        $region66: #{tpu_custom_call.1} parent=43 // pred_check_branch
          %542 = sbr.rel (%p540) target = $region68
        $region67: #{tpu_custom_call.1} parent=43 // pred_region
          %543 = vst [vmem:[%s489] sm:$0xff] 0.0
        $region68: #{tpu_custom_call.1} parent=43 // pred_fallthru
          _
        %s544 = sld [smem:[#allocation2]]
        %s545 = sld [smem:[#allocation2 + $0x1]]
        %v546 = vld [vmem:[%s409] sm:$0xff]
        %v547 = vld [vmem:[%s409 + $0x8] sm:$0xff]
        %v548 = vld [vmem:[%s409 + $0x10] sm:$0xff]
        %v549 = vld [vmem:[%s409 + $0x18] sm:$0xff]
        %v550 = vld [vmem:[%s409 + $0x20] sm:$0xff]
        %v551 = vld [vmem:[%s409 + $0x28] sm:$0xff]
        %v552 = vld [vmem:[%s409 + $0x30] sm:$0xff]
        %v553 = vld [vmem:[%s409 + $0x38] sm:$0xff]
        %v554 = vld [vmem:[%s409 + $0x40] sm:$0xff]
        %v555 = vld [vmem:[%s409 + $0x48] sm:$0xff]
        %v556 = vld [vmem:[%s409 + $0x50] sm:$0xff]
        %v557 = vld [vmem:[%s409 + $0x58] sm:$0xff]
        %v558 = vld [vmem:[%s409 + $0x60] sm:$0xff]
        %v559 = vld [vmem:[%s409 + $0x68] sm:$0xff]
        %v560 = vld [vmem:[%s409 + $0x70] sm:$0xff]
        %v561 = vld [vmem:[%s409 + $0x78] sm:$0xff]
        %v562 = vld [vmem:[%s409 + $0x80] sm:$0xff]
        %v563 = vld [vmem:[%s409 + $0x88] sm:$0xff]
        %v564 = vld [vmem:[%s409 + $0x90] sm:$0xff]
        %v565 = vld [vmem:[%s409 + $0x98] sm:$0xff]
        %v566 = vld [vmem:[%s409 + $0xa0] sm:$0xff]
        %v567 = vld [vmem:[%s409 + $0xa8] sm:$0xff]
        %v568 = vld [vmem:[%s409 + $0xb0] sm:$0xff]
        %v569 = vld [vmem:[%s409 + $0xb8] sm:$0xff]
        %v570 = vld [vmem:[%s409 + $0xc0] sm:$0xff]
        %v571 = vld [vmem:[%s409 + $0xc8] sm:$0xff]
        %v572 = vld [vmem:[%s409 + $0xd0] sm:$0xff]
        %v573 = vld [vmem:[%s409 + $0xd8] sm:$0xff]
        %v574 = vld [vmem:[%s409 + $0xe0] sm:$0xff]
        %v575 = vld [vmem:[%s409 + $0xe8] sm:$0xff]
        %v576 = vld [vmem:[%s409 + $0xf0] sm:$0xff]
        %v577 = vld [vmem:[%s409 + $0xf8] sm:$0xff]
        %v578 = vld [vmem:[%s409 + $0x100] sm:$0xff]
        %v579 = vld [vmem:[%s409 + $0x108] sm:$0xff]
        %v580 = vld [vmem:[%s409 + $0x110] sm:$0xff]
        %v581 = vld [vmem:[%s409 + $0x118] sm:$0xff]
        %v582 = vld [vmem:[%s409 + $0x120] sm:$0xff]
        %v583 = vld [vmem:[%s409 + $0x128] sm:$0xff]
        %v584 = vld [vmem:[%s409 + $0x130] sm:$0xff]
        %v585 = vld [vmem:[%s409 + $0x138] sm:$0xff]
        %v586 = vld [vmem:[%s409 + $0x140] sm:$0xff]
        %v587 = vld [vmem:[%s409 + $0x148] sm:$0xff]
        %v588 = vld [vmem:[%s409 + $0x150] sm:$0xff]
        %v589 = vld [vmem:[%s409 + $0x158] sm:$0xff]
        %v590 = vld [vmem:[%s409 + $0x160] sm:$0xff]
        %v591 = vld [vmem:[%s409 + $0x168] sm:$0xff]
        %v592 = vld [vmem:[%s409 + $0x170] sm:$0xff]
        %v593 = vld [vmem:[%s409 + $0x178] sm:$0xff]
        %v594 = vld [vmem:[%s409 + $0x180] sm:$0xff]
        %v595 = vld [vmem:[%s409 + $0x188] sm:$0xff]
        %v596 = vld [vmem:[%s409 + $0x190] sm:$0xff]
        %v597 = vld [vmem:[%s409 + $0x198] sm:$0xff]
        %v598 = vld [vmem:[%s409 + $0x1a0] sm:$0xff]
        %v599 = vld [vmem:[%s409 + $0x1a8] sm:$0xff]
        %v600 = vld [vmem:[%s409 + $0x1b0] sm:$0xff]
        %v601 = vld [vmem:[%s409 + $0x1b8] sm:$0xff]
        %v602 = vld [vmem:[%s409 + $0x1c0] sm:$0xff]
        %v603 = vld [vmem:[%s409 + $0x1c8] sm:$0xff]
        %v604 = vld [vmem:[%s409 + $0x1d0] sm:$0xff]
        %v605 = vld [vmem:[%s409 + $0x1d8] sm:$0xff]
        %v606 = vld [vmem:[%s409 + $0x1e0] sm:$0xff]
        %v607 = vld [vmem:[%s409 + $0x1e8] sm:$0xff]
        %v608 = vld [vmem:[%s409 + $0x1f0] sm:$0xff]
        %v609 = vld [vmem:[%s409 + $0x1f8] sm:$0xff]
        %v610 = vld [vmem:[%s418] sm:$0xff]
        %v611 = vld [vmem:[%s418 + $0x8] sm:$0xff]
        %v612 = vld [vmem:[%s418 + $0x10] sm:$0xff]
        %v613 = vld [vmem:[%s418 + $0x18] sm:$0xff]
        %v614 = vld [vmem:[%s418 + $0x20] sm:$0xff]
        %v615 = vld [vmem:[%s418 + $0x28] sm:$0xff]
        %v616 = vld [vmem:[%s418 + $0x30] sm:$0xff]
        %v617 = vld [vmem:[%s418 + $0x38] sm:$0xff]
        %v618 = vld [vmem:[%s418 + $0x40] sm:$0xff]
        %v619 = vld [vmem:[%s418 + $0x48] sm:$0xff]
        %v620 = vld [vmem:[%s418 + $0x50] sm:$0xff]
        %v621 = vld [vmem:[%s418 + $0x58] sm:$0xff]
        %v622 = vld [vmem:[%s418 + $0x60] sm:$0xff]
        %v623 = vld [vmem:[%s418 + $0x68] sm:$0xff]
        %v624 = vld [vmem:[%s418 + $0x70] sm:$0xff]
        %v625 = vld [vmem:[%s418 + $0x78] sm:$0xff]
        %v626 = vld [vmem:[%s418 + $0x80] sm:$0xff]
        %v627 = vld [vmem:[%s418 + $0x88] sm:$0xff]
        %v628 = vld [vmem:[%s418 + $0x90] sm:$0xff]
        %v629 = vld [vmem:[%s418 + $0x98] sm:$0xff]
        %v630 = vld [vmem:[%s418 + $0xa0] sm:$0xff]
        %v631 = vld [vmem:[%s418 + $0xa8] sm:$0xff]
        %v632 = vld [vmem:[%s418 + $0xb0] sm:$0xff]
        %v633 = vld [vmem:[%s418 + $0xb8] sm:$0xff]
        %v634 = vld [vmem:[%s418 + $0xc0] sm:$0xff]
        %v635 = vld [vmem:[%s418 + $0xc8] sm:$0xff]
        %v636 = vld [vmem:[%s418 + $0xd0] sm:$0xff]
        %v637 = vld [vmem:[%s418 + $0xd8] sm:$0xff]
        %v638 = vld [vmem:[%s418 + $0xe0] sm:$0xff]
        %v639 = vld [vmem:[%s418 + $0xe8] sm:$0xff]
        %v640 = vld [vmem:[%s418 + $0xf0] sm:$0xff]
        %v641 = vld [vmem:[%s418 + $0xf8] sm:$0xff]
        %v642 = vld [vmem:[%s418 + $0x100] sm:$0xff]
        %v643 = vld [vmem:[%s418 + $0x108] sm:$0xff]
        %v644 = vld [vmem:[%s418 + $0x110] sm:$0xff]
        %v645 = vld [vmem:[%s418 + $0x118] sm:$0xff]
        %v646 = vld [vmem:[%s418 + $0x120] sm:$0xff]
        %v647 = vld [vmem:[%s418 + $0x128] sm:$0xff]
        %v648 = vld [vmem:[%s418 + $0x130] sm:$0xff]
        %v649 = vld [vmem:[%s418 + $0x138] sm:$0xff]
        %v650 = vld [vmem:[%s418 + $0x140] sm:$0xff]
        %v651 = vld [vmem:[%s418 + $0x148] sm:$0xff]
        %v652 = vld [vmem:[%s418 + $0x150] sm:$0xff]
        %v653 = vld [vmem:[%s418 + $0x158] sm:$0xff]
        %v654 = vld [vmem:[%s418 + $0x160] sm:$0xff]
        %v655 = vld [vmem:[%s418 + $0x168] sm:$0xff]
        %v656 = vld [vmem:[%s418 + $0x170] sm:$0xff]
        %v657 = vld [vmem:[%s418 + $0x178] sm:$0xff]
        %v658 = vld [vmem:[%s418 + $0x180] sm:$0xff]
        %v659 = vld [vmem:[%s418 + $0x188] sm:$0xff]
        %v660 = vld [vmem:[%s418 + $0x190] sm:$0xff]
        %v661 = vld [vmem:[%s418 + $0x198] sm:$0xff]
        %v662 = vld [vmem:[%s418 + $0x1a0] sm:$0xff]
        %v663 = vld [vmem:[%s418 + $0x1a8] sm:$0xff]
        %v664 = vld [vmem:[%s418 + $0x1b0] sm:$0xff]
        %v665 = vld [vmem:[%s418 + $0x1b8] sm:$0xff]
        %v666 = vld [vmem:[%s418 + $0x1c0] sm:$0xff]
        %v667 = vld [vmem:[%s418 + $0x1c8] sm:$0xff]
        %v668 = vld [vmem:[%s418 + $0x1d0] sm:$0xff]
        %v669 = vld [vmem:[%s418 + $0x1d8] sm:$0xff]
        %v670 = vld [vmem:[%s418 + $0x1e0] sm:$0xff]
        %v671 = vld [vmem:[%s418 + $0x1e8] sm:$0xff]
        %v672 = vld [vmem:[%s418 + $0x1f0] sm:$0xff]
        %v673 = vld [vmem:[%s418 + $0x1f8] sm:$0xff]
        %v674 = vld [vmem:[%s427] sm:$0xff]
        %v675 = vld [vmem:[%s427 + $0x8] sm:$0xff]
        %v676 = vld [vmem:[%s427 + $0x10] sm:$0xff]
        %v677 = vld [vmem:[%s427 + $0x18] sm:$0xff]
        %v678 = vld [vmem:[%s427 + $0x20] sm:$0xff]
        %v679 = vld [vmem:[%s427 + $0x28] sm:$0xff]
        %v680 = vld [vmem:[%s427 + $0x30] sm:$0xff]
        %v681 = vld [vmem:[%s427 + $0x38] sm:$0xff]
        %v682 = vld [vmem:[%s427 + $0x40] sm:$0xff]
        %v683 = vld [vmem:[%s427 + $0x48] sm:$0xff]
        %v684 = vld [vmem:[%s427 + $0x50] sm:$0xff]
        %v685 = vld [vmem:[%s427 + $0x58] sm:$0xff]
        %v686 = vld [vmem:[%s427 + $0x60] sm:$0xff]
        %v687 = vld [vmem:[%s427 + $0x68] sm:$0xff]
        %v688 = vld [vmem:[%s427 + $0x70] sm:$0xff]
        %v689 = vld [vmem:[%s427 + $0x78] sm:$0xff]
        %v690 = vld [vmem:[%s427 + $0x80] sm:$0xff]
        %v691 = vld [vmem:[%s427 + $0x88] sm:$0xff]
        %v692 = vld [vmem:[%s427 + $0x90] sm:$0xff]
        %v693 = vld [vmem:[%s427 + $0x98] sm:$0xff]
        %v694 = vld [vmem:[%s427 + $0xa0] sm:$0xff]
        %v695 = vld [vmem:[%s427 + $0xa8] sm:$0xff]
        %v696 = vld [vmem:[%s427 + $0xb0] sm:$0xff]
        %v697 = vld [vmem:[%s427 + $0xb8] sm:$0xff]
        %v698 = vld [vmem:[%s427 + $0xc0] sm:$0xff]
        %v699 = vld [vmem:[%s427 + $0xc8] sm:$0xff]
        %v700 = vld [vmem:[%s427 + $0xd0] sm:$0xff]
        %v701 = vld [vmem:[%s427 + $0xd8] sm:$0xff]
        %v702 = vld [vmem:[%s427 + $0xe0] sm:$0xff]
        %v703 = vld [vmem:[%s427 + $0xe8] sm:$0xff]
        %v704 = vld [vmem:[%s427 + $0xf0] sm:$0xff]
        %v705 = vld [vmem:[%s427 + $0xf8] sm:$0xff]
        %v706 = vld [vmem:[%s427 + $0x100] sm:$0xff]
        %v707 = vld [vmem:[%s427 + $0x108] sm:$0xff]
        %v708 = vld [vmem:[%s427 + $0x110] sm:$0xff]
        %v709 = vld [vmem:[%s427 + $0x118] sm:$0xff]
        %v710 = vld [vmem:[%s427 + $0x120] sm:$0xff]
        %v711 = vld [vmem:[%s427 + $0x128] sm:$0xff]
        %v712 = vld [vmem:[%s427 + $0x130] sm:$0xff]
        %v713 = vld [vmem:[%s427 + $0x138] sm:$0xff]
        %v714 = vld [vmem:[%s427 + $0x140] sm:$0xff]
        %v715 = vld [vmem:[%s427 + $0x148] sm:$0xff]
        %v716 = vld [vmem:[%s427 + $0x150] sm:$0xff]
        %v717 = vld [vmem:[%s427 + $0x158] sm:$0xff]
        %v718 = vld [vmem:[%s427 + $0x160] sm:$0xff]
        %v719 = vld [vmem:[%s427 + $0x168] sm:$0xff]
        %v720 = vld [vmem:[%s427 + $0x170] sm:$0xff]
        %v721 = vld [vmem:[%s427 + $0x178] sm:$0xff]
        %v722 = vld [vmem:[%s427 + $0x180] sm:$0xff]
        %v723 = vld [vmem:[%s427 + $0x188] sm:$0xff]
        %v724 = vld [vmem:[%s427 + $0x190] sm:$0xff]
        %v725 = vld [vmem:[%s427 + $0x198] sm:$0xff]
        %v726 = vld [vmem:[%s427 + $0x1a0] sm:$0xff]
        %v727 = vld [vmem:[%s427 + $0x1a8] sm:$0xff]
        %v728 = vld [vmem:[%s427 + $0x1b0] sm:$0xff]
        %v729 = vld [vmem:[%s427 + $0x1b8] sm:$0xff]
        %v730 = vld [vmem:[%s427 + $0x1c0] sm:$0xff]
        %v731 = vld [vmem:[%s427 + $0x1c8] sm:$0xff]
        %v732 = vld [vmem:[%s427 + $0x1d0] sm:$0xff]
        %v733 = vld [vmem:[%s427 + $0x1d8] sm:$0xff]
        %v734 = vld [vmem:[%s427 + $0x1e0] sm:$0xff]
        %v735 = vld [vmem:[%s427 + $0x1e8] sm:$0xff]
        %v736 = vld [vmem:[%s427 + $0x1f0] sm:$0xff]
        %v737 = vld [vmem:[%s427 + $0x1f8] sm:$0xff]
        %738 = vxpose.xlu0.b32.start [1/16] %v674, 128
        %739 = vxpose.xlu0.b32.cont [2/16] %v676, 128
        %740 = vxpose.xlu0.b32.cont [3/16] %v678, 128
        %741 = vxpose.xlu0.b32.cont [4/16] %v680, 128
        %742 = vxpose.xlu0.b32.cont [5/16] %v682, 128
        %743 = vxpose.xlu0.b32.cont [6/16] %v684, 128
        %744 = vxpose.xlu0.b32.cont [7/16] %v686, 128
        %745 = vxpose.xlu0.b32.cont [8/16] %v688, 128
        %746 = vxpose.xlu0.b32.cont [9/16] %v690, 128
        %747 = vxpose.xlu0.b32.cont [10/16] %v692, 128
        %748 = vxpose.xlu0.b32.cont [11/16] %v694, 128
        %749 = vxpose.xlu0.b32.cont [12/16] %v696, 128
        %750 = vxpose.xlu0.b32.cont [13/16] %v698, 128
        %751 = vxpose.xlu0.b32.cont [14/16] %v700, 128
        %752 = vxpose.xlu0.b32.cont [15/16] %v702, 128
        %753 = vxpose.xlu0.b32.end [16/16] %v704, 128
        %v754 = vpop.trf.xlu0
        %v755 = vpop.trf.xlu0
        %v756 = vpop.trf.xlu0
        %v757 = vpop.trf.xlu0
        %v758 = vpop.trf.xlu0
        %v759 = vpop.trf.xlu0
        %v760 = vpop.trf.xlu0
        %v761 = vpop.trf.xlu0
        %v762 = vpop.trf.xlu0
        %v763 = vpop.trf.xlu0
        %v764 = vpop.trf.xlu0
        %v765 = vpop.trf.xlu0
        %v766 = vpop.trf.xlu0
        %v767 = vpop.trf.xlu0
        %v768 = vpop.trf.xlu0
        %v769 = vpop.trf.xlu0
        %770 = vxpose.xlu0.b32.start [1/16] %v675, 128
        %771 = vxpose.xlu0.b32.cont [2/16] %v677, 128
        %772 = vxpose.xlu0.b32.cont [3/16] %v679, 128
        %773 = vxpose.xlu0.b32.cont [4/16] %v681, 128
        %774 = vxpose.xlu0.b32.cont [5/16] %v683, 128
        %775 = vxpose.xlu0.b32.cont [6/16] %v685, 128
        %776 = vxpose.xlu0.b32.cont [7/16] %v687, 128
        %777 = vxpose.xlu0.b32.cont [8/16] %v689, 128
        %778 = vxpose.xlu0.b32.cont [9/16] %v691, 128
        %779 = vxpose.xlu0.b32.cont [10/16] %v693, 128
        %780 = vxpose.xlu0.b32.cont [11/16] %v695, 128
        %781 = vxpose.xlu0.b32.cont [12/16] %v697, 128
        %782 = vxpose.xlu0.b32.cont [13/16] %v699, 128
        %783 = vxpose.xlu0.b32.cont [14/16] %v701, 128
        %784 = vxpose.xlu0.b32.cont [15/16] %v703, 128
        %785 = vxpose.xlu0.b32.end [16/16] %v705, 128
        %v786 = vpop.trf.xlu0
        %v787 = vpop.trf.xlu0
        %v788 = vpop.trf.xlu0
        %v789 = vpop.trf.xlu0
        %v790 = vpop.trf.xlu0
        %v791 = vpop.trf.xlu0
        %v792 = vpop.trf.xlu0
        %v793 = vpop.trf.xlu0
        %v794 = vpop.trf.xlu0
        %v795 = vpop.trf.xlu0
        %v796 = vpop.trf.xlu0
        %v797 = vpop.trf.xlu0
        %v798 = vpop.trf.xlu0
        %v799 = vpop.trf.xlu0
        %v800 = vpop.trf.xlu0
        %v801 = vpop.trf.xlu0
        %802 = vxpose.xlu0.b32.start [1/16] %v706, 128
        %803 = vxpose.xlu0.b32.cont [2/16] %v708, 128
        %804 = vxpose.xlu0.b32.cont [3/16] %v710, 128
        %805 = vxpose.xlu0.b32.cont [4/16] %v712, 128
        %806 = vxpose.xlu0.b32.cont [5/16] %v714, 128
        %807 = vxpose.xlu0.b32.cont [6/16] %v716, 128
        %808 = vxpose.xlu0.b32.cont [7/16] %v718, 128
        %809 = vxpose.xlu0.b32.cont [8/16] %v720, 128
        %810 = vxpose.xlu0.b32.cont [9/16] %v722, 128
        %811 = vxpose.xlu0.b32.cont [10/16] %v724, 128
        %812 = vxpose.xlu0.b32.cont [11/16] %v726, 128
        %813 = vxpose.xlu0.b32.cont [12/16] %v728, 128
        %814 = vxpose.xlu0.b32.cont [13/16] %v730, 128
        %815 = vxpose.xlu0.b32.cont [14/16] %v732, 128
        %816 = vxpose.xlu0.b32.cont [15/16] %v734, 128
        %817 = vxpose.xlu0.b32.end [16/16] %v736, 128
        %v818 = vpop.trf.xlu0
        %v819 = vpop.trf.xlu0
        %v820 = vpop.trf.xlu0
        %v821 = vpop.trf.xlu0
        %v822 = vpop.trf.xlu0
        %v823 = vpop.trf.xlu0
        %v824 = vpop.trf.xlu0
        %v825 = vpop.trf.xlu0
        %v826 = vpop.trf.xlu0
        %v827 = vpop.trf.xlu0
        %v828 = vpop.trf.xlu0
        %v829 = vpop.trf.xlu0
        %v830 = vpop.trf.xlu0
        %v831 = vpop.trf.xlu0
        %v832 = vpop.trf.xlu0
        %v833 = vpop.trf.xlu0
        %834 = vxpose.xlu0.b32.start [1/16] %v707, 128
        %835 = vxpose.xlu0.b32.cont [2/16] %v709, 128
        %836 = vxpose.xlu0.b32.cont [3/16] %v711, 128
        %837 = vxpose.xlu0.b32.cont [4/16] %v713, 128
        %838 = vxpose.xlu0.b32.cont [5/16] %v715, 128
        %839 = vxpose.xlu0.b32.cont [6/16] %v717, 128
        %840 = vxpose.xlu0.b32.cont [7/16] %v719, 128
        %841 = vxpose.xlu0.b32.cont [8/16] %v721, 128
        %842 = vxpose.xlu0.b32.cont [9/16] %v723, 128
        %843 = vxpose.xlu0.b32.cont [10/16] %v725, 128
        %844 = vxpose.xlu0.b32.cont [11/16] %v727, 128
        %845 = vxpose.xlu0.b32.cont [12/16] %v729, 128
        %846 = vxpose.xlu0.b32.cont [13/16] %v731, 128
        %847 = vxpose.xlu0.b32.cont [14/16] %v733, 128
        %848 = vxpose.xlu0.b32.cont [15/16] %v735, 128
        %849 = vxpose.xlu0.b32.end [16/16] %v737, 128
        %v850 = vpop.trf.xlu0
        %v851 = vpop.trf.xlu0
        %v852 = vpop.trf.xlu0
        %v853 = vpop.trf.xlu0
        %v854 = vpop.trf.xlu0
        %v855 = vpop.trf.xlu0
        %v856 = vpop.trf.xlu0
        %v857 = vpop.trf.xlu0
        %v858 = vpop.trf.xlu0
        %v859 = vpop.trf.xlu0
        %v860 = vpop.trf.xlu0
        %v861 = vpop.trf.xlu0
        %v862 = vpop.trf.xlu0
        %v863 = vpop.trf.xlu0
        %v864 = vpop.trf.xlu0
        %v865 = vpop.trf.xlu0
        %v866 = vld [vmem:[%s528] sm:$0xff]
        %v867 = vld [vmem:[%s528 + $0x8] sm:$0xff]
        %v868 = vld [vmem:[%s528 + $0x10] sm:$0xff]
        %v869 = vld [vmem:[%s528 + $0x18] sm:$0xff]
        %v870 = vld [vmem:[%s528 + $0x20] sm:$0xff]
        %v871 = vld [vmem:[%s528 + $0x28] sm:$0xff]
        %v872 = vld [vmem:[%s528 + $0x30] sm:$0xff]
        %v873 = vld [vmem:[%s528 + $0x38] sm:$0xff]
        %v874 = vld [vmem:[%s528 + $0x40] sm:$0xff]
        %v875 = vld [vmem:[%s528 + $0x48] sm:$0xff]
        %v876 = vld [vmem:[%s528 + $0x50] sm:$0xff]
        %v877 = vld [vmem:[%s528 + $0x58] sm:$0xff]
        %v878 = vld [vmem:[%s528 + $0x60] sm:$0xff]
        %v879 = vld [vmem:[%s528 + $0x68] sm:$0xff]
        %v880 = vld [vmem:[%s528 + $0x70] sm:$0xff]
        %v881 = vld [vmem:[%s528 + $0x78] sm:$0xff]
        %v882 = vld [vmem:[%s528 + $0x80] sm:$0xff]
        %v883 = vld [vmem:[%s528 + $0x88] sm:$0xff]
        %v884 = vld [vmem:[%s528 + $0x90] sm:$0xff]
        %v885 = vld [vmem:[%s528 + $0x98] sm:$0xff]
        %v886 = vld [vmem:[%s528 + $0xa0] sm:$0xff]
        %v887 = vld [vmem:[%s528 + $0xa8] sm:$0xff]
        %v888 = vld [vmem:[%s528 + $0xb0] sm:$0xff]
        %v889 = vld [vmem:[%s528 + $0xb8] sm:$0xff]
        %v890 = vld [vmem:[%s528 + $0xc0] sm:$0xff]
        %v891 = vld [vmem:[%s528 + $0xc8] sm:$0xff]
        %v892 = vld [vmem:[%s528 + $0xd0] sm:$0xff]
        %v893 = vld [vmem:[%s528 + $0xd8] sm:$0xff]
        %v894 = vld [vmem:[%s528 + $0xe0] sm:$0xff]
        %v895 = vld [vmem:[%s528 + $0xe8] sm:$0xff]
        %v896 = vld [vmem:[%s528 + $0xf0] sm:$0xff]
        %v897 = vld [vmem:[%s528 + $0xf8] sm:$0xff]
        %v898 = vld [vmem:[%s436] sm:$0x3]
        %v899 = vstv %s544
        %vm900 = vcmp.eq.f32.partialorder %v546, %v899
        %vm901 = vcmp.eq.f32.partialorder %v547, %v899
        %vm902 = vcmp.eq.f32.partialorder %v548, %v899
        %vm903 = vcmp.eq.f32.partialorder %v549, %v899
        %vm904 = vcmp.eq.f32.partialorder %v550, %v899
        %vm905 = vcmp.eq.f32.partialorder %v551, %v899
        %vm906 = vcmp.eq.f32.partialorder %v552, %v899
        %vm907 = vcmp.eq.f32.partialorder %v553, %v899
        %vm908 = vcmp.eq.f32.partialorder %v554, %v899
        %vm909 = vcmp.eq.f32.partialorder %v555, %v899
        %vm910 = vcmp.eq.f32.partialorder %v556, %v899
        %vm911 = vcmp.eq.f32.partialorder %v557, %v899
        %vm912 = vcmp.eq.f32.partialorder %v558, %v899
        %vm913 = vcmp.eq.f32.partialorder %v559, %v899
        %vm914 = vcmp.eq.f32.partialorder %v560, %v899
        %vm915 = vcmp.eq.f32.partialorder %v561, %v899
        %vm916 = vcmp.eq.f32.partialorder %v562, %v899
        %vm917 = vcmp.eq.f32.partialorder %v563, %v899
        %vm918 = vcmp.eq.f32.partialorder %v564, %v899
        %vm919 = vcmp.eq.f32.partialorder %v565, %v899
        %vm920 = vcmp.eq.f32.partialorder %v566, %v899
        %vm921 = vcmp.eq.f32.partialorder %v567, %v899
        %vm922 = vcmp.eq.f32.partialorder %v568, %v899
        %vm923 = vcmp.eq.f32.partialorder %v569, %v899
        %vm924 = vcmp.eq.f32.partialorder %v570, %v899
        %vm925 = vcmp.eq.f32.partialorder %v571, %v899
        %vm926 = vcmp.eq.f32.partialorder %v572, %v899
        %vm927 = vcmp.eq.f32.partialorder %v573, %v899
        %vm928 = vcmp.eq.f32.partialorder %v574, %v899
        %vm929 = vcmp.eq.f32.partialorder %v575, %v899
        %vm930 = vcmp.eq.f32.partialorder %v576, %v899
        %vm931 = vcmp.eq.f32.partialorder %v577, %v899
        %vm932 = vcmp.eq.f32.partialorder %v578, %v899
        %vm933 = vcmp.eq.f32.partialorder %v579, %v899
        %vm934 = vcmp.eq.f32.partialorder %v580, %v899
        %vm935 = vcmp.eq.f32.partialorder %v581, %v899
        %vm936 = vcmp.eq.f32.partialorder %v582, %v899
        %vm937 = vcmp.eq.f32.partialorder %v583, %v899
        %vm938 = vcmp.eq.f32.partialorder %v584, %v899
        %vm939 = vcmp.eq.f32.partialorder %v585, %v899
        %vm940 = vcmp.eq.f32.partialorder %v586, %v899
        %vm941 = vcmp.eq.f32.partialorder %v587, %v899
        %vm942 = vcmp.eq.f32.partialorder %v588, %v899
        %vm943 = vcmp.eq.f32.partialorder %v589, %v899
        %vm944 = vcmp.eq.f32.partialorder %v590, %v899
        %vm945 = vcmp.eq.f32.partialorder %v591, %v899
        %vm946 = vcmp.eq.f32.partialorder %v592, %v899
        %vm947 = vcmp.eq.f32.partialorder %v593, %v899
        %vm948 = vcmp.eq.f32.partialorder %v594, %v899
        %vm949 = vcmp.eq.f32.partialorder %v595, %v899
        %vm950 = vcmp.eq.f32.partialorder %v596, %v899
        %vm951 = vcmp.eq.f32.partialorder %v597, %v899
        %vm952 = vcmp.eq.f32.partialorder %v598, %v899
        %vm953 = vcmp.eq.f32.partialorder %v599, %v899
        %vm954 = vcmp.eq.f32.partialorder %v600, %v899
        %vm955 = vcmp.eq.f32.partialorder %v601, %v899
        %vm956 = vcmp.eq.f32.partialorder %v602, %v899
        %vm957 = vcmp.eq.f32.partialorder %v603, %v899
        %vm958 = vcmp.eq.f32.partialorder %v604, %v899
        %vm959 = vcmp.eq.f32.partialorder %v605, %v899
        %vm960 = vcmp.eq.f32.partialorder %v606, %v899
        %vm961 = vcmp.eq.f32.partialorder %v607, %v899
        %vm962 = vcmp.eq.f32.partialorder %v608, %v899
        %vm963 = vcmp.eq.f32.partialorder %v609, %v899
        %v964 = vstv %s545
        %v965 = vmul.f32 %v546, %v964
        %v966 = vmul.f32 %v547, %v964
        %v967 = vmul.f32 %v548, %v964
        %v968 = vmul.f32 %v549, %v964
        %v969 = vmul.f32 %v550, %v964
        %v970 = vmul.f32 %v551, %v964
        %v971 = vmul.f32 %v552, %v964
        %v972 = vmul.f32 %v553, %v964
        %v973 = vmul.f32 %v554, %v964
        %v974 = vmul.f32 %v555, %v964
        %v975 = vmul.f32 %v556, %v964
        %v976 = vmul.f32 %v557, %v964
        %v977 = vmul.f32 %v558, %v964
        %v978 = vmul.f32 %v559, %v964
        %v979 = vmul.f32 %v560, %v964
        %v980 = vmul.f32 %v561, %v964
        %v981 = vmul.f32 %v562, %v964
        %v982 = vmul.f32 %v563, %v964
        %v983 = vmul.f32 %v564, %v964
        %v984 = vmul.f32 %v565, %v964
        %v985 = vmul.f32 %v566, %v964
        %v986 = vmul.f32 %v567, %v964
        %v987 = vmul.f32 %v568, %v964
        %v988 = vmul.f32 %v569, %v964
        %v989 = vmul.f32 %v570, %v964
        %v990 = vmul.f32 %v571, %v964
        %v991 = vmul.f32 %v572, %v964
        %v992 = vmul.f32 %v573, %v964
        %v993 = vmul.f32 %v574, %v964
        %v994 = vmul.f32 %v575, %v964
        %v995 = vmul.f32 %v576, %v964
        %v996 = vmul.f32 %v577, %v964
        %v997 = vmul.f32 %v578, %v964
        %v998 = vmul.f32 %v579, %v964
        %v999 = vmul.f32 %v580, %v964
        %v1000 = vmul.f32 %v581, %v964
        %v1001 = vmul.f32 %v582, %v964
        %v1002 = vmul.f32 %v583, %v964
        %v1003 = vmul.f32 %v584, %v964
        %v1004 = vmul.f32 %v585, %v964
        %v1005 = vmul.f32 %v586, %v964
        %v1006 = vmul.f32 %v587, %v964
        %v1007 = vmul.f32 %v588, %v964
        %v1008 = vmul.f32 %v589, %v964
        %v1009 = vmul.f32 %v590, %v964
        %v1010 = vmul.f32 %v591, %v964
        %v1011 = vmul.f32 %v592, %v964
        %v1012 = vmul.f32 %v593, %v964
        %v1013 = vmul.f32 %v594, %v964
        %v1014 = vmul.f32 %v595, %v964
        %v1015 = vmul.f32 %v596, %v964
        %v1016 = vmul.f32 %v597, %v964
        %v1017 = vmul.f32 %v598, %v964
        %v1018 = vmul.f32 %v599, %v964
        %v1019 = vmul.f32 %v600, %v964
        %v1020 = vmul.f32 %v601, %v964
        %v1021 = vmul.f32 %v602, %v964
        %v1022 = vmul.f32 %v603, %v964
        %v1023 = vmul.f32 %v604, %v964
        %v1024 = vmul.f32 %v605, %v964
        %v1025 = vmul.f32 %v606, %v964
        %v1026 = vmul.f32 %v607, %v964
        %v1027 = vmul.f32 %v608, %v964
        %v1028 = vmul.f32 %v609, %v964
        %v1029 = vsel %vm900, %v546, %v965
        %v1030 = vsel %vm901, %v547, %v966
        %v1031 = vsel %vm902, %v548, %v967
        %v1032 = vsel %vm903, %v549, %v968
        %v1033 = vsel %vm904, %v550, %v969
        %v1034 = vsel %vm905, %v551, %v970
        %v1035 = vsel %vm906, %v552, %v971
        %v1036 = vsel %vm907, %v553, %v972
        %v1037 = vsel %vm908, %v554, %v973
        %v1038 = vsel %vm909, %v555, %v974
        %v1039 = vsel %vm910, %v556, %v975
        %v1040 = vsel %vm911, %v557, %v976
        %v1041 = vsel %vm912, %v558, %v977
        %v1042 = vsel %vm913, %v559, %v978
        %v1043 = vsel %vm914, %v560, %v979
        %v1044 = vsel %vm915, %v561, %v980
        %v1045 = vsel %vm916, %v562, %v981
        %v1046 = vsel %vm917, %v563, %v982
        %v1047 = vsel %vm918, %v564, %v983
        %v1048 = vsel %vm919, %v565, %v984
        %v1049 = vsel %vm920, %v566, %v985
        %v1050 = vsel %vm921, %v567, %v986
        %v1051 = vsel %vm922, %v568, %v987
        %v1052 = vsel %vm923, %v569, %v988
        %v1053 = vsel %vm924, %v570, %v989
        %v1054 = vsel %vm925, %v571, %v990
        %v1055 = vsel %vm926, %v572, %v991
        %v1056 = vsel %vm927, %v573, %v992
        %v1057 = vsel %vm928, %v574, %v993
        %v1058 = vsel %vm929, %v575, %v994
        %v1059 = vsel %vm930, %v576, %v995
        %v1060 = vsel %vm931, %v577, %v996
        %v1061 = vsel %vm932, %v578, %v997
        %v1062 = vsel %vm933, %v579, %v998
        %v1063 = vsel %vm934, %v580, %v999
        %v1064 = vsel %vm935, %v581, %v1000
        %v1065 = vsel %vm936, %v582, %v1001
        %v1066 = vsel %vm937, %v583, %v1002
        %v1067 = vsel %vm938, %v584, %v1003
        %v1068 = vsel %vm939, %v585, %v1004
        %v1069 = vsel %vm940, %v586, %v1005
        %v1070 = vsel %vm941, %v587, %v1006
        %v1071 = vsel %vm942, %v588, %v1007
        %v1072 = vsel %vm943, %v589, %v1008
        %v1073 = vsel %vm944, %v590, %v1009
        %v1074 = vsel %vm945, %v591, %v1010
        %v1075 = vsel %vm946, %v592, %v1011
        %v1076 = vsel %vm947, %v593, %v1012
        %v1077 = vsel %vm948, %v594, %v1013
        %v1078 = vsel %vm949, %v595, %v1014
        %v1079 = vsel %vm950, %v596, %v1015
        %v1080 = vsel %vm951, %v597, %v1016
        %v1081 = vsel %vm952, %v598, %v1017
        %v1082 = vsel %vm953, %v599, %v1018
        %v1083 = vsel %vm954, %v600, %v1019
        %v1084 = vsel %vm955, %v601, %v1020
        %v1085 = vsel %vm956, %v602, %v1021
        %v1086 = vsel %vm957, %v603, %v1022
        %v1087 = vsel %vm958, %v604, %v1023
        %v1088 = vsel %vm959, %v605, %v1024
        %v1089 = vsel %vm960, %v606, %v1025
        %v1090 = vsel %vm961, %v607, %v1026
        %v1091 = vsel %vm962, %v608, %v1027
        %v1092 = vsel %vm963, %v609, %v1028
        %v1093 = vmul.f32 %v610, %v754
        %v1094 = vmul.f32 %v611, %v818
        %v1095 = vmul.f32 %v612, %v755
        %v1096 = vmul.f32 %v613, %v819
        %v1097 = vmul.f32 %v614, %v756
        %v1098 = vmul.f32 %v615, %v820
        %v1099 = vmul.f32 %v616, %v757
        %v1100 = vmul.f32 %v617, %v821
        %v1101 = vmul.f32 %v618, %v758
        %v1102 = vmul.f32 %v619, %v822
        %v1103 = vmul.f32 %v620, %v759
        %v1104 = vmul.f32 %v621, %v823
        %v1105 = vmul.f32 %v622, %v760
        %v1106 = vmul.f32 %v623, %v824
        %v1107 = vmul.f32 %v624, %v761
        %v1108 = vmul.f32 %v625, %v825
        %v1109 = vmul.f32 %v626, %v762
        %v1110 = vmul.f32 %v627, %v826
        %v1111 = vmul.f32 %v628, %v763
        %v1112 = vmul.f32 %v629, %v827
        %v1113 = vmul.f32 %v630, %v764
        %v1114 = vmul.f32 %v631, %v828
        %v1115 = vmul.f32 %v632, %v765
        %v1116 = vmul.f32 %v633, %v829
        %v1117 = vmul.f32 %v634, %v766
        %v1118 = vmul.f32 %v635, %v830
        %v1119 = vmul.f32 %v636, %v767
        %v1120 = vmul.f32 %v637, %v831
        %v1121 = vmul.f32 %v638, %v768
        %v1122 = vmul.f32 %v639, %v832
        %v1123 = vmul.f32 %v640, %v769
        %v1124 = vmul.f32 %v641, %v833
        %v1125 = vmul.f32 %v642, %v786
        %v1126 = vmul.f32 %v643, %v850
        %v1127 = vmul.f32 %v644, %v787
        %v1128 = vmul.f32 %v645, %v851
        %v1129 = vmul.f32 %v646, %v788
        %v1130 = vmul.f32 %v647, %v852
        %v1131 = vmul.f32 %v648, %v789
        %v1132 = vmul.f32 %v649, %v853
        %v1133 = vmul.f32 %v650, %v790
        %v1134 = vmul.f32 %v651, %v854
        %v1135 = vmul.f32 %v652, %v791
        %v1136 = vmul.f32 %v653, %v855
        %v1137 = vmul.f32 %v654, %v792
        %v1138 = vmul.f32 %v655, %v856
        %v1139 = vmul.f32 %v656, %v793
        %v1140 = vmul.f32 %v657, %v857
        %v1141 = vmul.f32 %v658, %v794
        %v1142 = vmul.f32 %v659, %v858
        %v1143 = vmul.f32 %v660, %v795
        %v1144 = vmul.f32 %v661, %v859
        %v1145 = vmul.f32 %v662, %v796
        %v1146 = vmul.f32 %v663, %v860
        %v1147 = vmul.f32 %v664, %v797
        %v1148 = vmul.f32 %v665, %v861
        %v1149 = vmul.f32 %v666, %v798
        %v1150 = vmul.f32 %v667, %v862
        %v1151 = vmul.f32 %v668, %v799
        %v1152 = vmul.f32 %v669, %v863
        %v1153 = vmul.f32 %v670, %v800
        %v1154 = vmul.f32 %v671, %v864
        %v1155 = vmul.f32 %v672, %v801
        %v1156 = vmul.f32 %v673, %v865
        %1158 = vset.pattern.permute.xlu0 0
        %1159 = vperm.xlu0 %1158, %v866
        %v1160 = vpop.permute.xlu0 %1159
        %1163 = vset.pattern.permute.xlu0 0
        %1164 = vperm.xlu0 %1163, %v867
        %v1165 = vpop.permute.xlu0 %1164
        %1168 = vset.pattern.permute.xlu0 0
        %1169 = vperm.xlu0 %1168, %v868
        %v1170 = vpop.permute.xlu0 %1169
        %1173 = vset.pattern.permute.xlu0 0
        %1174 = vperm.xlu0 %1173, %v869
        %v1175 = vpop.permute.xlu0 %1174
        %1178 = vset.pattern.permute.xlu0 0
        %1179 = vperm.xlu0 %1178, %v870
        %v1180 = vpop.permute.xlu0 %1179
        %1183 = vset.pattern.permute.xlu0 0
        %1184 = vperm.xlu0 %1183, %v871
        %v1185 = vpop.permute.xlu0 %1184
        %1188 = vset.pattern.permute.xlu0 0
        %1189 = vperm.xlu0 %1188, %v872
        %v1190 = vpop.permute.xlu0 %1189
        %1193 = vset.pattern.permute.xlu0 0
        %1194 = vperm.xlu0 %1193, %v873
        %v1195 = vpop.permute.xlu0 %1194
        %1198 = vset.pattern.permute.xlu0 0
        %1199 = vperm.xlu0 %1198, %v874
        %v1200 = vpop.permute.xlu0 %1199
        %1203 = vset.pattern.permute.xlu0 0
        %1204 = vperm.xlu0 %1203, %v875
        %v1205 = vpop.permute.xlu0 %1204
        %1208 = vset.pattern.permute.xlu0 0
        %1209 = vperm.xlu0 %1208, %v876
        %v1210 = vpop.permute.xlu0 %1209
        %1213 = vset.pattern.permute.xlu0 0
        %1214 = vperm.xlu0 %1213, %v877
        %v1215 = vpop.permute.xlu0 %1214
        %1218 = vset.pattern.permute.xlu0 0
        %1219 = vperm.xlu0 %1218, %v878
        %v1220 = vpop.permute.xlu0 %1219
        %1223 = vset.pattern.permute.xlu0 0
        %1224 = vperm.xlu0 %1223, %v879
        %v1225 = vpop.permute.xlu0 %1224
        %1228 = vset.pattern.permute.xlu0 0
        %1229 = vperm.xlu0 %1228, %v880
        %v1230 = vpop.permute.xlu0 %1229
        %1233 = vset.pattern.permute.xlu0 0
        %1234 = vperm.xlu0 %1233, %v881
        %v1235 = vpop.permute.xlu0 %1234
        %1238 = vset.pattern.permute.xlu0 0
        %1239 = vperm.xlu0 %1238, %v882
        %v1240 = vpop.permute.xlu0 %1239
        %1243 = vset.pattern.permute.xlu0 0
        %1244 = vperm.xlu0 %1243, %v883
        %v1245 = vpop.permute.xlu0 %1244
        %1248 = vset.pattern.permute.xlu0 0
        %1249 = vperm.xlu0 %1248, %v884
        %v1250 = vpop.permute.xlu0 %1249
        %1253 = vset.pattern.permute.xlu0 0
        %1254 = vperm.xlu0 %1253, %v885
        %v1255 = vpop.permute.xlu0 %1254
        %1258 = vset.pattern.permute.xlu0 0
        %1259 = vperm.xlu0 %1258, %v886
        %v1260 = vpop.permute.xlu0 %1259
        %1263 = vset.pattern.permute.xlu0 0
        %1264 = vperm.xlu0 %1263, %v887
        %v1265 = vpop.permute.xlu0 %1264
        %1268 = vset.pattern.permute.xlu0 0
        %1269 = vperm.xlu0 %1268, %v888
        %v1270 = vpop.permute.xlu0 %1269
        %1273 = vset.pattern.permute.xlu0 0
        %1274 = vperm.xlu0 %1273, %v889
        %v1275 = vpop.permute.xlu0 %1274
        %1278 = vset.pattern.permute.xlu0 0
        %1279 = vperm.xlu0 %1278, %v890
        %v1280 = vpop.permute.xlu0 %1279
        %1283 = vset.pattern.permute.xlu0 0
        %1284 = vperm.xlu0 %1283, %v891
        %v1285 = vpop.permute.xlu0 %1284
        %1288 = vset.pattern.permute.xlu0 0
        %1289 = vperm.xlu0 %1288, %v892
        %v1290 = vpop.permute.xlu0 %1289
        %1293 = vset.pattern.permute.xlu0 0
        %1294 = vperm.xlu0 %1293, %v893
        %v1295 = vpop.permute.xlu0 %1294
        %1298 = vset.pattern.permute.xlu0 0
        %1299 = vperm.xlu0 %1298, %v894
        %v1300 = vpop.permute.xlu0 %1299
        %1303 = vset.pattern.permute.xlu0 0
        %1304 = vperm.xlu0 %1303, %v895
        %v1305 = vpop.permute.xlu0 %1304
        %1308 = vset.pattern.permute.xlu0 0
        %1309 = vperm.xlu0 %1308, %v896
        %v1310 = vpop.permute.xlu0 %1309
        %1313 = vset.pattern.permute.xlu0 0
        %1314 = vperm.xlu0 %1313, %v897
        %v1315 = vpop.permute.xlu0 %1314
        %v1317 = vadd.f32 %v1093, %v1160
        %v1318 = vadd.f32 %v1094, %v1160
        %v1319 = vadd.f32 %v1095, %v1165
        %v1320 = vadd.f32 %v1096, %v1165
        %v1321 = vadd.f32 %v1097, %v1170
        %v1322 = vadd.f32 %v1098, %v1170
        %v1323 = vadd.f32 %v1099, %v1175
        %v1324 = vadd.f32 %v1100, %v1175
        %v1325 = vadd.f32 %v1101, %v1180
        %v1326 = vadd.f32 %v1102, %v1180
        %v1327 = vadd.f32 %v1103, %v1185
        %v1328 = vadd.f32 %v1104, %v1185
        %v1329 = vadd.f32 %v1105, %v1190
        %v1330 = vadd.f32 %v1106, %v1190
        %v1331 = vadd.f32 %v1107, %v1195
        %v1332 = vadd.f32 %v1108, %v1195
        %v1333 = vadd.f32 %v1109, %v1200
        %v1334 = vadd.f32 %v1110, %v1200
        %v1335 = vadd.f32 %v1111, %v1205
        %v1336 = vadd.f32 %v1112, %v1205
        %v1337 = vadd.f32 %v1113, %v1210
        %v1338 = vadd.f32 %v1114, %v1210
        %v1339 = vadd.f32 %v1115, %v1215
        %v1340 = vadd.f32 %v1116, %v1215
        %v1341 = vadd.f32 %v1117, %v1220
        %v1342 = vadd.f32 %v1118, %v1220
        %v1343 = vadd.f32 %v1119, %v1225
        %v1344 = vadd.f32 %v1120, %v1225
        %v1345 = vadd.f32 %v1121, %v1230
        %v1346 = vadd.f32 %v1122, %v1230
        %v1347 = vadd.f32 %v1123, %v1235
        %v1348 = vadd.f32 %v1124, %v1235
        %v1349 = vadd.f32 %v1125, %v1240
        %v1350 = vadd.f32 %v1126, %v1240
        %v1351 = vadd.f32 %v1127, %v1245
        %v1352 = vadd.f32 %v1128, %v1245
        %v1353 = vadd.f32 %v1129, %v1250
        %v1354 = vadd.f32 %v1130, %v1250
        %v1355 = vadd.f32 %v1131, %v1255
        %v1356 = vadd.f32 %v1132, %v1255
        %v1357 = vadd.f32 %v1133, %v1260
        %v1358 = vadd.f32 %v1134, %v1260
        %v1359 = vadd.f32 %v1135, %v1265
        %v1360 = vadd.f32 %v1136, %v1265
        %v1361 = vadd.f32 %v1137, %v1270
        %v1362 = vadd.f32 %v1138, %v1270
        %v1363 = vadd.f32 %v1139, %v1275
        %v1364 = vadd.f32 %v1140, %v1275
        %v1365 = vadd.f32 %v1141, %v1280
        %v1366 = vadd.f32 %v1142, %v1280
        %v1367 = vadd.f32 %v1143, %v1285
        %v1368 = vadd.f32 %v1144, %v1285
        %v1369 = vadd.f32 %v1145, %v1290
        %v1370 = vadd.f32 %v1146, %v1290
        %v1371 = vadd.f32 %v1147, %v1295
        %v1372 = vadd.f32 %v1148, %v1295
        %v1373 = vadd.f32 %v1149, %v1300
        %v1374 = vadd.f32 %v1150, %v1300
        %v1375 = vadd.f32 %v1151, %v1305
        %v1376 = vadd.f32 %v1152, %v1305
        %v1377 = vadd.f32 %v1153, %v1310
        %v1378 = vadd.f32 %v1154, %v1310
        %v1379 = vadd.f32 %v1155, %v1315
        %v1380 = vadd.f32 %v1156, %v1315
        %v1382 = vlaneseq
        %v1383 = vshrl.u32 %v1382, 7
        %v1384 = vsub.s32 0, %v1383
        %v1385 = vrot.slane %v898, %v1384
        %v1386 = vlaneseq
        %v1387 = vshrl.u32 %v1386, 7
        %v1388 = vsub.s32 1, %v1387
        %v1389 = vrot.slane %v898, %v1388
        %v1392 = vadd.f32 %v1317, %v1385
        %v1393 = vadd.f32 %v1318, %v1389
        %v1394 = vadd.f32 %v1319, %v1385
        %v1395 = vadd.f32 %v1320, %v1389
        %v1396 = vadd.f32 %v1321, %v1385
        %v1397 = vadd.f32 %v1322, %v1389
        %v1398 = vadd.f32 %v1323, %v1385
        %v1399 = vadd.f32 %v1324, %v1389
        %v1400 = vadd.f32 %v1325, %v1385
        %v1401 = vadd.f32 %v1326, %v1389
        %v1402 = vadd.f32 %v1327, %v1385
        %v1403 = vadd.f32 %v1328, %v1389
        %v1404 = vadd.f32 %v1329, %v1385
        %v1405 = vadd.f32 %v1330, %v1389
        %v1406 = vadd.f32 %v1331, %v1385
        %v1407 = vadd.f32 %v1332, %v1389
        %v1408 = vadd.f32 %v1333, %v1385
        %v1409 = vadd.f32 %v1334, %v1389
        %v1410 = vadd.f32 %v1335, %v1385
        %v1411 = vadd.f32 %v1336, %v1389
        %v1412 = vadd.f32 %v1337, %v1385
        %v1413 = vadd.f32 %v1338, %v1389
        %v1414 = vadd.f32 %v1339, %v1385
        %v1415 = vadd.f32 %v1340, %v1389
        %v1416 = vadd.f32 %v1341, %v1385
        %v1417 = vadd.f32 %v1342, %v1389
        %v1418 = vadd.f32 %v1343, %v1385
        %v1419 = vadd.f32 %v1344, %v1389
        %v1420 = vadd.f32 %v1345, %v1385
        %v1421 = vadd.f32 %v1346, %v1389
        %v1422 = vadd.f32 %v1347, %v1385
        %v1423 = vadd.f32 %v1348, %v1389
        %v1424 = vadd.f32 %v1349, %v1385
        %v1425 = vadd.f32 %v1350, %v1389
        %v1426 = vadd.f32 %v1351, %v1385
        %v1427 = vadd.f32 %v1352, %v1389
        %v1428 = vadd.f32 %v1353, %v1385
        %v1429 = vadd.f32 %v1354, %v1389
        %v1430 = vadd.f32 %v1355, %v1385
        %v1431 = vadd.f32 %v1356, %v1389
        %v1432 = vadd.f32 %v1357, %v1385
        %v1433 = vadd.f32 %v1358, %v1389
        %v1434 = vadd.f32 %v1359, %v1385
        %v1435 = vadd.f32 %v1360, %v1389
        %v1436 = vadd.f32 %v1361, %v1385
        %v1437 = vadd.f32 %v1362, %v1389
        %v1438 = vadd.f32 %v1363, %v1385
        %v1439 = vadd.f32 %v1364, %v1389
        %v1440 = vadd.f32 %v1365, %v1385
        %v1441 = vadd.f32 %v1366, %v1389
        %v1442 = vadd.f32 %v1367, %v1385
        %v1443 = vadd.f32 %v1368, %v1389
        %v1444 = vadd.f32 %v1369, %v1385
        %v1445 = vadd.f32 %v1370, %v1389
        %v1446 = vadd.f32 %v1371, %v1385
        %v1447 = vadd.f32 %v1372, %v1389
        %v1448 = vadd.f32 %v1373, %v1385
        %v1449 = vadd.f32 %v1374, %v1389
        %v1450 = vadd.f32 %v1375, %v1385
        %v1451 = vadd.f32 %v1376, %v1389
        %v1452 = vadd.f32 %v1377, %v1385
        %v1453 = vadd.f32 %v1378, %v1389
        %v1454 = vadd.f32 %v1379, %v1385
        %v1455 = vadd.f32 %v1380, %v1389
        %v1456 = vlog2.pop %v546
        %v1457 = vmul.f32 %v1456, 0.6931472
        %v1458 = vlog2.pop %v547
        %v1459 = vmul.f32 %v1458, 0.6931472
        %v1460 = vlog2.pop %v548
        %v1461 = vmul.f32 %v1460, 0.6931472
        %v1462 = vlog2.pop %v549
        %v1463 = vmul.f32 %v1462, 0.6931472
        %v1464 = vlog2.pop %v550
        %v1465 = vmul.f32 %v1464, 0.6931472
        %v1466 = vlog2.pop %v551
        %v1467 = vmul.f32 %v1466, 0.6931472
        %v1468 = vlog2.pop %v552
        %v1469 = vmul.f32 %v1468, 0.6931472
        %v1470 = vlog2.pop %v553
        %v1471 = vmul.f32 %v1470, 0.6931472
        %v1472 = vlog2.pop %v554
        %v1473 = vmul.f32 %v1472, 0.6931472
        %v1474 = vlog2.pop %v555
        %v1475 = vmul.f32 %v1474, 0.6931472
        %v1476 = vlog2.pop %v556
        %v1477 = vmul.f32 %v1476, 0.6931472
        %v1478 = vlog2.pop %v557
        %v1479 = vmul.f32 %v1478, 0.6931472
        %v1480 = vlog2.pop %v558
        %v1481 = vmul.f32 %v1480, 0.6931472
        %v1482 = vlog2.pop %v559
        %v1483 = vmul.f32 %v1482, 0.6931472
        %v1484 = vlog2.pop %v560
        %v1485 = vmul.f32 %v1484, 0.6931472
        %v1486 = vlog2.pop %v561
        %v1487 = vmul.f32 %v1486, 0.6931472
        %v1488 = vlog2.pop %v562
        %v1489 = vmul.f32 %v1488, 0.6931472
        %v1490 = vlog2.pop %v563
        %v1491 = vmul.f32 %v1490, 0.6931472
        %v1492 = vlog2.pop %v564
        %v1493 = vmul.f32 %v1492, 0.6931472
        %v1494 = vlog2.pop %v565
        %v1495 = vmul.f32 %v1494, 0.6931472
        %v1496 = vlog2.pop %v566
        %v1497 = vmul.f32 %v1496, 0.6931472
        %v1498 = vlog2.pop %v567
        %v1499 = vmul.f32 %v1498, 0.6931472
        %v1500 = vlog2.pop %v568
        %v1501 = vmul.f32 %v1500, 0.6931472
        %v1502 = vlog2.pop %v569
        %v1503 = vmul.f32 %v1502, 0.6931472
        %v1504 = vlog2.pop %v570
        %v1505 = vmul.f32 %v1504, 0.6931472
        %v1506 = vlog2.pop %v571
        %v1507 = vmul.f32 %v1506, 0.6931472
        %v1508 = vlog2.pop %v572
        %v1509 = vmul.f32 %v1508, 0.6931472
        %v1510 = vlog2.pop %v573
        %v1511 = vmul.f32 %v1510, 0.6931472
        %v1512 = vlog2.pop %v574
        %v1513 = vmul.f32 %v1512, 0.6931472
        %v1514 = vlog2.pop %v575
        %v1515 = vmul.f32 %v1514, 0.6931472
        %v1516 = vlog2.pop %v576
        %v1517 = vmul.f32 %v1516, 0.6931472
        %v1518 = vlog2.pop %v577
        %v1519 = vmul.f32 %v1518, 0.6931472
        %v1520 = vlog2.pop %v578
        %v1521 = vmul.f32 %v1520, 0.6931472
        %v1522 = vlog2.pop %v579
        %v1523 = vmul.f32 %v1522, 0.6931472
        %v1524 = vlog2.pop %v580
        %v1525 = vmul.f32 %v1524, 0.6931472
        %v1526 = vlog2.pop %v581
        %v1527 = vmul.f32 %v1526, 0.6931472
        %v1528 = vlog2.pop %v582
        %v1529 = vmul.f32 %v1528, 0.6931472
        %v1530 = vlog2.pop %v583
        %v1531 = vmul.f32 %v1530, 0.6931472
        %v1532 = vlog2.pop %v584
        %v1533 = vmul.f32 %v1532, 0.6931472
        %v1534 = vlog2.pop %v585
        %v1535 = vmul.f32 %v1534, 0.6931472
        %v1536 = vlog2.pop %v586
        %v1537 = vmul.f32 %v1536, 0.6931472
        %v1538 = vlog2.pop %v587
        %v1539 = vmul.f32 %v1538, 0.6931472
        %v1540 = vlog2.pop %v588
        %v1541 = vmul.f32 %v1540, 0.6931472
        %v1542 = vlog2.pop %v589
        %v1543 = vmul.f32 %v1542, 0.6931472
        %v1544 = vlog2.pop %v590
        %v1545 = vmul.f32 %v1544, 0.6931472
        %v1546 = vlog2.pop %v591
        %v1547 = vmul.f32 %v1546, 0.6931472
        %v1548 = vlog2.pop %v592
        %v1549 = vmul.f32 %v1548, 0.6931472
        %v1550 = vlog2.pop %v593
        %v1551 = vmul.f32 %v1550, 0.6931472
        %v1552 = vlog2.pop %v594
        %v1553 = vmul.f32 %v1552, 0.6931472
        %v1554 = vlog2.pop %v595
        %v1555 = vmul.f32 %v1554, 0.6931472
        %v1556 = vlog2.pop %v596
        %v1557 = vmul.f32 %v1556, 0.6931472
        %v1558 = vlog2.pop %v597
        %v1559 = vmul.f32 %v1558, 0.6931472
        %v1560 = vlog2.pop %v598
        %v1561 = vmul.f32 %v1560, 0.6931472
        %v1562 = vlog2.pop %v599
        %v1563 = vmul.f32 %v1562, 0.6931472
        %v1564 = vlog2.pop %v600
        %v1565 = vmul.f32 %v1564, 0.6931472
        %v1566 = vlog2.pop %v601
        %v1567 = vmul.f32 %v1566, 0.6931472
        %v1568 = vlog2.pop %v602
        %v1569 = vmul.f32 %v1568, 0.6931472
        %v1570 = vlog2.pop %v603
        %v1571 = vmul.f32 %v1570, 0.6931472
        %v1572 = vlog2.pop %v604
        %v1573 = vmul.f32 %v1572, 0.6931472
        %v1574 = vlog2.pop %v605
        %v1575 = vmul.f32 %v1574, 0.6931472
        %v1576 = vlog2.pop %v606
        %v1577 = vmul.f32 %v1576, 0.6931472
        %v1578 = vlog2.pop %v607
        %v1579 = vmul.f32 %v1578, 0.6931472
        %v1580 = vlog2.pop %v608
        %v1581 = vmul.f32 %v1580, 0.6931472
        %v1582 = vlog2.pop %v609
        %v1583 = vmul.f32 %v1582, 0.6931472
        %v1584 = vsub.f32 %v1392, %v1457
        %v1585 = vsub.f32 %v1393, %v1459
        %v1586 = vsub.f32 %v1394, %v1461
        %v1587 = vsub.f32 %v1395, %v1463
        %v1588 = vsub.f32 %v1396, %v1465
        %v1589 = vsub.f32 %v1397, %v1467
        %v1590 = vsub.f32 %v1398, %v1469
        %v1591 = vsub.f32 %v1399, %v1471
        %v1592 = vsub.f32 %v1400, %v1473
        %v1593 = vsub.f32 %v1401, %v1475
        %v1594 = vsub.f32 %v1402, %v1477
        %v1595 = vsub.f32 %v1403, %v1479
        %v1596 = vsub.f32 %v1404, %v1481
        %v1597 = vsub.f32 %v1405, %v1483
        %v1598 = vsub.f32 %v1406, %v1485
        %v1599 = vsub.f32 %v1407, %v1487
        %v1600 = vsub.f32 %v1408, %v1489
        %v1601 = vsub.f32 %v1409, %v1491
        %v1602 = vsub.f32 %v1410, %v1493
        %v1603 = vsub.f32 %v1411, %v1495
        %v1604 = vsub.f32 %v1412, %v1497
        %v1605 = vsub.f32 %v1413, %v1499
        %v1606 = vsub.f32 %v1414, %v1501
        %v1607 = vsub.f32 %v1415, %v1503
        %v1608 = vsub.f32 %v1416, %v1505
        %v1609 = vsub.f32 %v1417, %v1507
        %v1610 = vsub.f32 %v1418, %v1509
        %v1611 = vsub.f32 %v1419, %v1511
        %v1612 = vsub.f32 %v1420, %v1513
        %v1613 = vsub.f32 %v1421, %v1515
        %v1614 = vsub.f32 %v1422, %v1517
        %v1615 = vsub.f32 %v1423, %v1519
        %v1616 = vsub.f32 %v1424, %v1521
        %v1617 = vsub.f32 %v1425, %v1523
        %v1618 = vsub.f32 %v1426, %v1525
        %v1619 = vsub.f32 %v1427, %v1527
        %v1620 = vsub.f32 %v1428, %v1529
        %v1621 = vsub.f32 %v1429, %v1531
        %v1622 = vsub.f32 %v1430, %v1533
        %v1623 = vsub.f32 %v1431, %v1535
        %v1624 = vsub.f32 %v1432, %v1537
        %v1625 = vsub.f32 %v1433, %v1539
        %v1626 = vsub.f32 %v1434, %v1541
        %v1627 = vsub.f32 %v1435, %v1543
        %v1628 = vsub.f32 %v1436, %v1545
        %v1629 = vsub.f32 %v1437, %v1547
        %v1630 = vsub.f32 %v1438, %v1549
        %v1631 = vsub.f32 %v1439, %v1551
        %v1632 = vsub.f32 %v1440, %v1553
        %v1633 = vsub.f32 %v1441, %v1555
        %v1634 = vsub.f32 %v1442, %v1557
        %v1635 = vsub.f32 %v1443, %v1559
        %v1636 = vsub.f32 %v1444, %v1561
        %v1637 = vsub.f32 %v1445, %v1563
        %v1638 = vsub.f32 %v1446, %v1565
        %v1639 = vsub.f32 %v1447, %v1567
        %v1640 = vsub.f32 %v1448, %v1569
        %v1641 = vsub.f32 %v1449, %v1571
        %v1642 = vsub.f32 %v1450, %v1573
        %v1643 = vsub.f32 %v1451, %v1575
        %v1644 = vsub.f32 %v1452, %v1577
        %v1645 = vsub.f32 %v1453, %v1579
        %v1646 = vsub.f32 %v1454, %v1581
        %v1647 = vsub.f32 %v1455, %v1583
        %v1648 = vmul.f32 %v1029, %v1584
        %v1649 = vmul.f32 %v1030, %v1585
        %v1650 = vmul.f32 %v1031, %v1586
        %v1651 = vmul.f32 %v1032, %v1587
        %v1652 = vmul.f32 %v1033, %v1588
        %v1653 = vmul.f32 %v1034, %v1589
        %v1654 = vmul.f32 %v1035, %v1590
        %v1655 = vmul.f32 %v1036, %v1591
        %v1656 = vmul.f32 %v1037, %v1592
        %v1657 = vmul.f32 %v1038, %v1593
        %v1658 = vmul.f32 %v1039, %v1594
        %v1659 = vmul.f32 %v1040, %v1595
        %v1660 = vmul.f32 %v1041, %v1596
        %v1661 = vmul.f32 %v1042, %v1597
        %v1662 = vmul.f32 %v1043, %v1598
        %v1663 = vmul.f32 %v1044, %v1599
        %v1664 = vmul.f32 %v1045, %v1600
        %v1665 = vmul.f32 %v1046, %v1601
        %v1666 = vmul.f32 %v1047, %v1602
        %v1667 = vmul.f32 %v1048, %v1603
        %v1668 = vmul.f32 %v1049, %v1604
        %v1669 = vmul.f32 %v1050, %v1605
        %v1670 = vmul.f32 %v1051, %v1606
        %v1671 = vmul.f32 %v1052, %v1607
        %v1672 = vmul.f32 %v1053, %v1608
        %v1673 = vmul.f32 %v1054, %v1609
        %v1674 = vmul.f32 %v1055, %v1610
        %v1675 = vmul.f32 %v1056, %v1611
        %v1676 = vmul.f32 %v1057, %v1612
        %v1677 = vmul.f32 %v1058, %v1613
        %v1678 = vmul.f32 %v1059, %v1614
        %v1679 = vmul.f32 %v1060, %v1615
        %v1680 = vmul.f32 %v1061, %v1616
        %v1681 = vmul.f32 %v1062, %v1617
        %v1682 = vmul.f32 %v1063, %v1618
        %v1683 = vmul.f32 %v1064, %v1619
        %v1684 = vmul.f32 %v1065, %v1620
        %v1685 = vmul.f32 %v1066, %v1621
        %v1686 = vmul.f32 %v1067, %v1622
        %v1687 = vmul.f32 %v1068, %v1623
        %v1688 = vmul.f32 %v1069, %v1624
        %v1689 = vmul.f32 %v1070, %v1625
        %v1690 = vmul.f32 %v1071, %v1626
        %v1691 = vmul.f32 %v1072, %v1627
        %v1692 = vmul.f32 %v1073, %v1628
        %v1693 = vmul.f32 %v1074, %v1629
        %v1694 = vmul.f32 %v1075, %v1630
        %v1695 = vmul.f32 %v1076, %v1631
        %v1696 = vmul.f32 %v1077, %v1632
        %v1697 = vmul.f32 %v1078, %v1633
        %v1698 = vmul.f32 %v1079, %v1634
        %v1699 = vmul.f32 %v1080, %v1635
        %v1700 = vmul.f32 %v1081, %v1636
        %v1701 = vmul.f32 %v1082, %v1637
        %v1702 = vmul.f32 %v1083, %v1638
        %v1703 = vmul.f32 %v1084, %v1639
        %v1704 = vmul.f32 %v1085, %v1640
        %v1705 = vmul.f32 %v1086, %v1641
        %v1706 = vmul.f32 %v1087, %v1642
        %v1707 = vmul.f32 %v1088, %v1643
        %v1708 = vmul.f32 %v1089, %v1644
        %v1709 = vmul.f32 %v1090, %v1645
        %v1710 = vmul.f32 %v1091, %v1646
        %v1711 = vmul.f32 %v1092, %v1647
        %v1712 = vmul.f32 %v1648, %v1584
        %v1713 = vmul.f32 %v1649, %v1585
        %v1714 = vmul.f32 %v1650, %v1586
        %v1715 = vmul.f32 %v1651, %v1587
        %v1716 = vmul.f32 %v1652, %v1588
        %v1717 = vmul.f32 %v1653, %v1589
        %v1718 = vmul.f32 %v1654, %v1590
        %v1719 = vmul.f32 %v1655, %v1591
        %v1720 = vmul.f32 %v1656, %v1592
        %v1721 = vmul.f32 %v1657, %v1593
        %v1722 = vmul.f32 %v1658, %v1594
        %v1723 = vmul.f32 %v1659, %v1595
        %v1724 = vmul.f32 %v1660, %v1596
        %v1725 = vmul.f32 %v1661, %v1597
        %v1726 = vmul.f32 %v1662, %v1598
        %v1727 = vmul.f32 %v1663, %v1599
        %v1728 = vmul.f32 %v1664, %v1600
        %v1729 = vmul.f32 %v1665, %v1601
        %v1730 = vmul.f32 %v1666, %v1602
        %v1731 = vmul.f32 %v1667, %v1603
        %v1732 = vmul.f32 %v1668, %v1604
        %v1733 = vmul.f32 %v1669, %v1605
        %v1734 = vmul.f32 %v1670, %v1606
        %v1735 = vmul.f32 %v1671, %v1607
        %v1736 = vmul.f32 %v1672, %v1608
        %v1737 = vmul.f32 %v1673, %v1609
        %v1738 = vmul.f32 %v1674, %v1610
        %v1739 = vmul.f32 %v1675, %v1611
        %v1740 = vmul.f32 %v1676, %v1612
        %v1741 = vmul.f32 %v1677, %v1613
        %v1742 = vmul.f32 %v1678, %v1614
        %v1743 = vmul.f32 %v1679, %v1615
        %v1744 = vmul.f32 %v1680, %v1616
        %v1745 = vmul.f32 %v1681, %v1617
        %v1746 = vmul.f32 %v1682, %v1618
        %v1747 = vmul.f32 %v1683, %v1619
        %v1748 = vmul.f32 %v1684, %v1620
        %v1749 = vmul.f32 %v1685, %v1621
        %v1750 = vmul.f32 %v1686, %v1622
        %v1751 = vmul.f32 %v1687, %v1623
        %v1752 = vmul.f32 %v1688, %v1624
        %v1753 = vmul.f32 %v1689, %v1625
        %v1754 = vmul.f32 %v1690, %v1626
        %v1755 = vmul.f32 %v1691, %v1627
        %v1756 = vmul.f32 %v1692, %v1628
        %v1757 = vmul.f32 %v1693, %v1629
        %v1758 = vmul.f32 %v1694, %v1630
        %v1759 = vmul.f32 %v1695, %v1631
        %v1760 = vmul.f32 %v1696, %v1632
        %v1761 = vmul.f32 %v1697, %v1633
        %v1762 = vmul.f32 %v1698, %v1634
        %v1763 = vmul.f32 %v1699, %v1635
        %v1764 = vmul.f32 %v1700, %v1636
        %v1765 = vmul.f32 %v1701, %v1637
        %v1766 = vmul.f32 %v1702, %v1638
        %v1767 = vmul.f32 %v1703, %v1639
        %v1768 = vmul.f32 %v1704, %v1640
        %v1769 = vmul.f32 %v1705, %v1641
        %v1770 = vmul.f32 %v1706, %v1642
        %v1771 = vmul.f32 %v1707, %v1643
        %v1772 = vmul.f32 %v1708, %v1644
        %v1773 = vmul.f32 %v1709, %v1645
        %v1774 = vmul.f32 %v1710, %v1646
        %v1775 = vmul.f32 %v1711, %v1647
        %s1776 = smul.u32 %s34, 256
        %v1777 = vlaneseq
        %v1778 = vshrl.u32 %v1777, 7
        %v1779 = vadd.s32 %v1778, 8
        %v1780 = vadd.s32 %v1778, 16
        %v1781 = vadd.s32 %v1778, 24
        %v1782 = vadd.s32 %v1778, 32
        %v1783 = vadd.s32 %v1778, 40
        %v1784 = vadd.s32 %v1778, 48
        %v1785 = vadd.s32 %v1778, 56
        %v1786 = vadd.s32 %v1778, 64
        %v1787 = vadd.s32 %v1778, 72
        %v1788 = vadd.s32 %v1778, 80
        %v1789 = vadd.s32 %v1778, 88
        %v1790 = vadd.s32 %v1778, 96
        %v1791 = vadd.s32 %v1778, 104
        %v1792 = vadd.s32 %v1778, 112
        %v1793 = vadd.s32 %v1778, 120
        %v1794 = vadd.s32 %v1778, 128
        %v1795 = vadd.s32 %v1778, 136
        %v1796 = vadd.s32 %v1778, 144
        %v1797 = vadd.s32 %v1778, 152
        %v1798 = vadd.s32 %v1778, 160
        %v1799 = vadd.s32 %v1778, 168
        %v1800 = vadd.s32 %v1778, 176
        %v1801 = vadd.s32 %v1778, 184
        %v1802 = vadd.s32 %v1778, 192
        %v1803 = vadd.s32 %v1778, 200
        %v1804 = vadd.s32 %v1778, 208
        %v1805 = vadd.s32 %v1778, 216
        %v1806 = vadd.s32 %v1778, 224
        %v1807 = vadd.s32 %v1778, 232
        %v1808 = vadd.s32 %v1778, 240
        %v1809 = vadd.s32 %v1778, 248
        %v1810 = vstv %s1776
        %v1811 = vadd.s32 %v1810, %v1778
        %v1812 = vadd.s32 %v1810, %v1779
        %v1813 = vadd.s32 %v1810, %v1780
        %v1814 = vadd.s32 %v1810, %v1781
        %v1815 = vadd.s32 %v1810, %v1782
        %v1816 = vadd.s32 %v1810, %v1783
        %v1817 = vadd.s32 %v1810, %v1784
        %v1818 = vadd.s32 %v1810, %v1785
        %v1819 = vadd.s32 %v1810, %v1786
        %v1820 = vadd.s32 %v1810, %v1787
        %v1821 = vadd.s32 %v1810, %v1788
        %v1822 = vadd.s32 %v1810, %v1789
        %v1823 = vadd.s32 %v1810, %v1790
        %v1824 = vadd.s32 %v1810, %v1791
        %v1825 = vadd.s32 %v1810, %v1792
        %v1826 = vadd.s32 %v1810, %v1793
        %v1827 = vadd.s32 %v1810, %v1794
        %v1828 = vadd.s32 %v1810, %v1795
        %v1829 = vadd.s32 %v1810, %v1796
        %v1830 = vadd.s32 %v1810, %v1797
        %v1831 = vadd.s32 %v1810, %v1798
        %v1832 = vadd.s32 %v1810, %v1799
        %v1833 = vadd.s32 %v1810, %v1800
        %v1834 = vadd.s32 %v1810, %v1801
        %v1835 = vadd.s32 %v1810, %v1802
        %v1836 = vadd.s32 %v1810, %v1803
        %v1837 = vadd.s32 %v1810, %v1804
        %v1838 = vadd.s32 %v1810, %v1805
        %v1839 = vadd.s32 %v1810, %v1806
        %v1840 = vadd.s32 %v1810, %v1807
        %v1841 = vadd.s32 %v1810, %v1808
        %v1842 = vadd.s32 %v1810, %v1809
        %s1843 = smul.u32 %s35, 256
        %v1844 = vlaneseq
        %v1845 = vand.u32 %v1844, 127
        %v1846 = vadd.s32 %v1845, 128
        %v1847 = vstv %s1843
        %v1848 = vadd.s32 %v1847, %v1845
        %v1849 = vadd.s32 %v1847, %v1846
        %vm1850 = vcmp.lt.s32.totalorder %v1811, 640
        %vm1851 = vcmp.lt.s32.totalorder %v1812, 640
        %vm1852 = vcmp.lt.s32.totalorder %v1813, 640
        %vm1853 = vcmp.lt.s32.totalorder %v1814, 640
        %vm1854 = vcmp.lt.s32.totalorder %v1815, 640
        %vm1855 = vcmp.lt.s32.totalorder %v1816, 640
        %vm1856 = vcmp.lt.s32.totalorder %v1817, 640
        %vm1857 = vcmp.lt.s32.totalorder %v1818, 640
        %vm1858 = vcmp.lt.s32.totalorder %v1819, 640
        %vm1859 = vcmp.lt.s32.totalorder %v1820, 640
        %vm1860 = vcmp.lt.s32.totalorder %v1821, 640
        %vm1861 = vcmp.lt.s32.totalorder %v1822, 640
        %vm1862 = vcmp.lt.s32.totalorder %v1823, 640
        %vm1863 = vcmp.lt.s32.totalorder %v1824, 640
        %vm1864 = vcmp.lt.s32.totalorder %v1825, 640
        %vm1865 = vcmp.lt.s32.totalorder %v1826, 640
        %vm1866 = vcmp.lt.s32.totalorder %v1827, 640
        %vm1867 = vcmp.lt.s32.totalorder %v1828, 640
        %vm1868 = vcmp.lt.s32.totalorder %v1829, 640
        %vm1869 = vcmp.lt.s32.totalorder %v1830, 640
        %vm1870 = vcmp.lt.s32.totalorder %v1831, 640
        %vm1871 = vcmp.lt.s32.totalorder %v1832, 640
        %vm1872 = vcmp.lt.s32.totalorder %v1833, 640
        %vm1873 = vcmp.lt.s32.totalorder %v1834, 640
        %vm1874 = vcmp.lt.s32.totalorder %v1835, 640
        %vm1875 = vcmp.lt.s32.totalorder %v1836, 640
        %vm1876 = vcmp.lt.s32.totalorder %v1837, 640
        %vm1877 = vcmp.lt.s32.totalorder %v1838, 640
        %vm1878 = vcmp.lt.s32.totalorder %v1839, 640
        %vm1879 = vcmp.lt.s32.totalorder %v1840, 640
        %vm1880 = vcmp.lt.s32.totalorder %v1841, 640
        %vm1881 = vcmp.lt.s32.totalorder %v1842, 640
        %vm1882 = vcmp.lt.s32.totalorder %v1848, 640
        %vm1883 = vcmp.lt.s32.totalorder %v1849, 640
        %vm1884 = vmand %vm1850, %vm1882
        %vm1885 = vmand %vm1850, %vm1883
        %vm1886 = vmand %vm1851, %vm1882
        %vm1887 = vmand %vm1851, %vm1883
        %vm1888 = vmand %vm1852, %vm1882
        %vm1889 = vmand %vm1852, %vm1883
        %vm1890 = vmand %vm1853, %vm1882
        %vm1891 = vmand %vm1853, %vm1883
        %vm1892 = vmand %vm1854, %vm1882
        %vm1893 = vmand %vm1854, %vm1883
        %vm1894 = vmand %vm1855, %vm1882
        %vm1895 = vmand %vm1855, %vm1883
        %vm1896 = vmand %vm1856, %vm1882
        %vm1897 = vmand %vm1856, %vm1883
        %vm1898 = vmand %vm1857, %vm1882
        %vm1899 = vmand %vm1857, %vm1883
        %vm1900 = vmand %vm1858, %vm1882
        %vm1901 = vmand %vm1858, %vm1883
        %vm1902 = vmand %vm1859, %vm1882
        %vm1903 = vmand %vm1859, %vm1883
        %vm1904 = vmand %vm1860, %vm1882
        %vm1905 = vmand %vm1860, %vm1883
        %vm1906 = vmand %vm1861, %vm1882
        %vm1907 = vmand %vm1861, %vm1883
        %vm1908 = vmand %vm1862, %vm1882
        %vm1909 = vmand %vm1862, %vm1883
        %vm1910 = vmand %vm1863, %vm1882
        %vm1911 = vmand %vm1863, %vm1883
        %vm1912 = vmand %vm1864, %vm1882
        %vm1913 = vmand %vm1864, %vm1883
        %vm1914 = vmand %vm1865, %vm1882
        %vm1915 = vmand %vm1865, %vm1883
        %vm1916 = vmand %vm1866, %vm1882
        %vm1917 = vmand %vm1866, %vm1883
        %vm1918 = vmand %vm1867, %vm1882
        %vm1919 = vmand %vm1867, %vm1883
        %vm1920 = vmand %vm1868, %vm1882
        %vm1921 = vmand %vm1868, %vm1883
        %vm1922 = vmand %vm1869, %vm1882
        %vm1923 = vmand %vm1869, %vm1883
        %vm1924 = vmand %vm1870, %vm1882
        %vm1925 = vmand %vm1870, %vm1883
        %vm1926 = vmand %vm1871, %vm1882
        %vm1927 = vmand %vm1871, %vm1883
        %vm1928 = vmand %vm1872, %vm1882
        %vm1929 = vmand %vm1872, %vm1883
        %vm1930 = vmand %vm1873, %vm1882
        %vm1931 = vmand %vm1873, %vm1883
        %vm1932 = vmand %vm1874, %vm1882
        %vm1933 = vmand %vm1874, %vm1883
        %vm1934 = vmand %vm1875, %vm1882
        %vm1935 = vmand %vm1875, %vm1883
        %vm1936 = vmand %vm1876, %vm1882
        %vm1937 = vmand %vm1876, %vm1883
        %vm1938 = vmand %vm1877, %vm1882
        %vm1939 = vmand %vm1877, %vm1883
        %vm1940 = vmand %vm1878, %vm1882
        %vm1941 = vmand %vm1878, %vm1883
        %vm1942 = vmand %vm1879, %vm1882
        %vm1943 = vmand %vm1879, %vm1883
        %vm1944 = vmand %vm1880, %vm1882
        %vm1945 = vmand %vm1880, %vm1883
        %vm1946 = vmand %vm1881, %vm1882
        %vm1947 = vmand %vm1881, %vm1883
        %v1948 = vsel %vm1884, %v1712, 0.0
        %v1949 = vsel %vm1885, %v1713, 0.0
        %v1950 = vsel %vm1886, %v1714, 0.0
        %v1951 = vsel %vm1887, %v1715, 0.0
        %v1952 = vsel %vm1888, %v1716, 0.0
        %v1953 = vsel %vm1889, %v1717, 0.0
        %v1954 = vsel %vm1890, %v1718, 0.0
        %v1955 = vsel %vm1891, %v1719, 0.0
        %v1956 = vsel %vm1892, %v1720, 0.0
        %v1957 = vsel %vm1893, %v1721, 0.0
        %v1958 = vsel %vm1894, %v1722, 0.0
        %v1959 = vsel %vm1895, %v1723, 0.0
        %v1960 = vsel %vm1896, %v1724, 0.0
        %v1961 = vsel %vm1897, %v1725, 0.0
        %v1962 = vsel %vm1898, %v1726, 0.0
        %v1963 = vsel %vm1899, %v1727, 0.0
        %v1964 = vsel %vm1900, %v1728, 0.0
        %v1965 = vsel %vm1901, %v1729, 0.0
        %v1966 = vsel %vm1902, %v1730, 0.0
        %v1967 = vsel %vm1903, %v1731, 0.0
        %v1968 = vsel %vm1904, %v1732, 0.0
        %v1969 = vsel %vm1905, %v1733, 0.0
        %v1970 = vsel %vm1906, %v1734, 0.0
        %v1971 = vsel %vm1907, %v1735, 0.0
        %v1972 = vsel %vm1908, %v1736, 0.0
        %v1973 = vsel %vm1909, %v1737, 0.0
        %v1974 = vsel %vm1910, %v1738, 0.0
        %v1975 = vsel %vm1911, %v1739, 0.0
        %v1976 = vsel %vm1912, %v1740, 0.0
        %v1977 = vsel %vm1913, %v1741, 0.0
        %v1978 = vsel %vm1914, %v1742, 0.0
        %v1979 = vsel %vm1915, %v1743, 0.0
        %v1980 = vsel %vm1916, %v1744, 0.0
        %v1981 = vsel %vm1917, %v1745, 0.0
        %v1982 = vsel %vm1918, %v1746, 0.0
        %v1983 = vsel %vm1919, %v1747, 0.0
        %v1984 = vsel %vm1920, %v1748, 0.0
        %v1985 = vsel %vm1921, %v1749, 0.0
        %v1986 = vsel %vm1922, %v1750, 0.0
        %v1987 = vsel %vm1923, %v1751, 0.0
        %v1988 = vsel %vm1924, %v1752, 0.0
        %v1989 = vsel %vm1925, %v1753, 0.0
        %v1990 = vsel %vm1926, %v1754, 0.0
        %v1991 = vsel %vm1927, %v1755, 0.0
        %v1992 = vsel %vm1928, %v1756, 0.0
        %v1993 = vsel %vm1929, %v1757, 0.0
        %v1994 = vsel %vm1930, %v1758, 0.0
        %v1995 = vsel %vm1931, %v1759, 0.0
        %v1996 = vsel %vm1932, %v1760, 0.0
        %v1997 = vsel %vm1933, %v1761, 0.0
        %v1998 = vsel %vm1934, %v1762, 0.0
        %v1999 = vsel %vm1935, %v1763, 0.0
        %v2000 = vsel %vm1936, %v1764, 0.0
        %v2001 = vsel %vm1937, %v1765, 0.0
        %v2002 = vsel %vm1938, %v1766, 0.0
        %v2003 = vsel %vm1939, %v1767, 0.0
        %v2004 = vsel %vm1940, %v1768, 0.0
        %v2005 = vsel %vm1941, %v1769, 0.0
        %v2006 = vsel %vm1942, %v1770, 0.0
        %v2007 = vsel %vm1943, %v1771, 0.0
        %v2008 = vsel %vm1944, %v1772, 0.0
        %v2009 = vsel %vm1945, %v1773, 0.0
        %v2010 = vsel %vm1946, %v1774, 0.0
        %v2011 = vsel %vm1947, %v1775, 0.0
        %v2012 = vcombine.high %v1948, 0.0
        %v2014 = vunpack.c.l.s4 1983009808
        %v2015 = vunpack.c.0.s8 %v2014
        %v2016 = vlaneseq
        %v2017 = vshrl.u32 %v2016, 7
        %v2018 = vsub.s32 %v2015, %v2017
        %v2019 = vrot.slane %v1948, %v2018
        %v2021 = vunpack.c.l.s4 1983009808
        %v2022 = vunpack.c.0.s8 %v2021
        %v2023 = vlaneseq
        %v2024 = vshrl.u32 %v2023, 7
        %v2025 = vsub.s32 %v2022, %v2024
        %v2026 = vrot.slane %v2012, %v2025
        %v2027 = vcombine.high %v1949, 0.0
        %v2029 = vunpack.c.l.s4 1983009808
        %v2030 = vunpack.c.0.s8 %v2029
        %v2031 = vlaneseq
        %v2032 = vshrl.u32 %v2031, 7
        %v2033 = vsub.s32 %v2030, %v2032
        %v2034 = vrot.slane %v1949, %v2033
        %v2036 = vunpack.c.l.s4 1983009808
        %v2037 = vunpack.c.0.s8 %v2036
        %v2038 = vlaneseq
        %v2039 = vshrl.u32 %v2038, 7
        %v2040 = vsub.s32 %v2037, %v2039
        %v2041 = vrot.slane %v2027, %v2040
        %v2042 = vcombine.low %v2019, %v2034
        %v2043 = vcombine.high %v2019, %v2034
        %v2045 = vunpack.c.l.s4 1934713408
        %v2046 = vunpack.c.0.s8 %v2045
        %v2047 = vlaneseq
        %v2048 = vshrl.u32 %v2047, 7
        %v2049 = vsub.s32 %v2046, %v2048
        %v2050 = vrot.slane %v2042, %v2049
        %v2052 = vunpack.c.l.s4 1934713408
        %v2053 = vunpack.c.0.s8 %v2052
        %v2054 = vlaneseq
        %v2055 = vshrl.u32 %v2054, 7
        %v2056 = vsub.s32 %v2053, %v2055
        %v2057 = vrot.slane %v2043, %v2056
        %v2058 = vcombine.low %v2026, %v2041
        %v2059 = vcombine.high %v2026, %v2041
        %v2061 = vunpack.c.l.s4 1934713408
        %v2062 = vunpack.c.0.s8 %v2061
        %v2063 = vlaneseq
        %v2064 = vshrl.u32 %v2063, 7
        %v2065 = vsub.s32 %v2062, %v2064
        %v2066 = vrot.slane %v2058, %v2065
        %v2068 = vunpack.c.l.s4 1934713408
        %v2069 = vunpack.c.0.s8 %v2068
        %v2070 = vlaneseq
        %v2071 = vshrl.u32 %v2070, 7
        %v2072 = vsub.s32 %v2069, %v2071
        %v2073 = vrot.slane %v2059, %v2072
        %v2074 = vcombine.high %v2050, 0.0
        %v2075 = vcombine.high %v2057, 0.0
        %v2076 = vcombine.high %v2066, 0.0
        %v2077 = vcombine.high %v2073, 0.0
        %v2078 = vcombine.high %v1950, 0.0
        %v2080 = vunpack.c.l.s4 1983009808
        %v2081 = vunpack.c.0.s8 %v2080
        %v2082 = vlaneseq
        %v2083 = vshrl.u32 %v2082, 7
        %v2084 = vsub.s32 %v2081, %v2083
        %v2085 = vrot.slane %v1950, %v2084
        %v2087 = vunpack.c.l.s4 1983009808
        %v2088 = vunpack.c.0.s8 %v2087
        %v2089 = vlaneseq
        %v2090 = vshrl.u32 %v2089, 7
        %v2091 = vsub.s32 %v2088, %v2090
        %v2092 = vrot.slane %v2078, %v2091
        %v2093 = vcombine.high %v1951, 0.0
        %v2095 = vunpack.c.l.s4 1983009808
        %v2096 = vunpack.c.0.s8 %v2095
        %v2097 = vlaneseq
        %v2098 = vshrl.u32 %v2097, 7
        %v2099 = vsub.s32 %v2096, %v2098
        %v2100 = vrot.slane %v1951, %v2099
        %v2102 = vunpack.c.l.s4 1983009808
        %v2103 = vunpack.c.0.s8 %v2102
        %v2104 = vlaneseq
        %v2105 = vshrl.u32 %v2104, 7
        %v2106 = vsub.s32 %v2103, %v2105
        %v2107 = vrot.slane %v2093, %v2106
        %v2108 = vcombine.low %v2085, %v2100
        %v2109 = vcombine.high %v2085, %v2100
        %v2111 = vunpack.c.l.s4 1934713408
        %v2112 = vunpack.c.0.s8 %v2111
        %v2113 = vlaneseq
        %v2114 = vshrl.u32 %v2113, 7
        %v2115 = vsub.s32 %v2112, %v2114
        %v2116 = vrot.slane %v2108, %v2115
        %v2118 = vunpack.c.l.s4 1934713408
        %v2119 = vunpack.c.0.s8 %v2118
        %v2120 = vlaneseq
        %v2121 = vshrl.u32 %v2120, 7
        %v2122 = vsub.s32 %v2119, %v2121
        %v2123 = vrot.slane %v2109, %v2122
        %v2124 = vcombine.low %v2092, %v2107
        %v2125 = vcombine.high %v2092, %v2107
        %v2127 = vunpack.c.l.s4 1934713408
        %v2128 = vunpack.c.0.s8 %v2127
        %v2129 = vlaneseq
        %v2130 = vshrl.u32 %v2129, 7
        %v2131 = vsub.s32 %v2128, %v2130
        %v2132 = vrot.slane %v2124, %v2131
        %v2134 = vunpack.c.l.s4 1934713408
        %v2135 = vunpack.c.0.s8 %v2134
        %v2136 = vlaneseq
        %v2137 = vshrl.u32 %v2136, 7
        %v2138 = vsub.s32 %v2135, %v2137
        %v2139 = vrot.slane %v2125, %v2138
        %v2140 = vcombine.high %v2116, 0.0
        %v2141 = vcombine.high %v2123, 0.0
        %v2142 = vcombine.high %v2132, 0.0
        %v2143 = vcombine.high %v2139, 0.0
        %v2144 = vcombine.high %v1952, 0.0
        %v2146 = vunpack.c.l.s4 1983009808
        %v2147 = vunpack.c.0.s8 %v2146
        %v2148 = vlaneseq
        %v2149 = vshrl.u32 %v2148, 7
        %v2150 = vsub.s32 %v2147, %v2149
        %v2151 = vrot.slane %v1952, %v2150
        %v2153 = vunpack.c.l.s4 1983009808
        %v2154 = vunpack.c.0.s8 %v2153
        %v2155 = vlaneseq
        %v2156 = vshrl.u32 %v2155, 7
        %v2157 = vsub.s32 %v2154, %v2156
        %v2158 = vrot.slane %v2144, %v2157
        %v2159 = vcombine.high %v1953, 0.0
        %v2161 = vunpack.c.l.s4 1983009808
        %v2162 = vunpack.c.0.s8 %v2161
        %v2163 = vlaneseq
        %v2164 = vshrl.u32 %v2163, 7
        %v2165 = vsub.s32 %v2162, %v2164
        %v2166 = vrot.slane %v1953, %v2165
        %v2168 = vunpack.c.l.s4 1983009808
        %v2169 = vunpack.c.0.s8 %v2168
        %v2170 = vlaneseq
        %v2171 = vshrl.u32 %v2170, 7
        %v2172 = vsub.s32 %v2169, %v2171
        %v2173 = vrot.slane %v2159, %v2172
        %v2174 = vcombine.low %v2151, %v2166
        %v2175 = vcombine.high %v2151, %v2166
        %v2177 = vunpack.c.l.s4 1934713408
        %v2178 = vunpack.c.0.s8 %v2177
        %v2179 = vlaneseq
        %v2180 = vshrl.u32 %v2179, 7
        %v2181 = vsub.s32 %v2178, %v2180
        %v2182 = vrot.slane %v2174, %v2181
        %v2184 = vunpack.c.l.s4 1934713408
        %v2185 = vunpack.c.0.s8 %v2184
        %v2186 = vlaneseq
        %v2187 = vshrl.u32 %v2186, 7
        %v2188 = vsub.s32 %v2185, %v2187
        %v2189 = vrot.slane %v2175, %v2188
        %v2190 = vcombine.low %v2158, %v2173
        %v2191 = vcombine.high %v2158, %v2173
        %v2193 = vunpack.c.l.s4 1934713408
        %v2194 = vunpack.c.0.s8 %v2193
        %v2195 = vlaneseq
        %v2196 = vshrl.u32 %v2195, 7
        %v2197 = vsub.s32 %v2194, %v2196
        %v2198 = vrot.slane %v2190, %v2197
        %v2200 = vunpack.c.l.s4 1934713408
        %v2201 = vunpack.c.0.s8 %v2200
        %v2202 = vlaneseq
        %v2203 = vshrl.u32 %v2202, 7
        %v2204 = vsub.s32 %v2201, %v2203
        %v2205 = vrot.slane %v2191, %v2204
        %v2206 = vcombine.high %v2182, 0.0
        %v2207 = vcombine.high %v2189, 0.0
        %v2208 = vcombine.high %v2198, 0.0
        %v2209 = vcombine.high %v2205, 0.0
        %v2210 = vcombine.high %v1954, 0.0
        %v2212 = vunpack.c.l.s4 1983009808
        %v2213 = vunpack.c.0.s8 %v2212
        %v2214 = vlaneseq
        %v2215 = vshrl.u32 %v2214, 7
        %v2216 = vsub.s32 %v2213, %v2215
        %v2217 = vrot.slane %v1954, %v2216
        %v2219 = vunpack.c.l.s4 1983009808
        %v2220 = vunpack.c.0.s8 %v2219
        %v2221 = vlaneseq
        %v2222 = vshrl.u32 %v2221, 7
        %v2223 = vsub.s32 %v2220, %v2222
        %v2224 = vrot.slane %v2210, %v2223
        %v2225 = vcombine.high %v1955, 0.0
        %v2227 = vunpack.c.l.s4 1983009808
        %v2228 = vunpack.c.0.s8 %v2227
        %v2229 = vlaneseq
        %v2230 = vshrl.u32 %v2229, 7
        %v2231 = vsub.s32 %v2228, %v2230
        %v2232 = vrot.slane %v1955, %v2231
        %v2234 = vunpack.c.l.s4 1983009808
        %v2235 = vunpack.c.0.s8 %v2234
        %v2236 = vlaneseq
        %v2237 = vshrl.u32 %v2236, 7
        %v2238 = vsub.s32 %v2235, %v2237
        %v2239 = vrot.slane %v2225, %v2238
        %v2240 = vcombine.low %v2217, %v2232
        %v2241 = vcombine.high %v2217, %v2232
        %v2243 = vunpack.c.l.s4 1934713408
        %v2244 = vunpack.c.0.s8 %v2243
        %v2245 = vlaneseq
        %v2246 = vshrl.u32 %v2245, 7
        %v2247 = vsub.s32 %v2244, %v2246
        %v2248 = vrot.slane %v2240, %v2247
        %v2250 = vunpack.c.l.s4 1934713408
        %v2251 = vunpack.c.0.s8 %v2250
        %v2252 = vlaneseq
        %v2253 = vshrl.u32 %v2252, 7
        %v2254 = vsub.s32 %v2251, %v2253
        %v2255 = vrot.slane %v2241, %v2254
        %v2256 = vcombine.low %v2224, %v2239
        %v2257 = vcombine.high %v2224, %v2239
        %v2259 = vunpack.c.l.s4 1934713408
        %v2260 = vunpack.c.0.s8 %v2259
        %v2261 = vlaneseq
        %v2262 = vshrl.u32 %v2261, 7
        %v2263 = vsub.s32 %v2260, %v2262
        %v2264 = vrot.slane %v2256, %v2263
        %v2266 = vunpack.c.l.s4 1934713408
        %v2267 = vunpack.c.0.s8 %v2266
        %v2268 = vlaneseq
        %v2269 = vshrl.u32 %v2268, 7
        %v2270 = vsub.s32 %v2267, %v2269
        %v2271 = vrot.slane %v2257, %v2270
        %v2272 = vcombine.high %v2248, 0.0
        %v2273 = vcombine.high %v2255, 0.0
        %v2274 = vcombine.high %v2264, 0.0
        %v2275 = vcombine.high %v2271, 0.0
        %v2276 = vcombine.high %v1956, 0.0
        %v2278 = vunpack.c.l.s4 1983009808
        %v2279 = vunpack.c.0.s8 %v2278
        %v2280 = vlaneseq
        %v2281 = vshrl.u32 %v2280, 7
        %v2282 = vsub.s32 %v2279, %v2281
        %v2283 = vrot.slane %v1956, %v2282
        %v2285 = vunpack.c.l.s4 1983009808
        %v2286 = vunpack.c.0.s8 %v2285
        %v2287 = vlaneseq
        %v2288 = vshrl.u32 %v2287, 7
        %v2289 = vsub.s32 %v2286, %v2288
        %v2290 = vrot.slane %v2276, %v2289
        %v2291 = vcombine.high %v1957, 0.0
        %v2293 = vunpack.c.l.s4 1983009808
        %v2294 = vunpack.c.0.s8 %v2293
        %v2295 = vlaneseq
        %v2296 = vshrl.u32 %v2295, 7
        %v2297 = vsub.s32 %v2294, %v2296
        %v2298 = vrot.slane %v1957, %v2297
        %v2300 = vunpack.c.l.s4 1983009808
        %v2301 = vunpack.c.0.s8 %v2300
        %v2302 = vlaneseq
        %v2303 = vshrl.u32 %v2302, 7
        %v2304 = vsub.s32 %v2301, %v2303
        %v2305 = vrot.slane %v2291, %v2304
        %v2306 = vcombine.low %v2283, %v2298
        %v2307 = vcombine.high %v2283, %v2298
        %v2309 = vunpack.c.l.s4 1934713408
        %v2310 = vunpack.c.0.s8 %v2309
        %v2311 = vlaneseq
        %v2312 = vshrl.u32 %v2311, 7
        %v2313 = vsub.s32 %v2310, %v2312
        %v2314 = vrot.slane %v2306, %v2313
        %v2316 = vunpack.c.l.s4 1934713408
        %v2317 = vunpack.c.0.s8 %v2316
        %v2318 = vlaneseq
        %v2319 = vshrl.u32 %v2318, 7
        %v2320 = vsub.s32 %v2317, %v2319
        %v2321 = vrot.slane %v2307, %v2320
        %v2322 = vcombine.low %v2290, %v2305
        %v2323 = vcombine.high %v2290, %v2305
        %v2325 = vunpack.c.l.s4 1934713408
        %v2326 = vunpack.c.0.s8 %v2325
        %v2327 = vlaneseq
        %v2328 = vshrl.u32 %v2327, 7
        %v2329 = vsub.s32 %v2326, %v2328
        %v2330 = vrot.slane %v2322, %v2329
        %v2332 = vunpack.c.l.s4 1934713408
        %v2333 = vunpack.c.0.s8 %v2332
        %v2334 = vlaneseq
        %v2335 = vshrl.u32 %v2334, 7
        %v2336 = vsub.s32 %v2333, %v2335
        %v2337 = vrot.slane %v2323, %v2336
        %v2338 = vcombine.high %v2314, 0.0
        %v2339 = vcombine.high %v2321, 0.0
        %v2340 = vcombine.high %v2330, 0.0
        %v2341 = vcombine.high %v2337, 0.0
        %v2342 = vcombine.high %v1958, 0.0
        %v2344 = vunpack.c.l.s4 1983009808
        %v2345 = vunpack.c.0.s8 %v2344
        %v2346 = vlaneseq
        %v2347 = vshrl.u32 %v2346, 7
        %v2348 = vsub.s32 %v2345, %v2347
        %v2349 = vrot.slane %v1958, %v2348
        %v2351 = vunpack.c.l.s4 1983009808
        %v2352 = vunpack.c.0.s8 %v2351
        %v2353 = vlaneseq
        %v2354 = vshrl.u32 %v2353, 7
        %v2355 = vsub.s32 %v2352, %v2354
        %v2356 = vrot.slane %v2342, %v2355
        %v2357 = vcombine.high %v1959, 0.0
        %v2359 = vunpack.c.l.s4 1983009808
        %v2360 = vunpack.c.0.s8 %v2359
        %v2361 = vlaneseq
        %v2362 = vshrl.u32 %v2361, 7
        %v2363 = vsub.s32 %v2360, %v2362
        %v2364 = vrot.slane %v1959, %v2363
        %v2366 = vunpack.c.l.s4 1983009808
        %v2367 = vunpack.c.0.s8 %v2366
        %v2368 = vlaneseq
        %v2369 = vshrl.u32 %v2368, 7
        %v2370 = vsub.s32 %v2367, %v2369
        %v2371 = vrot.slane %v2357, %v2370
        %v2372 = vcombine.low %v2349, %v2364
        %v2373 = vcombine.high %v2349, %v2364
        %v2375 = vunpack.c.l.s4 1934713408
        %v2376 = vunpack.c.0.s8 %v2375
        %v2377 = vlaneseq
        %v2378 = vshrl.u32 %v2377, 7
        %v2379 = vsub.s32 %v2376, %v2378
        %v2380 = vrot.slane %v2372, %v2379
        %v2382 = vunpack.c.l.s4 1934713408
        %v2383 = vunpack.c.0.s8 %v2382
        %v2384 = vlaneseq
        %v2385 = vshrl.u32 %v2384, 7
        %v2386 = vsub.s32 %v2383, %v2385
        %v2387 = vrot.slane %v2373, %v2386
        %v2388 = vcombine.low %v2356, %v2371
        %v2389 = vcombine.high %v2356, %v2371
        %v2391 = vunpack.c.l.s4 1934713408
        %v2392 = vunpack.c.0.s8 %v2391
        %v2393 = vlaneseq
        %v2394 = vshrl.u32 %v2393, 7
        %v2395 = vsub.s32 %v2392, %v2394
        %v2396 = vrot.slane %v2388, %v2395
        %v2398 = vunpack.c.l.s4 1934713408
        %v2399 = vunpack.c.0.s8 %v2398
        %v2400 = vlaneseq
        %v2401 = vshrl.u32 %v2400, 7
        %v2402 = vsub.s32 %v2399, %v2401
        %v2403 = vrot.slane %v2389, %v2402
        %v2404 = vcombine.high %v2380, 0.0
        %v2405 = vcombine.high %v2387, 0.0
        %v2406 = vcombine.high %v2396, 0.0
        %v2407 = vcombine.high %v2403, 0.0
        %v2408 = vcombine.high %v1960, 0.0
        %v2410 = vunpack.c.l.s4 1983009808
        %v2411 = vunpack.c.0.s8 %v2410
        %v2412 = vlaneseq
        %v2413 = vshrl.u32 %v2412, 7
        %v2414 = vsub.s32 %v2411, %v2413
        %v2415 = vrot.slane %v1960, %v2414
        %v2417 = vunpack.c.l.s4 1983009808
        %v2418 = vunpack.c.0.s8 %v2417
        %v2419 = vlaneseq
        %v2420 = vshrl.u32 %v2419, 7
        %v2421 = vsub.s32 %v2418, %v2420
        %v2422 = vrot.slane %v2408, %v2421
        %v2423 = vcombine.high %v1961, 0.0
        %v2425 = vunpack.c.l.s4 1983009808
        %v2426 = vunpack.c.0.s8 %v2425
        %v2427 = vlaneseq
        %v2428 = vshrl.u32 %v2427, 7
        %v2429 = vsub.s32 %v2426, %v2428
        %v2430 = vrot.slane %v1961, %v2429
        %v2432 = vunpack.c.l.s4 1983009808
        %v2433 = vunpack.c.0.s8 %v2432
        %v2434 = vlaneseq
        %v2435 = vshrl.u32 %v2434, 7
        %v2436 = vsub.s32 %v2433, %v2435
        %v2437 = vrot.slane %v2423, %v2436
        %v2438 = vcombine.low %v2415, %v2430
        %v2439 = vcombine.high %v2415, %v2430
        %v2441 = vunpack.c.l.s4 1934713408
        %v2442 = vunpack.c.0.s8 %v2441
        %v2443 = vlaneseq
        %v2444 = vshrl.u32 %v2443, 7
        %v2445 = vsub.s32 %v2442, %v2444
        %v2446 = vrot.slane %v2438, %v2445
        %v2448 = vunpack.c.l.s4 1934713408
        %v2449 = vunpack.c.0.s8 %v2448
        %v2450 = vlaneseq
        %v2451 = vshrl.u32 %v2450, 7
        %v2452 = vsub.s32 %v2449, %v2451
        %v2453 = vrot.slane %v2439, %v2452
        %v2454 = vcombine.low %v2422, %v2437
        %v2455 = vcombine.high %v2422, %v2437
        %v2457 = vunpack.c.l.s4 1934713408
        %v2458 = vunpack.c.0.s8 %v2457
        %v2459 = vlaneseq
        %v2460 = vshrl.u32 %v2459, 7
        %v2461 = vsub.s32 %v2458, %v2460
        %v2462 = vrot.slane %v2454, %v2461
        %v2464 = vunpack.c.l.s4 1934713408
        %v2465 = vunpack.c.0.s8 %v2464
        %v2466 = vlaneseq
        %v2467 = vshrl.u32 %v2466, 7
        %v2468 = vsub.s32 %v2465, %v2467
        %v2469 = vrot.slane %v2455, %v2468
        %v2470 = vcombine.high %v2446, 0.0
        %v2471 = vcombine.high %v2453, 0.0
        %v2472 = vcombine.high %v2462, 0.0
        %v2473 = vcombine.high %v2469, 0.0
        %v2474 = vcombine.high %v1962, 0.0
        %v2476 = vunpack.c.l.s4 1983009808
        %v2477 = vunpack.c.0.s8 %v2476
        %v2478 = vlaneseq
        %v2479 = vshrl.u32 %v2478, 7
        %v2480 = vsub.s32 %v2477, %v2479
        %v2481 = vrot.slane %v1962, %v2480
        %v2483 = vunpack.c.l.s4 1983009808
        %v2484 = vunpack.c.0.s8 %v2483
        %v2485 = vlaneseq
        %v2486 = vshrl.u32 %v2485, 7
        %v2487 = vsub.s32 %v2484, %v2486
        %v2488 = vrot.slane %v2474, %v2487
        %v2489 = vcombine.high %v1963, 0.0
        %v2491 = vunpack.c.l.s4 1983009808
        %v2492 = vunpack.c.0.s8 %v2491
        %v2493 = vlaneseq
        %v2494 = vshrl.u32 %v2493, 7
        %v2495 = vsub.s32 %v2492, %v2494
        %v2496 = vrot.slane %v1963, %v2495
        %v2498 = vunpack.c.l.s4 1983009808
        %v2499 = vunpack.c.0.s8 %v2498
        %v2500 = vlaneseq
        %v2501 = vshrl.u32 %v2500, 7
        %v2502 = vsub.s32 %v2499, %v2501
        %v2503 = vrot.slane %v2489, %v2502
        %v2504 = vcombine.low %v2481, %v2496
        %v2505 = vcombine.high %v2481, %v2496
        %v2507 = vunpack.c.l.s4 1934713408
        %v2508 = vunpack.c.0.s8 %v2507
        %v2509 = vlaneseq
        %v2510 = vshrl.u32 %v2509, 7
        %v2511 = vsub.s32 %v2508, %v2510
        %v2512 = vrot.slane %v2504, %v2511
        %v2514 = vunpack.c.l.s4 1934713408
        %v2515 = vunpack.c.0.s8 %v2514
        %v2516 = vlaneseq
        %v2517 = vshrl.u32 %v2516, 7
        %v2518 = vsub.s32 %v2515, %v2517
        %v2519 = vrot.slane %v2505, %v2518
        %v2520 = vcombine.low %v2488, %v2503
        %v2521 = vcombine.high %v2488, %v2503
        %v2523 = vunpack.c.l.s4 1934713408
        %v2524 = vunpack.c.0.s8 %v2523
        %v2525 = vlaneseq
        %v2526 = vshrl.u32 %v2525, 7
        %v2527 = vsub.s32 %v2524, %v2526
        %v2528 = vrot.slane %v2520, %v2527
        %v2530 = vunpack.c.l.s4 1934713408
        %v2531 = vunpack.c.0.s8 %v2530
        %v2532 = vlaneseq
        %v2533 = vshrl.u32 %v2532, 7
        %v2534 = vsub.s32 %v2531, %v2533
        %v2535 = vrot.slane %v2521, %v2534
        %v2536 = vcombine.high %v2512, 0.0
        %v2537 = vcombine.high %v2519, 0.0
        %v2538 = vcombine.high %v2528, 0.0
        %v2539 = vcombine.high %v2535, 0.0
        %v2540 = vcombine.high %v1964, 0.0
        %v2542 = vunpack.c.l.s4 1983009808
        %v2543 = vunpack.c.0.s8 %v2542
        %v2544 = vlaneseq
        %v2545 = vshrl.u32 %v2544, 7
        %v2546 = vsub.s32 %v2543, %v2545
        %v2547 = vrot.slane %v1964, %v2546
        %v2549 = vunpack.c.l.s4 1983009808
        %v2550 = vunpack.c.0.s8 %v2549
        %v2551 = vlaneseq
        %v2552 = vshrl.u32 %v2551, 7
        %v2553 = vsub.s32 %v2550, %v2552
        %v2554 = vrot.slane %v2540, %v2553
        %v2555 = vcombine.high %v1965, 0.0
        %v2557 = vunpack.c.l.s4 1983009808
        %v2558 = vunpack.c.0.s8 %v2557
        %v2559 = vlaneseq
        %v2560 = vshrl.u32 %v2559, 7
        %v2561 = vsub.s32 %v2558, %v2560
        %v2562 = vrot.slane %v1965, %v2561
        %v2564 = vunpack.c.l.s4 1983009808
        %v2565 = vunpack.c.0.s8 %v2564
        %v2566 = vlaneseq
        %v2567 = vshrl.u32 %v2566, 7
        %v2568 = vsub.s32 %v2565, %v2567
        %v2569 = vrot.slane %v2555, %v2568
        %v2570 = vcombine.low %v2547, %v2562
        %v2571 = vcombine.high %v2547, %v2562
        %v2573 = vunpack.c.l.s4 1934713408
        %v2574 = vunpack.c.0.s8 %v2573
        %v2575 = vlaneseq
        %v2576 = vshrl.u32 %v2575, 7
        %v2577 = vsub.s32 %v2574, %v2576
        %v2578 = vrot.slane %v2570, %v2577
        %v2580 = vunpack.c.l.s4 1934713408
        %v2581 = vunpack.c.0.s8 %v2580
        %v2582 = vlaneseq
        %v2583 = vshrl.u32 %v2582, 7
        %v2584 = vsub.s32 %v2581, %v2583
        %v2585 = vrot.slane %v2571, %v2584
        %v2586 = vcombine.low %v2554, %v2569
        %v2587 = vcombine.high %v2554, %v2569
        %v2589 = vunpack.c.l.s4 1934713408
        %v2590 = vunpack.c.0.s8 %v2589
        %v2591 = vlaneseq
        %v2592 = vshrl.u32 %v2591, 7
        %v2593 = vsub.s32 %v2590, %v2592
        %v2594 = vrot.slane %v2586, %v2593
        %v2596 = vunpack.c.l.s4 1934713408
        %v2597 = vunpack.c.0.s8 %v2596
        %v2598 = vlaneseq
        %v2599 = vshrl.u32 %v2598, 7
        %v2600 = vsub.s32 %v2597, %v2599
        %v2601 = vrot.slane %v2587, %v2600
        %v2602 = vcombine.high %v2578, 0.0
        %v2603 = vcombine.high %v2585, 0.0
        %v2604 = vcombine.high %v2594, 0.0
        %v2605 = vcombine.high %v2601, 0.0
        %v2606 = vcombine.high %v1966, 0.0
        %v2608 = vunpack.c.l.s4 1983009808
        %v2609 = vunpack.c.0.s8 %v2608
        %v2610 = vlaneseq
        %v2611 = vshrl.u32 %v2610, 7
        %v2612 = vsub.s32 %v2609, %v2611
        %v2613 = vrot.slane %v1966, %v2612
        %v2615 = vunpack.c.l.s4 1983009808
        %v2616 = vunpack.c.0.s8 %v2615
        %v2617 = vlaneseq
        %v2618 = vshrl.u32 %v2617, 7
        %v2619 = vsub.s32 %v2616, %v2618
        %v2620 = vrot.slane %v2606, %v2619
        %v2621 = vcombine.high %v1967, 0.0
        %v2623 = vunpack.c.l.s4 1983009808
        %v2624 = vunpack.c.0.s8 %v2623
        %v2625 = vlaneseq
        %v2626 = vshrl.u32 %v2625, 7
        %v2627 = vsub.s32 %v2624, %v2626
        %v2628 = vrot.slane %v1967, %v2627
        %v2630 = vunpack.c.l.s4 1983009808
        %v2631 = vunpack.c.0.s8 %v2630
        %v2632 = vlaneseq
        %v2633 = vshrl.u32 %v2632, 7
        %v2634 = vsub.s32 %v2631, %v2633
        %v2635 = vrot.slane %v2621, %v2634
        %v2636 = vcombine.low %v2613, %v2628
        %v2637 = vcombine.high %v2613, %v2628
        %v2639 = vunpack.c.l.s4 1934713408
        %v2640 = vunpack.c.0.s8 %v2639
        %v2641 = vlaneseq
        %v2642 = vshrl.u32 %v2641, 7
        %v2643 = vsub.s32 %v2640, %v2642
        %v2644 = vrot.slane %v2636, %v2643
        %v2646 = vunpack.c.l.s4 1934713408
        %v2647 = vunpack.c.0.s8 %v2646
        %v2648 = vlaneseq
        %v2649 = vshrl.u32 %v2648, 7
        %v2650 = vsub.s32 %v2647, %v2649
        %v2651 = vrot.slane %v2637, %v2650
        %v2652 = vcombine.low %v2620, %v2635
        %v2653 = vcombine.high %v2620, %v2635
        %v2655 = vunpack.c.l.s4 1934713408
        %v2656 = vunpack.c.0.s8 %v2655
        %v2657 = vlaneseq
        %v2658 = vshrl.u32 %v2657, 7
        %v2659 = vsub.s32 %v2656, %v2658
        %v2660 = vrot.slane %v2652, %v2659
        %v2662 = vunpack.c.l.s4 1934713408
        %v2663 = vunpack.c.0.s8 %v2662
        %v2664 = vlaneseq
        %v2665 = vshrl.u32 %v2664, 7
        %v2666 = vsub.s32 %v2663, %v2665
        %v2667 = vrot.slane %v2653, %v2666
        %v2668 = vcombine.high %v2644, 0.0
        %v2669 = vcombine.high %v2651, 0.0
        %v2670 = vcombine.high %v2660, 0.0
        %v2671 = vcombine.high %v2667, 0.0
        %v2672 = vcombine.high %v1968, 0.0
        %v2674 = vunpack.c.l.s4 1983009808
        %v2675 = vunpack.c.0.s8 %v2674
        %v2676 = vlaneseq
        %v2677 = vshrl.u32 %v2676, 7
        %v2678 = vsub.s32 %v2675, %v2677
        %v2679 = vrot.slane %v1968, %v2678
        %v2681 = vunpack.c.l.s4 1983009808
        %v2682 = vunpack.c.0.s8 %v2681
        %v2683 = vlaneseq
        %v2684 = vshrl.u32 %v2683, 7
        %v2685 = vsub.s32 %v2682, %v2684
        %v2686 = vrot.slane %v2672, %v2685
        %v2687 = vcombine.high %v1969, 0.0
        %v2689 = vunpack.c.l.s4 1983009808
        %v2690 = vunpack.c.0.s8 %v2689
        %v2691 = vlaneseq
        %v2692 = vshrl.u32 %v2691, 7
        %v2693 = vsub.s32 %v2690, %v2692
        %v2694 = vrot.slane %v1969, %v2693
        %v2696 = vunpack.c.l.s4 1983009808
        %v2697 = vunpack.c.0.s8 %v2696
        %v2698 = vlaneseq
        %v2699 = vshrl.u32 %v2698, 7
        %v2700 = vsub.s32 %v2697, %v2699
        %v2701 = vrot.slane %v2687, %v2700
        %v2702 = vcombine.low %v2679, %v2694
        %v2703 = vcombine.high %v2679, %v2694
        %v2705 = vunpack.c.l.s4 1934713408
        %v2706 = vunpack.c.0.s8 %v2705
        %v2707 = vlaneseq
        %v2708 = vshrl.u32 %v2707, 7
        %v2709 = vsub.s32 %v2706, %v2708
        %v2710 = vrot.slane %v2702, %v2709
        %v2712 = vunpack.c.l.s4 1934713408
        %v2713 = vunpack.c.0.s8 %v2712
        %v2714 = vlaneseq
        %v2715 = vshrl.u32 %v2714, 7
        %v2716 = vsub.s32 %v2713, %v2715
        %v2717 = vrot.slane %v2703, %v2716
        %v2718 = vcombine.low %v2686, %v2701
        %v2719 = vcombine.high %v2686, %v2701
        %v2721 = vunpack.c.l.s4 1934713408
        %v2722 = vunpack.c.0.s8 %v2721
        %v2723 = vlaneseq
        %v2724 = vshrl.u32 %v2723, 7
        %v2725 = vsub.s32 %v2722, %v2724
        %v2726 = vrot.slane %v2718, %v2725
        %v2728 = vunpack.c.l.s4 1934713408
        %v2729 = vunpack.c.0.s8 %v2728
        %v2730 = vlaneseq
        %v2731 = vshrl.u32 %v2730, 7
        %v2732 = vsub.s32 %v2729, %v2731
        %v2733 = vrot.slane %v2719, %v2732
        %v2734 = vcombine.high %v2710, 0.0
        %v2735 = vcombine.high %v2717, 0.0
        %v2736 = vcombine.high %v2726, 0.0
        %v2737 = vcombine.high %v2733, 0.0
        %v2738 = vcombine.high %v1970, 0.0
        %v2740 = vunpack.c.l.s4 1983009808
        %v2741 = vunpack.c.0.s8 %v2740
        %v2742 = vlaneseq
        %v2743 = vshrl.u32 %v2742, 7
        %v2744 = vsub.s32 %v2741, %v2743
        %v2745 = vrot.slane %v1970, %v2744
        %v2747 = vunpack.c.l.s4 1983009808
        %v2748 = vunpack.c.0.s8 %v2747
        %v2749 = vlaneseq
        %v2750 = vshrl.u32 %v2749, 7
        %v2751 = vsub.s32 %v2748, %v2750
        %v2752 = vrot.slane %v2738, %v2751
        %v2753 = vcombine.high %v1971, 0.0
        %v2755 = vunpack.c.l.s4 1983009808
        %v2756 = vunpack.c.0.s8 %v2755
        %v2757 = vlaneseq
        %v2758 = vshrl.u32 %v2757, 7
        %v2759 = vsub.s32 %v2756, %v2758
        %v2760 = vrot.slane %v1971, %v2759
        %v2762 = vunpack.c.l.s4 1983009808
        %v2763 = vunpack.c.0.s8 %v2762
        %v2764 = vlaneseq
        %v2765 = vshrl.u32 %v2764, 7
        %v2766 = vsub.s32 %v2763, %v2765
        %v2767 = vrot.slane %v2753, %v2766
        %v2768 = vcombine.low %v2745, %v2760
        %v2769 = vcombine.high %v2745, %v2760
        %v2771 = vunpack.c.l.s4 1934713408
        %v2772 = vunpack.c.0.s8 %v2771
        %v2773 = vlaneseq
        %v2774 = vshrl.u32 %v2773, 7
        %v2775 = vsub.s32 %v2772, %v2774
        %v2776 = vrot.slane %v2768, %v2775
        %v2778 = vunpack.c.l.s4 1934713408
        %v2779 = vunpack.c.0.s8 %v2778
        %v2780 = vlaneseq
        %v2781 = vshrl.u32 %v2780, 7
        %v2782 = vsub.s32 %v2779, %v2781
        %v2783 = vrot.slane %v2769, %v2782
        %v2784 = vcombine.low %v2752, %v2767
        %v2785 = vcombine.high %v2752, %v2767
        %v2787 = vunpack.c.l.s4 1934713408
        %v2788 = vunpack.c.0.s8 %v2787
        %v2789 = vlaneseq
        %v2790 = vshrl.u32 %v2789, 7
        %v2791 = vsub.s32 %v2788, %v2790
        %v2792 = vrot.slane %v2784, %v2791
        %v2794 = vunpack.c.l.s4 1934713408
        %v2795 = vunpack.c.0.s8 %v2794
        %v2796 = vlaneseq
        %v2797 = vshrl.u32 %v2796, 7
        %v2798 = vsub.s32 %v2795, %v2797
        %v2799 = vrot.slane %v2785, %v2798
        %v2800 = vcombine.high %v2776, 0.0
        %v2801 = vcombine.high %v2783, 0.0
        %v2802 = vcombine.high %v2792, 0.0
        %v2803 = vcombine.high %v2799, 0.0
        %v2804 = vcombine.high %v1972, 0.0
        %v2806 = vunpack.c.l.s4 1983009808
        %v2807 = vunpack.c.0.s8 %v2806
        %v2808 = vlaneseq
        %v2809 = vshrl.u32 %v2808, 7
        %v2810 = vsub.s32 %v2807, %v2809
        %v2811 = vrot.slane %v1972, %v2810
        %v2813 = vunpack.c.l.s4 1983009808
        %v2814 = vunpack.c.0.s8 %v2813
        %v2815 = vlaneseq
        %v2816 = vshrl.u32 %v2815, 7
        %v2817 = vsub.s32 %v2814, %v2816
        %v2818 = vrot.slane %v2804, %v2817
        %v2819 = vcombine.high %v1973, 0.0
        %v2821 = vunpack.c.l.s4 1983009808
        %v2822 = vunpack.c.0.s8 %v2821
        %v2823 = vlaneseq
        %v2824 = vshrl.u32 %v2823, 7
        %v2825 = vsub.s32 %v2822, %v2824
        %v2826 = vrot.slane %v1973, %v2825
        %v2828 = vunpack.c.l.s4 1983009808
        %v2829 = vunpack.c.0.s8 %v2828
        %v2830 = vlaneseq
        %v2831 = vshrl.u32 %v2830, 7
        %v2832 = vsub.s32 %v2829, %v2831
        %v2833 = vrot.slane %v2819, %v2832
        %v2834 = vcombine.low %v2811, %v2826
        %v2835 = vcombine.high %v2811, %v2826
        %v2837 = vunpack.c.l.s4 1934713408
        %v2838 = vunpack.c.0.s8 %v2837
        %v2839 = vlaneseq
        %v2840 = vshrl.u32 %v2839, 7
        %v2841 = vsub.s32 %v2838, %v2840
        %v2842 = vrot.slane %v2834, %v2841
        %v2844 = vunpack.c.l.s4 1934713408
        %v2845 = vunpack.c.0.s8 %v2844
        %v2846 = vlaneseq
        %v2847 = vshrl.u32 %v2846, 7
        %v2848 = vsub.s32 %v2845, %v2847
        %v2849 = vrot.slane %v2835, %v2848
        %v2850 = vcombine.low %v2818, %v2833
        %v2851 = vcombine.high %v2818, %v2833
        %v2853 = vunpack.c.l.s4 1934713408
        %v2854 = vunpack.c.0.s8 %v2853
        %v2855 = vlaneseq
        %v2856 = vshrl.u32 %v2855, 7
        %v2857 = vsub.s32 %v2854, %v2856
        %v2858 = vrot.slane %v2850, %v2857
        %v2860 = vunpack.c.l.s4 1934713408
        %v2861 = vunpack.c.0.s8 %v2860
        %v2862 = vlaneseq
        %v2863 = vshrl.u32 %v2862, 7
        %v2864 = vsub.s32 %v2861, %v2863
        %v2865 = vrot.slane %v2851, %v2864
        %v2866 = vcombine.high %v2842, 0.0
        %v2867 = vcombine.high %v2849, 0.0
        %v2868 = vcombine.high %v2858, 0.0
        %v2869 = vcombine.high %v2865, 0.0
        %v2870 = vcombine.high %v1974, 0.0
        %v2872 = vunpack.c.l.s4 1983009808
        %v2873 = vunpack.c.0.s8 %v2872
        %v2874 = vlaneseq
        %v2875 = vshrl.u32 %v2874, 7
        %v2876 = vsub.s32 %v2873, %v2875
        %v2877 = vrot.slane %v1974, %v2876
        %v2879 = vunpack.c.l.s4 1983009808
        %v2880 = vunpack.c.0.s8 %v2879
        %v2881 = vlaneseq
        %v2882 = vshrl.u32 %v2881, 7
        %v2883 = vsub.s32 %v2880, %v2882
        %v2884 = vrot.slane %v2870, %v2883
        %v2885 = vcombine.high %v1975, 0.0
        %v2887 = vunpack.c.l.s4 1983009808
        %v2888 = vunpack.c.0.s8 %v2887
        %v2889 = vlaneseq
        %v2890 = vshrl.u32 %v2889, 7
        %v2891 = vsub.s32 %v2888, %v2890
        %v2892 = vrot.slane %v1975, %v2891
        %v2894 = vunpack.c.l.s4 1983009808
        %v2895 = vunpack.c.0.s8 %v2894
        %v2896 = vlaneseq
        %v2897 = vshrl.u32 %v2896, 7
        %v2898 = vsub.s32 %v2895, %v2897
        %v2899 = vrot.slane %v2885, %v2898
        %v2900 = vcombine.low %v2877, %v2892
        %v2901 = vcombine.high %v2877, %v2892
        %v2903 = vunpack.c.l.s4 1934713408
        %v2904 = vunpack.c.0.s8 %v2903
        %v2905 = vlaneseq
        %v2906 = vshrl.u32 %v2905, 7
        %v2907 = vsub.s32 %v2904, %v2906
        %v2908 = vrot.slane %v2900, %v2907
        %v2910 = vunpack.c.l.s4 1934713408
        %v2911 = vunpack.c.0.s8 %v2910
        %v2912 = vlaneseq
        %v2913 = vshrl.u32 %v2912, 7
        %v2914 = vsub.s32 %v2911, %v2913
        %v2915 = vrot.slane %v2901, %v2914
        %v2916 = vcombine.low %v2884, %v2899
        %v2917 = vcombine.high %v2884, %v2899
        %v2919 = vunpack.c.l.s4 1934713408
        %v2920 = vunpack.c.0.s8 %v2919
        %v2921 = vlaneseq
        %v2922 = vshrl.u32 %v2921, 7
        %v2923 = vsub.s32 %v2920, %v2922
        %v2924 = vrot.slane %v2916, %v2923
        %v2926 = vunpack.c.l.s4 1934713408
        %v2927 = vunpack.c.0.s8 %v2926
        %v2928 = vlaneseq
        %v2929 = vshrl.u32 %v2928, 7
        %v2930 = vsub.s32 %v2927, %v2929
        %v2931 = vrot.slane %v2917, %v2930
        %v2932 = vcombine.high %v2908, 0.0
        %v2933 = vcombine.high %v2915, 0.0
        %v2934 = vcombine.high %v2924, 0.0
        %v2935 = vcombine.high %v2931, 0.0
        %v2936 = vcombine.high %v1976, 0.0
        %v2938 = vunpack.c.l.s4 1983009808
        %v2939 = vunpack.c.0.s8 %v2938
        %v2940 = vlaneseq
        %v2941 = vshrl.u32 %v2940, 7
        %v2942 = vsub.s32 %v2939, %v2941
        %v2943 = vrot.slane %v1976, %v2942
        %v2945 = vunpack.c.l.s4 1983009808
        %v2946 = vunpack.c.0.s8 %v2945
        %v2947 = vlaneseq
        %v2948 = vshrl.u32 %v2947, 7
        %v2949 = vsub.s32 %v2946, %v2948
        %v2950 = vrot.slane %v2936, %v2949
        %v2951 = vcombine.high %v1977, 0.0
        %v2953 = vunpack.c.l.s4 1983009808
        %v2954 = vunpack.c.0.s8 %v2953
        %v2955 = vlaneseq
        %v2956 = vshrl.u32 %v2955, 7
        %v2957 = vsub.s32 %v2954, %v2956
        %v2958 = vrot.slane %v1977, %v2957
        %v2960 = vunpack.c.l.s4 1983009808
        %v2961 = vunpack.c.0.s8 %v2960
        %v2962 = vlaneseq
        %v2963 = vshrl.u32 %v2962, 7
        %v2964 = vsub.s32 %v2961, %v2963
        %v2965 = vrot.slane %v2951, %v2964
        %v2966 = vcombine.low %v2943, %v2958
        %v2967 = vcombine.high %v2943, %v2958
        %v2969 = vunpack.c.l.s4 1934713408
        %v2970 = vunpack.c.0.s8 %v2969
        %v2971 = vlaneseq
        %v2972 = vshrl.u32 %v2971, 7
        %v2973 = vsub.s32 %v2970, %v2972
        %v2974 = vrot.slane %v2966, %v2973
        %v2976 = vunpack.c.l.s4 1934713408
        %v2977 = vunpack.c.0.s8 %v2976
        %v2978 = vlaneseq
        %v2979 = vshrl.u32 %v2978, 7
        %v2980 = vsub.s32 %v2977, %v2979
        %v2981 = vrot.slane %v2967, %v2980
        %v2982 = vcombine.low %v2950, %v2965
        %v2983 = vcombine.high %v2950, %v2965
        %v2985 = vunpack.c.l.s4 1934713408
        %v2986 = vunpack.c.0.s8 %v2985
        %v2987 = vlaneseq
        %v2988 = vshrl.u32 %v2987, 7
        %v2989 = vsub.s32 %v2986, %v2988
        %v2990 = vrot.slane %v2982, %v2989
        %v2992 = vunpack.c.l.s4 1934713408
        %v2993 = vunpack.c.0.s8 %v2992
        %v2994 = vlaneseq
        %v2995 = vshrl.u32 %v2994, 7
        %v2996 = vsub.s32 %v2993, %v2995
        %v2997 = vrot.slane %v2983, %v2996
        %v2998 = vcombine.high %v2974, 0.0
        %v2999 = vcombine.high %v2981, 0.0
        %v3000 = vcombine.high %v2990, 0.0
        %v3001 = vcombine.high %v2997, 0.0
        %v3002 = vcombine.high %v1978, 0.0
        %v3004 = vunpack.c.l.s4 1983009808
        %v3005 = vunpack.c.0.s8 %v3004
        %v3006 = vlaneseq
        %v3007 = vshrl.u32 %v3006, 7
        %v3008 = vsub.s32 %v3005, %v3007
        %v3009 = vrot.slane %v1978, %v3008
        %v3011 = vunpack.c.l.s4 1983009808
        %v3012 = vunpack.c.0.s8 %v3011
        %v3013 = vlaneseq
        %v3014 = vshrl.u32 %v3013, 7
        %v3015 = vsub.s32 %v3012, %v3014
        %v3016 = vrot.slane %v3002, %v3015
        %v3017 = vcombine.high %v1979, 0.0
        %v3019 = vunpack.c.l.s4 1983009808
        %v3020 = vunpack.c.0.s8 %v3019
        %v3021 = vlaneseq
        %v3022 = vshrl.u32 %v3021, 7
        %v3023 = vsub.s32 %v3020, %v3022
        %v3024 = vrot.slane %v1979, %v3023
        %v3026 = vunpack.c.l.s4 1983009808
        %v3027 = vunpack.c.0.s8 %v3026
        %v3028 = vlaneseq
        %v3029 = vshrl.u32 %v3028, 7
        %v3030 = vsub.s32 %v3027, %v3029
        %v3031 = vrot.slane %v3017, %v3030
        %v3032 = vcombine.low %v3009, %v3024
        %v3033 = vcombine.high %v3009, %v3024
        %v3035 = vunpack.c.l.s4 1934713408
        %v3036 = vunpack.c.0.s8 %v3035
        %v3037 = vlaneseq
        %v3038 = vshrl.u32 %v3037, 7
        %v3039 = vsub.s32 %v3036, %v3038
        %v3040 = vrot.slane %v3032, %v3039
        %v3042 = vunpack.c.l.s4 1934713408
        %v3043 = vunpack.c.0.s8 %v3042
        %v3044 = vlaneseq
        %v3045 = vshrl.u32 %v3044, 7
        %v3046 = vsub.s32 %v3043, %v3045
        %v3047 = vrot.slane %v3033, %v3046
        %v3048 = vcombine.low %v3016, %v3031
        %v3049 = vcombine.high %v3016, %v3031
        %v3051 = vunpack.c.l.s4 1934713408
        %v3052 = vunpack.c.0.s8 %v3051
        %v3053 = vlaneseq
        %v3054 = vshrl.u32 %v3053, 7
        %v3055 = vsub.s32 %v3052, %v3054
        %v3056 = vrot.slane %v3048, %v3055
        %v3058 = vunpack.c.l.s4 1934713408
        %v3059 = vunpack.c.0.s8 %v3058
        %v3060 = vlaneseq
        %v3061 = vshrl.u32 %v3060, 7
        %v3062 = vsub.s32 %v3059, %v3061
        %v3063 = vrot.slane %v3049, %v3062
        %v3064 = vcombine.high %v3040, 0.0
        %v3065 = vcombine.high %v3047, 0.0
        %v3066 = vcombine.high %v3056, 0.0
        %v3067 = vcombine.high %v3063, 0.0
        %v3068 = vcombine.high %v1980, 0.0
        %v3070 = vunpack.c.l.s4 1983009808
        %v3071 = vunpack.c.0.s8 %v3070
        %v3072 = vlaneseq
        %v3073 = vshrl.u32 %v3072, 7
        %v3074 = vsub.s32 %v3071, %v3073
        %v3075 = vrot.slane %v1980, %v3074
        %v3077 = vunpack.c.l.s4 1983009808
        %v3078 = vunpack.c.0.s8 %v3077
        %v3079 = vlaneseq
        %v3080 = vshrl.u32 %v3079, 7
        %v3081 = vsub.s32 %v3078, %v3080
        %v3082 = vrot.slane %v3068, %v3081
        %v3083 = vcombine.high %v1981, 0.0
        %v3085 = vunpack.c.l.s4 1983009808
        %v3086 = vunpack.c.0.s8 %v3085
        %v3087 = vlaneseq
        %v3088 = vshrl.u32 %v3087, 7
        %v3089 = vsub.s32 %v3086, %v3088
        %v3090 = vrot.slane %v1981, %v3089
        %v3092 = vunpack.c.l.s4 1983009808
        %v3093 = vunpack.c.0.s8 %v3092
        %v3094 = vlaneseq
        %v3095 = vshrl.u32 %v3094, 7
        %v3096 = vsub.s32 %v3093, %v3095
        %v3097 = vrot.slane %v3083, %v3096
        %v3098 = vcombine.low %v3075, %v3090
        %v3099 = vcombine.high %v3075, %v3090
        %v3101 = vunpack.c.l.s4 1934713408
        %v3102 = vunpack.c.0.s8 %v3101
        %v3103 = vlaneseq
        %v3104 = vshrl.u32 %v3103, 7
        %v3105 = vsub.s32 %v3102, %v3104
        %v3106 = vrot.slane %v3098, %v3105
        %v3108 = vunpack.c.l.s4 1934713408
        %v3109 = vunpack.c.0.s8 %v3108
        %v3110 = vlaneseq
        %v3111 = vshrl.u32 %v3110, 7
        %v3112 = vsub.s32 %v3109, %v3111
        %v3113 = vrot.slane %v3099, %v3112
        %v3114 = vcombine.low %v3082, %v3097
        %v3115 = vcombine.high %v3082, %v3097
        %v3117 = vunpack.c.l.s4 1934713408
        %v3118 = vunpack.c.0.s8 %v3117
        %v3119 = vlaneseq
        %v3120 = vshrl.u32 %v3119, 7
        %v3121 = vsub.s32 %v3118, %v3120
        %v3122 = vrot.slane %v3114, %v3121
        %v3124 = vunpack.c.l.s4 1934713408
        %v3125 = vunpack.c.0.s8 %v3124
        %v3126 = vlaneseq
        %v3127 = vshrl.u32 %v3126, 7
        %v3128 = vsub.s32 %v3125, %v3127
        %v3129 = vrot.slane %v3115, %v3128
        %v3130 = vcombine.high %v3106, 0.0
        %v3131 = vcombine.high %v3113, 0.0
        %v3132 = vcombine.high %v3122, 0.0
        %v3133 = vcombine.high %v3129, 0.0
        %v3134 = vcombine.high %v1982, 0.0
        %v3136 = vunpack.c.l.s4 1983009808
        %v3137 = vunpack.c.0.s8 %v3136
        %v3138 = vlaneseq
        %v3139 = vshrl.u32 %v3138, 7
        %v3140 = vsub.s32 %v3137, %v3139
        %v3141 = vrot.slane %v1982, %v3140
        %v3143 = vunpack.c.l.s4 1983009808
        %v3144 = vunpack.c.0.s8 %v3143
        %v3145 = vlaneseq
        %v3146 = vshrl.u32 %v3145, 7
        %v3147 = vsub.s32 %v3144, %v3146
        %v3148 = vrot.slane %v3134, %v3147
        %v3149 = vcombine.high %v1983, 0.0
        %v3151 = vunpack.c.l.s4 1983009808
        %v3152 = vunpack.c.0.s8 %v3151
        %v3153 = vlaneseq
        %v3154 = vshrl.u32 %v3153, 7
        %v3155 = vsub.s32 %v3152, %v3154
        %v3156 = vrot.slane %v1983, %v3155
        %v3158 = vunpack.c.l.s4 1983009808
        %v3159 = vunpack.c.0.s8 %v3158
        %v3160 = vlaneseq
        %v3161 = vshrl.u32 %v3160, 7
        %v3162 = vsub.s32 %v3159, %v3161
        %v3163 = vrot.slane %v3149, %v3162
        %v3164 = vcombine.low %v3141, %v3156
        %v3165 = vcombine.high %v3141, %v3156
        %v3167 = vunpack.c.l.s4 1934713408
        %v3168 = vunpack.c.0.s8 %v3167
        %v3169 = vlaneseq
        %v3170 = vshrl.u32 %v3169, 7
        %v3171 = vsub.s32 %v3168, %v3170
        %v3172 = vrot.slane %v3164, %v3171
        %v3174 = vunpack.c.l.s4 1934713408
        %v3175 = vunpack.c.0.s8 %v3174
        %v3176 = vlaneseq
        %v3177 = vshrl.u32 %v3176, 7
        %v3178 = vsub.s32 %v3175, %v3177
        %v3179 = vrot.slane %v3165, %v3178
        %v3180 = vcombine.low %v3148, %v3163
        %v3181 = vcombine.high %v3148, %v3163
        %v3183 = vunpack.c.l.s4 1934713408
        %v3184 = vunpack.c.0.s8 %v3183
        %v3185 = vlaneseq
        %v3186 = vshrl.u32 %v3185, 7
        %v3187 = vsub.s32 %v3184, %v3186
        %v3188 = vrot.slane %v3180, %v3187
        %v3190 = vunpack.c.l.s4 1934713408
        %v3191 = vunpack.c.0.s8 %v3190
        %v3192 = vlaneseq
        %v3193 = vshrl.u32 %v3192, 7
        %v3194 = vsub.s32 %v3191, %v3193
        %v3195 = vrot.slane %v3181, %v3194
        %v3196 = vcombine.high %v3172, 0.0
        %v3197 = vcombine.high %v3179, 0.0
        %v3198 = vcombine.high %v3188, 0.0
        %v3199 = vcombine.high %v3195, 0.0
        %v3200 = vcombine.high %v1984, 0.0
        %v3202 = vunpack.c.l.s4 1983009808
        %v3203 = vunpack.c.0.s8 %v3202
        %v3204 = vlaneseq
        %v3205 = vshrl.u32 %v3204, 7
        %v3206 = vsub.s32 %v3203, %v3205
        %v3207 = vrot.slane %v1984, %v3206
        %v3209 = vunpack.c.l.s4 1983009808
        %v3210 = vunpack.c.0.s8 %v3209
        %v3211 = vlaneseq
        %v3212 = vshrl.u32 %v3211, 7
        %v3213 = vsub.s32 %v3210, %v3212
        %v3214 = vrot.slane %v3200, %v3213
        %v3215 = vcombine.high %v1985, 0.0
        %v3217 = vunpack.c.l.s4 1983009808
        %v3218 = vunpack.c.0.s8 %v3217
        %v3219 = vlaneseq
        %v3220 = vshrl.u32 %v3219, 7
        %v3221 = vsub.s32 %v3218, %v3220
        %v3222 = vrot.slane %v1985, %v3221
        %v3224 = vunpack.c.l.s4 1983009808
        %v3225 = vunpack.c.0.s8 %v3224
        %v3226 = vlaneseq
        %v3227 = vshrl.u32 %v3226, 7
        %v3228 = vsub.s32 %v3225, %v3227
        %v3229 = vrot.slane %v3215, %v3228
        %v3230 = vcombine.low %v3207, %v3222
        %v3231 = vcombine.high %v3207, %v3222
        %v3233 = vunpack.c.l.s4 1934713408
        %v3234 = vunpack.c.0.s8 %v3233
        %v3235 = vlaneseq
        %v3236 = vshrl.u32 %v3235, 7
        %v3237 = vsub.s32 %v3234, %v3236
        %v3238 = vrot.slane %v3230, %v3237
        %v3240 = vunpack.c.l.s4 1934713408
        %v3241 = vunpack.c.0.s8 %v3240
        %v3242 = vlaneseq
        %v3243 = vshrl.u32 %v3242, 7
        %v3244 = vsub.s32 %v3241, %v3243
        %v3245 = vrot.slane %v3231, %v3244
        %v3246 = vcombine.low %v3214, %v3229
        %v3247 = vcombine.high %v3214, %v3229
        %v3249 = vunpack.c.l.s4 1934713408
        %v3250 = vunpack.c.0.s8 %v3249
        %v3251 = vlaneseq
        %v3252 = vshrl.u32 %v3251, 7
        %v3253 = vsub.s32 %v3250, %v3252
        %v3254 = vrot.slane %v3246, %v3253
        %v3256 = vunpack.c.l.s4 1934713408
        %v3257 = vunpack.c.0.s8 %v3256
        %v3258 = vlaneseq
        %v3259 = vshrl.u32 %v3258, 7
        %v3260 = vsub.s32 %v3257, %v3259
        %v3261 = vrot.slane %v3247, %v3260
        %v3262 = vcombine.high %v3238, 0.0
        %v3263 = vcombine.high %v3245, 0.0
        %v3264 = vcombine.high %v3254, 0.0
        %v3265 = vcombine.high %v3261, 0.0
        %v3266 = vcombine.high %v1986, 0.0
        %v3268 = vunpack.c.l.s4 1983009808
        %v3269 = vunpack.c.0.s8 %v3268
        %v3270 = vlaneseq
        %v3271 = vshrl.u32 %v3270, 7
        %v3272 = vsub.s32 %v3269, %v3271
        %v3273 = vrot.slane %v1986, %v3272
        %v3275 = vunpack.c.l.s4 1983009808
        %v3276 = vunpack.c.0.s8 %v3275
        %v3277 = vlaneseq
        %v3278 = vshrl.u32 %v3277, 7
        %v3279 = vsub.s32 %v3276, %v3278
        %v3280 = vrot.slane %v3266, %v3279
        %v3281 = vcombine.high %v1987, 0.0
        %v3283 = vunpack.c.l.s4 1983009808
        %v3284 = vunpack.c.0.s8 %v3283
        %v3285 = vlaneseq
        %v3286 = vshrl.u32 %v3285, 7
        %v3287 = vsub.s32 %v3284, %v3286
        %v3288 = vrot.slane %v1987, %v3287
        %v3290 = vunpack.c.l.s4 1983009808
        %v3291 = vunpack.c.0.s8 %v3290
        %v3292 = vlaneseq
        %v3293 = vshrl.u32 %v3292, 7
        %v3294 = vsub.s32 %v3291, %v3293
        %v3295 = vrot.slane %v3281, %v3294
        %v3296 = vcombine.low %v3273, %v3288
        %v3297 = vcombine.high %v3273, %v3288
        %v3299 = vunpack.c.l.s4 1934713408
        %v3300 = vunpack.c.0.s8 %v3299
        %v3301 = vlaneseq
        %v3302 = vshrl.u32 %v3301, 7
        %v3303 = vsub.s32 %v3300, %v3302
        %v3304 = vrot.slane %v3296, %v3303
        %v3306 = vunpack.c.l.s4 1934713408
        %v3307 = vunpack.c.0.s8 %v3306
        %v3308 = vlaneseq
        %v3309 = vshrl.u32 %v3308, 7
        %v3310 = vsub.s32 %v3307, %v3309
        %v3311 = vrot.slane %v3297, %v3310
        %v3312 = vcombine.low %v3280, %v3295
        %v3313 = vcombine.high %v3280, %v3295
        %v3315 = vunpack.c.l.s4 1934713408
        %v3316 = vunpack.c.0.s8 %v3315
        %v3317 = vlaneseq
        %v3318 = vshrl.u32 %v3317, 7
        %v3319 = vsub.s32 %v3316, %v3318
        %v3320 = vrot.slane %v3312, %v3319
        %v3322 = vunpack.c.l.s4 1934713408
        %v3323 = vunpack.c.0.s8 %v3322
        %v3324 = vlaneseq
        %v3325 = vshrl.u32 %v3324, 7
        %v3326 = vsub.s32 %v3323, %v3325
        %v3327 = vrot.slane %v3313, %v3326
        %v3328 = vcombine.high %v3304, 0.0
        %v3329 = vcombine.high %v3311, 0.0
        %v3330 = vcombine.high %v3320, 0.0
        %v3331 = vcombine.high %v3327, 0.0
        %v3332 = vcombine.high %v1988, 0.0
        %v3334 = vunpack.c.l.s4 1983009808
        %v3335 = vunpack.c.0.s8 %v3334
        %v3336 = vlaneseq
        %v3337 = vshrl.u32 %v3336, 7
        %v3338 = vsub.s32 %v3335, %v3337
        %v3339 = vrot.slane %v1988, %v3338
        %v3341 = vunpack.c.l.s4 1983009808
        %v3342 = vunpack.c.0.s8 %v3341
        %v3343 = vlaneseq
        %v3344 = vshrl.u32 %v3343, 7
        %v3345 = vsub.s32 %v3342, %v3344
        %v3346 = vrot.slane %v3332, %v3345
        %v3347 = vcombine.high %v1989, 0.0
        %v3349 = vunpack.c.l.s4 1983009808
        %v3350 = vunpack.c.0.s8 %v3349
        %v3351 = vlaneseq
        %v3352 = vshrl.u32 %v3351, 7
        %v3353 = vsub.s32 %v3350, %v3352
        %v3354 = vrot.slane %v1989, %v3353
        %v3356 = vunpack.c.l.s4 1983009808
        %v3357 = vunpack.c.0.s8 %v3356
        %v3358 = vlaneseq
        %v3359 = vshrl.u32 %v3358, 7
        %v3360 = vsub.s32 %v3357, %v3359
        %v3361 = vrot.slane %v3347, %v3360
        %v3362 = vcombine.low %v3339, %v3354
        %v3363 = vcombine.high %v3339, %v3354
        %v3365 = vunpack.c.l.s4 1934713408
        %v3366 = vunpack.c.0.s8 %v3365
        %v3367 = vlaneseq
        %v3368 = vshrl.u32 %v3367, 7
        %v3369 = vsub.s32 %v3366, %v3368
        %v3370 = vrot.slane %v3362, %v3369
        %v3372 = vunpack.c.l.s4 1934713408
        %v3373 = vunpack.c.0.s8 %v3372
        %v3374 = vlaneseq
        %v3375 = vshrl.u32 %v3374, 7
        %v3376 = vsub.s32 %v3373, %v3375
        %v3377 = vrot.slane %v3363, %v3376
        %v3378 = vcombine.low %v3346, %v3361
        %v3379 = vcombine.high %v3346, %v3361
        %v3381 = vunpack.c.l.s4 1934713408
        %v3382 = vunpack.c.0.s8 %v3381
        %v3383 = vlaneseq
        %v3384 = vshrl.u32 %v3383, 7
        %v3385 = vsub.s32 %v3382, %v3384
        %v3386 = vrot.slane %v3378, %v3385
        %v3388 = vunpack.c.l.s4 1934713408
        %v3389 = vunpack.c.0.s8 %v3388
        %v3390 = vlaneseq
        %v3391 = vshrl.u32 %v3390, 7
        %v3392 = vsub.s32 %v3389, %v3391
        %v3393 = vrot.slane %v3379, %v3392
        %v3394 = vcombine.high %v3370, 0.0
        %v3395 = vcombine.high %v3377, 0.0
        %v3396 = vcombine.high %v3386, 0.0
        %v3397 = vcombine.high %v3393, 0.0
        %v3398 = vcombine.high %v1990, 0.0
        %v3400 = vunpack.c.l.s4 1983009808
        %v3401 = vunpack.c.0.s8 %v3400
        %v3402 = vlaneseq
        %v3403 = vshrl.u32 %v3402, 7
        %v3404 = vsub.s32 %v3401, %v3403
        %v3405 = vrot.slane %v1990, %v3404
        %v3407 = vunpack.c.l.s4 1983009808
        %v3408 = vunpack.c.0.s8 %v3407
        %v3409 = vlaneseq
        %v3410 = vshrl.u32 %v3409, 7
        %v3411 = vsub.s32 %v3408, %v3410
        %v3412 = vrot.slane %v3398, %v3411
        %v3413 = vcombine.high %v1991, 0.0
        %v3415 = vunpack.c.l.s4 1983009808
        %v3416 = vunpack.c.0.s8 %v3415
        %v3417 = vlaneseq
        %v3418 = vshrl.u32 %v3417, 7
        %v3419 = vsub.s32 %v3416, %v3418
        %v3420 = vrot.slane %v1991, %v3419
        %v3422 = vunpack.c.l.s4 1983009808
        %v3423 = vunpack.c.0.s8 %v3422
        %v3424 = vlaneseq
        %v3425 = vshrl.u32 %v3424, 7
        %v3426 = vsub.s32 %v3423, %v3425
        %v3427 = vrot.slane %v3413, %v3426
        %v3428 = vcombine.low %v3405, %v3420
        %v3429 = vcombine.high %v3405, %v3420
        %v3431 = vunpack.c.l.s4 1934713408
        %v3432 = vunpack.c.0.s8 %v3431
        %v3433 = vlaneseq
        %v3434 = vshrl.u32 %v3433, 7
        %v3435 = vsub.s32 %v3432, %v3434
        %v3436 = vrot.slane %v3428, %v3435
        %v3438 = vunpack.c.l.s4 1934713408
        %v3439 = vunpack.c.0.s8 %v3438
        %v3440 = vlaneseq
        %v3441 = vshrl.u32 %v3440, 7
        %v3442 = vsub.s32 %v3439, %v3441
        %v3443 = vrot.slane %v3429, %v3442
        %v3444 = vcombine.low %v3412, %v3427
        %v3445 = vcombine.high %v3412, %v3427
        %v3447 = vunpack.c.l.s4 1934713408
        %v3448 = vunpack.c.0.s8 %v3447
        %v3449 = vlaneseq
        %v3450 = vshrl.u32 %v3449, 7
        %v3451 = vsub.s32 %v3448, %v3450
        %v3452 = vrot.slane %v3444, %v3451
        %v3454 = vunpack.c.l.s4 1934713408
        %v3455 = vunpack.c.0.s8 %v3454
        %v3456 = vlaneseq
        %v3457 = vshrl.u32 %v3456, 7
        %v3458 = vsub.s32 %v3455, %v3457
        %v3459 = vrot.slane %v3445, %v3458
        %v3460 = vcombine.high %v3436, 0.0
        %v3461 = vcombine.high %v3443, 0.0
        %v3462 = vcombine.high %v3452, 0.0
        %v3463 = vcombine.high %v3459, 0.0
        %v3464 = vcombine.high %v1992, 0.0
        %v3466 = vunpack.c.l.s4 1983009808
        %v3467 = vunpack.c.0.s8 %v3466
        %v3468 = vlaneseq
        %v3469 = vshrl.u32 %v3468, 7
        %v3470 = vsub.s32 %v3467, %v3469
        %v3471 = vrot.slane %v1992, %v3470
        %v3473 = vunpack.c.l.s4 1983009808
        %v3474 = vunpack.c.0.s8 %v3473
        %v3475 = vlaneseq
        %v3476 = vshrl.u32 %v3475, 7
        %v3477 = vsub.s32 %v3474, %v3476
        %v3478 = vrot.slane %v3464, %v3477
        %v3479 = vcombine.high %v1993, 0.0
        %v3481 = vunpack.c.l.s4 1983009808
        %v3482 = vunpack.c.0.s8 %v3481
        %v3483 = vlaneseq
        %v3484 = vshrl.u32 %v3483, 7
        %v3485 = vsub.s32 %v3482, %v3484
        %v3486 = vrot.slane %v1993, %v3485
        %v3488 = vunpack.c.l.s4 1983009808
        %v3489 = vunpack.c.0.s8 %v3488
        %v3490 = vlaneseq
        %v3491 = vshrl.u32 %v3490, 7
        %v3492 = vsub.s32 %v3489, %v3491
        %v3493 = vrot.slane %v3479, %v3492
        %v3494 = vcombine.low %v3471, %v3486
        %v3495 = vcombine.high %v3471, %v3486
        %v3497 = vunpack.c.l.s4 1934713408
        %v3498 = vunpack.c.0.s8 %v3497
        %v3499 = vlaneseq
        %v3500 = vshrl.u32 %v3499, 7
        %v3501 = vsub.s32 %v3498, %v3500
        %v3502 = vrot.slane %v3494, %v3501
        %v3504 = vunpack.c.l.s4 1934713408
        %v3505 = vunpack.c.0.s8 %v3504
        %v3506 = vlaneseq
        %v3507 = vshrl.u32 %v3506, 7
        %v3508 = vsub.s32 %v3505, %v3507
        %v3509 = vrot.slane %v3495, %v3508
        %v3510 = vcombine.low %v3478, %v3493
        %v3511 = vcombine.high %v3478, %v3493
        %v3513 = vunpack.c.l.s4 1934713408
        %v3514 = vunpack.c.0.s8 %v3513
        %v3515 = vlaneseq
        %v3516 = vshrl.u32 %v3515, 7
        %v3517 = vsub.s32 %v3514, %v3516
        %v3518 = vrot.slane %v3510, %v3517
        %v3520 = vunpack.c.l.s4 1934713408
        %v3521 = vunpack.c.0.s8 %v3520
        %v3522 = vlaneseq
        %v3523 = vshrl.u32 %v3522, 7
        %v3524 = vsub.s32 %v3521, %v3523
        %v3525 = vrot.slane %v3511, %v3524
        %v3526 = vcombine.high %v3502, 0.0
        %v3527 = vcombine.high %v3509, 0.0
        %v3528 = vcombine.high %v3518, 0.0
        %v3529 = vcombine.high %v3525, 0.0
        %v3530 = vcombine.high %v1994, 0.0
        %v3532 = vunpack.c.l.s4 1983009808
        %v3533 = vunpack.c.0.s8 %v3532
        %v3534 = vlaneseq
        %v3535 = vshrl.u32 %v3534, 7
        %v3536 = vsub.s32 %v3533, %v3535
        %v3537 = vrot.slane %v1994, %v3536
        %v3539 = vunpack.c.l.s4 1983009808
        %v3540 = vunpack.c.0.s8 %v3539
        %v3541 = vlaneseq
        %v3542 = vshrl.u32 %v3541, 7
        %v3543 = vsub.s32 %v3540, %v3542
        %v3544 = vrot.slane %v3530, %v3543
        %v3545 = vcombine.high %v1995, 0.0
        %v3547 = vunpack.c.l.s4 1983009808
        %v3548 = vunpack.c.0.s8 %v3547
        %v3549 = vlaneseq
        %v3550 = vshrl.u32 %v3549, 7
        %v3551 = vsub.s32 %v3548, %v3550
        %v3552 = vrot.slane %v1995, %v3551
        %v3554 = vunpack.c.l.s4 1983009808
        %v3555 = vunpack.c.0.s8 %v3554
        %v3556 = vlaneseq
        %v3557 = vshrl.u32 %v3556, 7
        %v3558 = vsub.s32 %v3555, %v3557
        %v3559 = vrot.slane %v3545, %v3558
        %v3560 = vcombine.low %v3537, %v3552
        %v3561 = vcombine.high %v3537, %v3552
        %v3563 = vunpack.c.l.s4 1934713408
        %v3564 = vunpack.c.0.s8 %v3563
        %v3565 = vlaneseq
        %v3566 = vshrl.u32 %v3565, 7
        %v3567 = vsub.s32 %v3564, %v3566
        %v3568 = vrot.slane %v3560, %v3567
        %v3570 = vunpack.c.l.s4 1934713408
        %v3571 = vunpack.c.0.s8 %v3570
        %v3572 = vlaneseq
        %v3573 = vshrl.u32 %v3572, 7
        %v3574 = vsub.s32 %v3571, %v3573
        %v3575 = vrot.slane %v3561, %v3574
        %v3576 = vcombine.low %v3544, %v3559
        %v3577 = vcombine.high %v3544, %v3559
        %v3579 = vunpack.c.l.s4 1934713408
        %v3580 = vunpack.c.0.s8 %v3579
        %v3581 = vlaneseq
        %v3582 = vshrl.u32 %v3581, 7
        %v3583 = vsub.s32 %v3580, %v3582
        %v3584 = vrot.slane %v3576, %v3583
        %v3586 = vunpack.c.l.s4 1934713408
        %v3587 = vunpack.c.0.s8 %v3586
        %v3588 = vlaneseq
        %v3589 = vshrl.u32 %v3588, 7
        %v3590 = vsub.s32 %v3587, %v3589
        %v3591 = vrot.slane %v3577, %v3590
        %v3592 = vcombine.high %v3568, 0.0
        %v3593 = vcombine.high %v3575, 0.0
        %v3594 = vcombine.high %v3584, 0.0
        %v3595 = vcombine.high %v3591, 0.0
        %v3596 = vcombine.high %v1996, 0.0
        %v3598 = vunpack.c.l.s4 1983009808
        %v3599 = vunpack.c.0.s8 %v3598
        %v3600 = vlaneseq
        %v3601 = vshrl.u32 %v3600, 7
        %v3602 = vsub.s32 %v3599, %v3601
        %v3603 = vrot.slane %v1996, %v3602
        %v3605 = vunpack.c.l.s4 1983009808
        %v3606 = vunpack.c.0.s8 %v3605
        %v3607 = vlaneseq
        %v3608 = vshrl.u32 %v3607, 7
        %v3609 = vsub.s32 %v3606, %v3608
        %v3610 = vrot.slane %v3596, %v3609
        %v3611 = vcombine.high %v1997, 0.0
        %v3613 = vunpack.c.l.s4 1983009808
        %v3614 = vunpack.c.0.s8 %v3613
        %v3615 = vlaneseq
        %v3616 = vshrl.u32 %v3615, 7
        %v3617 = vsub.s32 %v3614, %v3616
        %v3618 = vrot.slane %v1997, %v3617
        %v3620 = vunpack.c.l.s4 1983009808
        %v3621 = vunpack.c.0.s8 %v3620
        %v3622 = vlaneseq
        %v3623 = vshrl.u32 %v3622, 7
        %v3624 = vsub.s32 %v3621, %v3623
        %v3625 = vrot.slane %v3611, %v3624
        %v3626 = vcombine.low %v3603, %v3618
        %v3627 = vcombine.high %v3603, %v3618
        %v3629 = vunpack.c.l.s4 1934713408
        %v3630 = vunpack.c.0.s8 %v3629
        %v3631 = vlaneseq
        %v3632 = vshrl.u32 %v3631, 7
        %v3633 = vsub.s32 %v3630, %v3632
        %v3634 = vrot.slane %v3626, %v3633
        %v3636 = vunpack.c.l.s4 1934713408
        %v3637 = vunpack.c.0.s8 %v3636
        %v3638 = vlaneseq
        %v3639 = vshrl.u32 %v3638, 7
        %v3640 = vsub.s32 %v3637, %v3639
        %v3641 = vrot.slane %v3627, %v3640
        %v3642 = vcombine.low %v3610, %v3625
        %v3643 = vcombine.high %v3610, %v3625
        %v3645 = vunpack.c.l.s4 1934713408
        %v3646 = vunpack.c.0.s8 %v3645
        %v3647 = vlaneseq
        %v3648 = vshrl.u32 %v3647, 7
        %v3649 = vsub.s32 %v3646, %v3648
        %v3650 = vrot.slane %v3642, %v3649
        %v3652 = vunpack.c.l.s4 1934713408
        %v3653 = vunpack.c.0.s8 %v3652
        %v3654 = vlaneseq
        %v3655 = vshrl.u32 %v3654, 7
        %v3656 = vsub.s32 %v3653, %v3655
        %v3657 = vrot.slane %v3643, %v3656
        %v3658 = vcombine.high %v3634, 0.0
        %v3659 = vcombine.high %v3641, 0.0
        %v3660 = vcombine.high %v3650, 0.0
        %v3661 = vcombine.high %v3657, 0.0
        %v3662 = vcombine.high %v1998, 0.0
        %v3664 = vunpack.c.l.s4 1983009808
        %v3665 = vunpack.c.0.s8 %v3664
        %v3666 = vlaneseq
        %v3667 = vshrl.u32 %v3666, 7
        %v3668 = vsub.s32 %v3665, %v3667
        %v3669 = vrot.slane %v1998, %v3668
        %v3671 = vunpack.c.l.s4 1983009808
        %v3672 = vunpack.c.0.s8 %v3671
        %v3673 = vlaneseq
        %v3674 = vshrl.u32 %v3673, 7
        %v3675 = vsub.s32 %v3672, %v3674
        %v3676 = vrot.slane %v3662, %v3675
        %v3677 = vcombine.high %v1999, 0.0
        %v3679 = vunpack.c.l.s4 1983009808
        %v3680 = vunpack.c.0.s8 %v3679
        %v3681 = vlaneseq
        %v3682 = vshrl.u32 %v3681, 7
        %v3683 = vsub.s32 %v3680, %v3682
        %v3684 = vrot.slane %v1999, %v3683
        %v3686 = vunpack.c.l.s4 1983009808
        %v3687 = vunpack.c.0.s8 %v3686
        %v3688 = vlaneseq
        %v3689 = vshrl.u32 %v3688, 7
        %v3690 = vsub.s32 %v3687, %v3689
        %v3691 = vrot.slane %v3677, %v3690
        %v3692 = vcombine.low %v3669, %v3684
        %v3693 = vcombine.high %v3669, %v3684
        %v3695 = vunpack.c.l.s4 1934713408
        %v3696 = vunpack.c.0.s8 %v3695
        %v3697 = vlaneseq
        %v3698 = vshrl.u32 %v3697, 7
        %v3699 = vsub.s32 %v3696, %v3698
        %v3700 = vrot.slane %v3692, %v3699
        %v3702 = vunpack.c.l.s4 1934713408
        %v3703 = vunpack.c.0.s8 %v3702
        %v3704 = vlaneseq
        %v3705 = vshrl.u32 %v3704, 7
        %v3706 = vsub.s32 %v3703, %v3705
        %v3707 = vrot.slane %v3693, %v3706
        %v3708 = vcombine.low %v3676, %v3691
        %v3709 = vcombine.high %v3676, %v3691
        %v3711 = vunpack.c.l.s4 1934713408
        %v3712 = vunpack.c.0.s8 %v3711
        %v3713 = vlaneseq
        %v3714 = vshrl.u32 %v3713, 7
        %v3715 = vsub.s32 %v3712, %v3714
        %v3716 = vrot.slane %v3708, %v3715
        %v3718 = vunpack.c.l.s4 1934713408
        %v3719 = vunpack.c.0.s8 %v3718
        %v3720 = vlaneseq
        %v3721 = vshrl.u32 %v3720, 7
        %v3722 = vsub.s32 %v3719, %v3721
        %v3723 = vrot.slane %v3709, %v3722
        %v3724 = vcombine.high %v3700, 0.0
        %v3725 = vcombine.high %v3707, 0.0
        %v3726 = vcombine.high %v3716, 0.0
        %v3727 = vcombine.high %v3723, 0.0
        %v3728 = vcombine.high %v2000, 0.0
        %v3730 = vunpack.c.l.s4 1983009808
        %v3731 = vunpack.c.0.s8 %v3730
        %v3732 = vlaneseq
        %v3733 = vshrl.u32 %v3732, 7
        %v3734 = vsub.s32 %v3731, %v3733
        %v3735 = vrot.slane %v2000, %v3734
        %v3737 = vunpack.c.l.s4 1983009808
        %v3738 = vunpack.c.0.s8 %v3737
        %v3739 = vlaneseq
        %v3740 = vshrl.u32 %v3739, 7
        %v3741 = vsub.s32 %v3738, %v3740
        %v3742 = vrot.slane %v3728, %v3741
        %v3743 = vcombine.high %v2001, 0.0
        %v3745 = vunpack.c.l.s4 1983009808
        %v3746 = vunpack.c.0.s8 %v3745
        %v3747 = vlaneseq
        %v3748 = vshrl.u32 %v3747, 7
        %v3749 = vsub.s32 %v3746, %v3748
        %v3750 = vrot.slane %v2001, %v3749
        %v3752 = vunpack.c.l.s4 1983009808
        %v3753 = vunpack.c.0.s8 %v3752
        %v3754 = vlaneseq
        %v3755 = vshrl.u32 %v3754, 7
        %v3756 = vsub.s32 %v3753, %v3755
        %v3757 = vrot.slane %v3743, %v3756
        %v3758 = vcombine.low %v3735, %v3750
        %v3759 = vcombine.high %v3735, %v3750
        %v3761 = vunpack.c.l.s4 1934713408
        %v3762 = vunpack.c.0.s8 %v3761
        %v3763 = vlaneseq
        %v3764 = vshrl.u32 %v3763, 7
        %v3765 = vsub.s32 %v3762, %v3764
        %v3766 = vrot.slane %v3758, %v3765
        %v3768 = vunpack.c.l.s4 1934713408
        %v3769 = vunpack.c.0.s8 %v3768
        %v3770 = vlaneseq
        %v3771 = vshrl.u32 %v3770, 7
        %v3772 = vsub.s32 %v3769, %v3771
        %v3773 = vrot.slane %v3759, %v3772
        %v3774 = vcombine.low %v3742, %v3757
        %v3775 = vcombine.high %v3742, %v3757
        %v3777 = vunpack.c.l.s4 1934713408
        %v3778 = vunpack.c.0.s8 %v3777
        %v3779 = vlaneseq
        %v3780 = vshrl.u32 %v3779, 7
        %v3781 = vsub.s32 %v3778, %v3780
        %v3782 = vrot.slane %v3774, %v3781
        %v3784 = vunpack.c.l.s4 1934713408
        %v3785 = vunpack.c.0.s8 %v3784
        %v3786 = vlaneseq
        %v3787 = vshrl.u32 %v3786, 7
        %v3788 = vsub.s32 %v3785, %v3787
        %v3789 = vrot.slane %v3775, %v3788
        %v3790 = vcombine.high %v3766, 0.0
        %v3791 = vcombine.high %v3773, 0.0
        %v3792 = vcombine.high %v3782, 0.0
        %v3793 = vcombine.high %v3789, 0.0
        %v3794 = vcombine.high %v2002, 0.0
        %v3796 = vunpack.c.l.s4 1983009808
        %v3797 = vunpack.c.0.s8 %v3796
        %v3798 = vlaneseq
        %v3799 = vshrl.u32 %v3798, 7
        %v3800 = vsub.s32 %v3797, %v3799
        %v3801 = vrot.slane %v2002, %v3800
        %v3803 = vunpack.c.l.s4 1983009808
        %v3804 = vunpack.c.0.s8 %v3803
        %v3805 = vlaneseq
        %v3806 = vshrl.u32 %v3805, 7
        %v3807 = vsub.s32 %v3804, %v3806
        %v3808 = vrot.slane %v3794, %v3807
        %v3809 = vcombine.high %v2003, 0.0
        %v3811 = vunpack.c.l.s4 1983009808
        %v3812 = vunpack.c.0.s8 %v3811
        %v3813 = vlaneseq
        %v3814 = vshrl.u32 %v3813, 7
        %v3815 = vsub.s32 %v3812, %v3814
        %v3816 = vrot.slane %v2003, %v3815
        %v3818 = vunpack.c.l.s4 1983009808
        %v3819 = vunpack.c.0.s8 %v3818
        %v3820 = vlaneseq
        %v3821 = vshrl.u32 %v3820, 7
        %v3822 = vsub.s32 %v3819, %v3821
        %v3823 = vrot.slane %v3809, %v3822
        %v3824 = vcombine.low %v3801, %v3816
        %v3825 = vcombine.high %v3801, %v3816
        %v3827 = vunpack.c.l.s4 1934713408
        %v3828 = vunpack.c.0.s8 %v3827
        %v3829 = vlaneseq
        %v3830 = vshrl.u32 %v3829, 7
        %v3831 = vsub.s32 %v3828, %v3830
        %v3832 = vrot.slane %v3824, %v3831
        %v3834 = vunpack.c.l.s4 1934713408
        %v3835 = vunpack.c.0.s8 %v3834
        %v3836 = vlaneseq
        %v3837 = vshrl.u32 %v3836, 7
        %v3838 = vsub.s32 %v3835, %v3837
        %v3839 = vrot.slane %v3825, %v3838
        %v3840 = vcombine.low %v3808, %v3823
        %v3841 = vcombine.high %v3808, %v3823
        %v3843 = vunpack.c.l.s4 1934713408
        %v3844 = vunpack.c.0.s8 %v3843
        %v3845 = vlaneseq
        %v3846 = vshrl.u32 %v3845, 7
        %v3847 = vsub.s32 %v3844, %v3846
        %v3848 = vrot.slane %v3840, %v3847
        %v3850 = vunpack.c.l.s4 1934713408
        %v3851 = vunpack.c.0.s8 %v3850
        %v3852 = vlaneseq
        %v3853 = vshrl.u32 %v3852, 7
        %v3854 = vsub.s32 %v3851, %v3853
        %v3855 = vrot.slane %v3841, %v3854
        %v3856 = vcombine.high %v3832, 0.0
        %v3857 = vcombine.high %v3839, 0.0
        %v3858 = vcombine.high %v3848, 0.0
        %v3859 = vcombine.high %v3855, 0.0
        %v3860 = vcombine.high %v2004, 0.0
        %v3862 = vunpack.c.l.s4 1983009808
        %v3863 = vunpack.c.0.s8 %v3862
        %v3864 = vlaneseq
        %v3865 = vshrl.u32 %v3864, 7
        %v3866 = vsub.s32 %v3863, %v3865
        %v3867 = vrot.slane %v2004, %v3866
        %v3869 = vunpack.c.l.s4 1983009808
        %v3870 = vunpack.c.0.s8 %v3869
        %v3871 = vlaneseq
        %v3872 = vshrl.u32 %v3871, 7
        %v3873 = vsub.s32 %v3870, %v3872
        %v3874 = vrot.slane %v3860, %v3873
        %v3875 = vcombine.high %v2005, 0.0
        %v3877 = vunpack.c.l.s4 1983009808
        %v3878 = vunpack.c.0.s8 %v3877
        %v3879 = vlaneseq
        %v3880 = vshrl.u32 %v3879, 7
        %v3881 = vsub.s32 %v3878, %v3880
        %v3882 = vrot.slane %v2005, %v3881
        %v3884 = vunpack.c.l.s4 1983009808
        %v3885 = vunpack.c.0.s8 %v3884
        %v3886 = vlaneseq
        %v3887 = vshrl.u32 %v3886, 7
        %v3888 = vsub.s32 %v3885, %v3887
        %v3889 = vrot.slane %v3875, %v3888
        %v3890 = vcombine.low %v3867, %v3882
        %v3891 = vcombine.high %v3867, %v3882
        %v3893 = vunpack.c.l.s4 1934713408
        %v3894 = vunpack.c.0.s8 %v3893
        %v3895 = vlaneseq
        %v3896 = vshrl.u32 %v3895, 7
        %v3897 = vsub.s32 %v3894, %v3896
        %v3898 = vrot.slane %v3890, %v3897
        %v3900 = vunpack.c.l.s4 1934713408
        %v3901 = vunpack.c.0.s8 %v3900
        %v3902 = vlaneseq
        %v3903 = vshrl.u32 %v3902, 7
        %v3904 = vsub.s32 %v3901, %v3903
        %v3905 = vrot.slane %v3891, %v3904
        %v3906 = vcombine.low %v3874, %v3889
        %v3907 = vcombine.high %v3874, %v3889
        %v3909 = vunpack.c.l.s4 1934713408
        %v3910 = vunpack.c.0.s8 %v3909
        %v3911 = vlaneseq
        %v3912 = vshrl.u32 %v3911, 7
        %v3913 = vsub.s32 %v3910, %v3912
        %v3914 = vrot.slane %v3906, %v3913
        %v3916 = vunpack.c.l.s4 1934713408
        %v3917 = vunpack.c.0.s8 %v3916
        %v3918 = vlaneseq
        %v3919 = vshrl.u32 %v3918, 7
        %v3920 = vsub.s32 %v3917, %v3919
        %v3921 = vrot.slane %v3907, %v3920
        %v3922 = vcombine.high %v3898, 0.0
        %v3923 = vcombine.high %v3905, 0.0
        %v3924 = vcombine.high %v3914, 0.0
        %v3925 = vcombine.high %v3921, 0.0
        %v3926 = vcombine.high %v2006, 0.0
        %v3928 = vunpack.c.l.s4 1983009808
        %v3929 = vunpack.c.0.s8 %v3928
        %v3930 = vlaneseq
        %v3931 = vshrl.u32 %v3930, 7
        %v3932 = vsub.s32 %v3929, %v3931
        %v3933 = vrot.slane %v2006, %v3932
        %v3935 = vunpack.c.l.s4 1983009808
        %v3936 = vunpack.c.0.s8 %v3935
        %v3937 = vlaneseq
        %v3938 = vshrl.u32 %v3937, 7
        %v3939 = vsub.s32 %v3936, %v3938
        %v3940 = vrot.slane %v3926, %v3939
        %v3941 = vcombine.high %v2007, 0.0
        %v3943 = vunpack.c.l.s4 1983009808
        %v3944 = vunpack.c.0.s8 %v3943
        %v3945 = vlaneseq
        %v3946 = vshrl.u32 %v3945, 7
        %v3947 = vsub.s32 %v3944, %v3946
        %v3948 = vrot.slane %v2007, %v3947
        %v3950 = vunpack.c.l.s4 1983009808
        %v3951 = vunpack.c.0.s8 %v3950
        %v3952 = vlaneseq
        %v3953 = vshrl.u32 %v3952, 7
        %v3954 = vsub.s32 %v3951, %v3953
        %v3955 = vrot.slane %v3941, %v3954
        %v3956 = vcombine.low %v3933, %v3948
        %v3957 = vcombine.high %v3933, %v3948
        %v3959 = vunpack.c.l.s4 1934713408
        %v3960 = vunpack.c.0.s8 %v3959
        %v3961 = vlaneseq
        %v3962 = vshrl.u32 %v3961, 7
        %v3963 = vsub.s32 %v3960, %v3962
        %v3964 = vrot.slane %v3956, %v3963
        %v3966 = vunpack.c.l.s4 1934713408
        %v3967 = vunpack.c.0.s8 %v3966
        %v3968 = vlaneseq
        %v3969 = vshrl.u32 %v3968, 7
        %v3970 = vsub.s32 %v3967, %v3969
        %v3971 = vrot.slane %v3957, %v3970
        %v3972 = vcombine.low %v3940, %v3955
        %v3973 = vcombine.high %v3940, %v3955
        %v3975 = vunpack.c.l.s4 1934713408
        %v3976 = vunpack.c.0.s8 %v3975
        %v3977 = vlaneseq
        %v3978 = vshrl.u32 %v3977, 7
        %v3979 = vsub.s32 %v3976, %v3978
        %v3980 = vrot.slane %v3972, %v3979
        %v3982 = vunpack.c.l.s4 1934713408
        %v3983 = vunpack.c.0.s8 %v3982
        %v3984 = vlaneseq
        %v3985 = vshrl.u32 %v3984, 7
        %v3986 = vsub.s32 %v3983, %v3985
        %v3987 = vrot.slane %v3973, %v3986
        %v3988 = vcombine.high %v3964, 0.0
        %v3989 = vcombine.high %v3971, 0.0
        %v3990 = vcombine.high %v3980, 0.0
        %v3991 = vcombine.high %v3987, 0.0
        %v3992 = vcombine.high %v2008, 0.0
        %v3994 = vunpack.c.l.s4 1983009808
        %v3995 = vunpack.c.0.s8 %v3994
        %v3996 = vlaneseq
        %v3997 = vshrl.u32 %v3996, 7
        %v3998 = vsub.s32 %v3995, %v3997
        %v3999 = vrot.slane %v2008, %v3998
        %v4001 = vunpack.c.l.s4 1983009808
        %v4002 = vunpack.c.0.s8 %v4001
        %v4003 = vlaneseq
        %v4004 = vshrl.u32 %v4003, 7
        %v4005 = vsub.s32 %v4002, %v4004
        %v4006 = vrot.slane %v3992, %v4005
        %v4007 = vcombine.high %v2009, 0.0
        %v4009 = vunpack.c.l.s4 1983009808
        %v4010 = vunpack.c.0.s8 %v4009
        %v4011 = vlaneseq
        %v4012 = vshrl.u32 %v4011, 7
        %v4013 = vsub.s32 %v4010, %v4012
        %v4014 = vrot.slane %v2009, %v4013
        %v4016 = vunpack.c.l.s4 1983009808
        %v4017 = vunpack.c.0.s8 %v4016
        %v4018 = vlaneseq
        %v4019 = vshrl.u32 %v4018, 7
        %v4020 = vsub.s32 %v4017, %v4019
        %v4021 = vrot.slane %v4007, %v4020
        %v4022 = vcombine.low %v3999, %v4014
        %v4023 = vcombine.high %v3999, %v4014
        %v4025 = vunpack.c.l.s4 1934713408
        %v4026 = vunpack.c.0.s8 %v4025
        %v4027 = vlaneseq
        %v4028 = vshrl.u32 %v4027, 7
        %v4029 = vsub.s32 %v4026, %v4028
        %v4030 = vrot.slane %v4022, %v4029
        %v4032 = vunpack.c.l.s4 1934713408
        %v4033 = vunpack.c.0.s8 %v4032
        %v4034 = vlaneseq
        %v4035 = vshrl.u32 %v4034, 7
        %v4036 = vsub.s32 %v4033, %v4035
        %v4037 = vrot.slane %v4023, %v4036
        %v4038 = vcombine.low %v4006, %v4021
        %v4039 = vcombine.high %v4006, %v4021
        %v4041 = vunpack.c.l.s4 1934713408
        %v4042 = vunpack.c.0.s8 %v4041
        %v4043 = vlaneseq
        %v4044 = vshrl.u32 %v4043, 7
        %v4045 = vsub.s32 %v4042, %v4044
        %v4046 = vrot.slane %v4038, %v4045
        %v4048 = vunpack.c.l.s4 1934713408
        %v4049 = vunpack.c.0.s8 %v4048
        %v4050 = vlaneseq
        %v4051 = vshrl.u32 %v4050, 7
        %v4052 = vsub.s32 %v4049, %v4051
        %v4053 = vrot.slane %v4039, %v4052
        %v4054 = vcombine.high %v4030, 0.0
        %v4055 = vcombine.high %v4037, 0.0
        %v4056 = vcombine.high %v4046, 0.0
        %v4057 = vcombine.high %v4053, 0.0
        %v4058 = vcombine.high %v2010, 0.0
        %v4060 = vunpack.c.l.s4 1983009808
        %v4061 = vunpack.c.0.s8 %v4060
        %v4062 = vlaneseq
        %v4063 = vshrl.u32 %v4062, 7
        %v4064 = vsub.s32 %v4061, %v4063
        %v4065 = vrot.slane %v2010, %v4064
        %v4067 = vunpack.c.l.s4 1983009808
        %v4068 = vunpack.c.0.s8 %v4067
        %v4069 = vlaneseq
        %v4070 = vshrl.u32 %v4069, 7
        %v4071 = vsub.s32 %v4068, %v4070
        %v4072 = vrot.slane %v4058, %v4071
        %v4073 = vcombine.high %v2011, 0.0
        %v4075 = vunpack.c.l.s4 1983009808
        %v4076 = vunpack.c.0.s8 %v4075
        %v4077 = vlaneseq
        %v4078 = vshrl.u32 %v4077, 7
        %v4079 = vsub.s32 %v4076, %v4078
        %v4080 = vrot.slane %v2011, %v4079
        %v4082 = vunpack.c.l.s4 1983009808
        %v4083 = vunpack.c.0.s8 %v4082
        %v4084 = vlaneseq
        %v4085 = vshrl.u32 %v4084, 7
        %v4086 = vsub.s32 %v4083, %v4085
        %v4087 = vrot.slane %v4073, %v4086
        %v4088 = vcombine.low %v4065, %v4080
        %v4089 = vcombine.high %v4065, %v4080
        %v4091 = vunpack.c.l.s4 1934713408
        %v4092 = vunpack.c.0.s8 %v4091
        %v4093 = vlaneseq
        %v4094 = vshrl.u32 %v4093, 7
        %v4095 = vsub.s32 %v4092, %v4094
        %v4096 = vrot.slane %v4088, %v4095
        %v4098 = vunpack.c.l.s4 1934713408
        %v4099 = vunpack.c.0.s8 %v4098
        %v4100 = vlaneseq
        %v4101 = vshrl.u32 %v4100, 7
        %v4102 = vsub.s32 %v4099, %v4101
        %v4103 = vrot.slane %v4089, %v4102
        %v4104 = vcombine.low %v4072, %v4087
        %v4105 = vcombine.high %v4072, %v4087
        %v4107 = vunpack.c.l.s4 1934713408
        %v4108 = vunpack.c.0.s8 %v4107
        %v4109 = vlaneseq
        %v4110 = vshrl.u32 %v4109, 7
        %v4111 = vsub.s32 %v4108, %v4110
        %v4112 = vrot.slane %v4104, %v4111
        %v4114 = vunpack.c.l.s4 1934713408
        %v4115 = vunpack.c.0.s8 %v4114
        %v4116 = vlaneseq
        %v4117 = vshrl.u32 %v4116, 7
        %v4118 = vsub.s32 %v4115, %v4117
        %v4119 = vrot.slane %v4105, %v4118
        %v4120 = vcombine.high %v4096, 0.0
        %v4121 = vcombine.high %v4103, 0.0
        %v4122 = vcombine.high %v4112, 0.0
        %v4123 = vcombine.high %v4119, 0.0
        %vm4124 = vcmask 1041408
        %v4125 = vsel %vm4124, %v2050, 0.0
        %v4126 = vsel %vm4124, %v2116, 0.0
        %v4127 = vadd.f32 %v4125, %v4126
        %v4128 = vsel %vm4124, %v2182, 0.0
        %v4129 = vadd.f32 %v4127, %v4128
        %v4130 = vsel %vm4124, %v2248, 0.0
        %v4131 = vadd.f32 %v4129, %v4130
        %v4132 = vsel %vm4124, %v2314, 0.0
        %v4133 = vadd.f32 %v4131, %v4132
        %v4134 = vsel %vm4124, %v2380, 0.0
        %v4135 = vadd.f32 %v4133, %v4134
        %v4136 = vsel %vm4124, %v2446, 0.0
        %v4137 = vadd.f32 %v4135, %v4136
        %v4138 = vsel %vm4124, %v2512, 0.0
        %v4139 = vadd.f32 %v4137, %v4138
        %v4140 = vsel %vm4124, %v2578, 0.0
        %v4141 = vadd.f32 %v4139, %v4140
        %v4142 = vsel %vm4124, %v2644, 0.0
        %v4143 = vadd.f32 %v4141, %v4142
        %v4144 = vsel %vm4124, %v2710, 0.0
        %v4145 = vadd.f32 %v4143, %v4144
        %v4146 = vsel %vm4124, %v2776, 0.0
        %v4147 = vadd.f32 %v4145, %v4146
        %v4148 = vsel %vm4124, %v2842, 0.0
        %v4149 = vadd.f32 %v4147, %v4148
        %v4150 = vsel %vm4124, %v2908, 0.0
        %v4151 = vadd.f32 %v4149, %v4150
        %v4152 = vsel %vm4124, %v2974, 0.0
        %v4153 = vadd.f32 %v4151, %v4152
        %v4154 = vsel %vm4124, %v3040, 0.0
        %v4155 = vadd.f32 %v4153, %v4154
        %v4156 = vsel %vm4124, %v3106, 0.0
        %v4157 = vadd.f32 %v4155, %v4156
        %v4158 = vsel %vm4124, %v3172, 0.0
        %v4159 = vadd.f32 %v4157, %v4158
        %v4160 = vsel %vm4124, %v3238, 0.0
        %v4161 = vadd.f32 %v4159, %v4160
        %v4162 = vsel %vm4124, %v3304, 0.0
        %v4163 = vadd.f32 %v4161, %v4162
        %v4164 = vsel %vm4124, %v3370, 0.0
        %v4165 = vadd.f32 %v4163, %v4164
        %v4166 = vsel %vm4124, %v3436, 0.0
        %v4167 = vadd.f32 %v4165, %v4166
        %v4168 = vsel %vm4124, %v3502, 0.0
        %v4169 = vadd.f32 %v4167, %v4168
        %v4170 = vsel %vm4124, %v3568, 0.0
        %v4171 = vadd.f32 %v4169, %v4170
        %v4172 = vsel %vm4124, %v3634, 0.0
        %v4173 = vadd.f32 %v4171, %v4172
        %v4174 = vsel %vm4124, %v3700, 0.0
        %v4175 = vadd.f32 %v4173, %v4174
        %v4176 = vsel %vm4124, %v3766, 0.0
        %v4177 = vadd.f32 %v4175, %v4176
        %v4178 = vsel %vm4124, %v3832, 0.0
        %v4179 = vadd.f32 %v4177, %v4178
        %v4180 = vsel %vm4124, %v3898, 0.0
        %v4181 = vadd.f32 %v4179, %v4180
        %v4182 = vsel %vm4124, %v3964, 0.0
        %v4183 = vadd.f32 %v4181, %v4182
        %v4184 = vsel %vm4124, %v4030, 0.0
        %v4185 = vadd.f32 %v4183, %v4184
        %v4186 = vsel %vm4124, %v4096, 0.0
        %v4187 = vadd.f32 %v4185, %v4186
        %v4188 = vrot.slane %v4187, 4
        %v4189 = vadd.f32 %v4187, %v4188
        %v4190 = vrot.slane %v4189, 2
        %v4191 = vadd.f32 %v4189, %v4190
        %v4192 = vrot.slane %v4191, 1
        %v4193 = vadd.f32 %v4191, %v4192
        %v4194 = vsel %vm4124, %v2074, 0.0
        %v4195 = vsel %vm4124, %v2140, 0.0
        %v4196 = vadd.f32 %v4194, %v4195
        %v4197 = vsel %vm4124, %v2206, 0.0
        %v4198 = vadd.f32 %v4196, %v4197
        %v4199 = vsel %vm4124, %v2272, 0.0
        %v4200 = vadd.f32 %v4198, %v4199
        %v4201 = vsel %vm4124, %v2338, 0.0
        %v4202 = vadd.f32 %v4200, %v4201
        %v4203 = vsel %vm4124, %v2404, 0.0
        %v4204 = vadd.f32 %v4202, %v4203
        %v4205 = vsel %vm4124, %v2470, 0.0
        %v4206 = vadd.f32 %v4204, %v4205
        %v4207 = vsel %vm4124, %v2536, 0.0
        %v4208 = vadd.f32 %v4206, %v4207
        %v4209 = vsel %vm4124, %v2602, 0.0
        %v4210 = vadd.f32 %v4208, %v4209
        %v4211 = vsel %vm4124, %v2668, 0.0
        %v4212 = vadd.f32 %v4210, %v4211
        %v4213 = vsel %vm4124, %v2734, 0.0
        %v4214 = vadd.f32 %v4212, %v4213
        %v4215 = vsel %vm4124, %v2800, 0.0
        %v4216 = vadd.f32 %v4214, %v4215
        %v4217 = vsel %vm4124, %v2866, 0.0
        %v4218 = vadd.f32 %v4216, %v4217
        %v4219 = vsel %vm4124, %v2932, 0.0
        %v4220 = vadd.f32 %v4218, %v4219
        %v4221 = vsel %vm4124, %v2998, 0.0
        %v4222 = vadd.f32 %v4220, %v4221
        %v4223 = vsel %vm4124, %v3064, 0.0
        %v4224 = vadd.f32 %v4222, %v4223
        %v4225 = vsel %vm4124, %v3130, 0.0
        %v4226 = vadd.f32 %v4224, %v4225
        %v4227 = vsel %vm4124, %v3196, 0.0
        %v4228 = vadd.f32 %v4226, %v4227
        %v4229 = vsel %vm4124, %v3262, 0.0
        %v4230 = vadd.f32 %v4228, %v4229
        %v4231 = vsel %vm4124, %v3328, 0.0
        %v4232 = vadd.f32 %v4230, %v4231
        %v4233 = vsel %vm4124, %v3394, 0.0
        %v4234 = vadd.f32 %v4232, %v4233
        %v4235 = vsel %vm4124, %v3460, 0.0
        %v4236 = vadd.f32 %v4234, %v4235
        %v4237 = vsel %vm4124, %v3526, 0.0
        %v4238 = vadd.f32 %v4236, %v4237
        %v4239 = vsel %vm4124, %v3592, 0.0
        %v4240 = vadd.f32 %v4238, %v4239
        %v4241 = vsel %vm4124, %v3658, 0.0
        %v4242 = vadd.f32 %v4240, %v4241
        %v4243 = vsel %vm4124, %v3724, 0.0
        %v4244 = vadd.f32 %v4242, %v4243
        %v4245 = vsel %vm4124, %v3790, 0.0
        %v4246 = vadd.f32 %v4244, %v4245
        %v4247 = vsel %vm4124, %v3856, 0.0
        %v4248 = vadd.f32 %v4246, %v4247
        %v4249 = vsel %vm4124, %v3922, 0.0
        %v4250 = vadd.f32 %v4248, %v4249
        %v4251 = vsel %vm4124, %v3988, 0.0
        %v4252 = vadd.f32 %v4250, %v4251
        %v4253 = vsel %vm4124, %v4054, 0.0
        %v4254 = vadd.f32 %v4252, %v4253
        %v4255 = vsel %vm4124, %v4120, 0.0
        %v4256 = vadd.f32 %v4254, %v4255
        %v4257 = vrot.slane %v4256, 4
        %v4258 = vadd.f32 %v4256, %v4257
        %v4259 = vrot.slane %v4258, 2
        %v4260 = vadd.f32 %v4258, %v4259
        %v4261 = vrot.slane %v4260, 1
        %v4262 = vadd.f32 %v4260, %v4261
        %v4263 = vsel %vm4124, %v2057, 0.0
        %v4264 = vsel %vm4124, %v2123, 0.0
        %v4265 = vadd.f32 %v4263, %v4264
        %v4266 = vsel %vm4124, %v2189, 0.0
        %v4267 = vadd.f32 %v4265, %v4266
        %v4268 = vsel %vm4124, %v2255, 0.0
        %v4269 = vadd.f32 %v4267, %v4268
        %v4270 = vsel %vm4124, %v2321, 0.0
        %v4271 = vadd.f32 %v4269, %v4270
        %v4272 = vsel %vm4124, %v2387, 0.0
        %v4273 = vadd.f32 %v4271, %v4272
        %v4274 = vsel %vm4124, %v2453, 0.0
        %v4275 = vadd.f32 %v4273, %v4274
        %v4276 = vsel %vm4124, %v2519, 0.0
        %v4277 = vadd.f32 %v4275, %v4276
        %v4278 = vsel %vm4124, %v2585, 0.0
        %v4279 = vadd.f32 %v4277, %v4278
        %v4280 = vsel %vm4124, %v2651, 0.0
        %v4281 = vadd.f32 %v4279, %v4280
        %v4282 = vsel %vm4124, %v2717, 0.0
        %v4283 = vadd.f32 %v4281, %v4282
        %v4284 = vsel %vm4124, %v2783, 0.0
        %v4285 = vadd.f32 %v4283, %v4284
        %v4286 = vsel %vm4124, %v2849, 0.0
        %v4287 = vadd.f32 %v4285, %v4286
        %v4288 = vsel %vm4124, %v2915, 0.0
        %v4289 = vadd.f32 %v4287, %v4288
        %v4290 = vsel %vm4124, %v2981, 0.0
        %v4291 = vadd.f32 %v4289, %v4290
        %v4292 = vsel %vm4124, %v3047, 0.0
        %v4293 = vadd.f32 %v4291, %v4292
        %v4294 = vsel %vm4124, %v3113, 0.0
        %v4295 = vadd.f32 %v4293, %v4294
        %v4296 = vsel %vm4124, %v3179, 0.0
        %v4297 = vadd.f32 %v4295, %v4296
        %v4298 = vsel %vm4124, %v3245, 0.0
        %v4299 = vadd.f32 %v4297, %v4298
        %v4300 = vsel %vm4124, %v3311, 0.0
        %v4301 = vadd.f32 %v4299, %v4300
        %v4302 = vsel %vm4124, %v3377, 0.0
        %v4303 = vadd.f32 %v4301, %v4302
        %v4304 = vsel %vm4124, %v3443, 0.0
        %v4305 = vadd.f32 %v4303, %v4304
        %v4306 = vsel %vm4124, %v3509, 0.0
        %v4307 = vadd.f32 %v4305, %v4306
        %v4308 = vsel %vm4124, %v3575, 0.0
        %v4309 = vadd.f32 %v4307, %v4308
        %v4310 = vsel %vm4124, %v3641, 0.0
        %v4311 = vadd.f32 %v4309, %v4310
        %v4312 = vsel %vm4124, %v3707, 0.0
        %v4313 = vadd.f32 %v4311, %v4312
        %v4314 = vsel %vm4124, %v3773, 0.0
        %v4315 = vadd.f32 %v4313, %v4314
        %v4316 = vsel %vm4124, %v3839, 0.0
        %v4317 = vadd.f32 %v4315, %v4316
        %v4318 = vsel %vm4124, %v3905, 0.0
        %v4319 = vadd.f32 %v4317, %v4318
        %v4320 = vsel %vm4124, %v3971, 0.0
        %v4321 = vadd.f32 %v4319, %v4320
        %v4322 = vsel %vm4124, %v4037, 0.0
        %v4323 = vadd.f32 %v4321, %v4322
        %v4324 = vsel %vm4124, %v4103, 0.0
        %v4325 = vadd.f32 %v4323, %v4324
        %v4326 = vrot.slane %v4325, 4
        %v4327 = vadd.f32 %v4325, %v4326
        %v4328 = vrot.slane %v4327, 2
        %v4329 = vadd.f32 %v4327, %v4328
        %v4330 = vrot.slane %v4329, 1
        %v4331 = vadd.f32 %v4329, %v4330
        %v4332 = vsel %vm4124, %v2075, 0.0
        %v4333 = vsel %vm4124, %v2141, 0.0
        %v4334 = vadd.f32 %v4332, %v4333
        %v4335 = vsel %vm4124, %v2207, 0.0
        %v4336 = vadd.f32 %v4334, %v4335
        %v4337 = vsel %vm4124, %v2273, 0.0
        %v4338 = vadd.f32 %v4336, %v4337
        %v4339 = vsel %vm4124, %v2339, 0.0
        %v4340 = vadd.f32 %v4338, %v4339
        %v4341 = vsel %vm4124, %v2405, 0.0
        %v4342 = vadd.f32 %v4340, %v4341
        %v4343 = vsel %vm4124, %v2471, 0.0
        %v4344 = vadd.f32 %v4342, %v4343
        %v4345 = vsel %vm4124, %v2537, 0.0
        %v4346 = vadd.f32 %v4344, %v4345
        %v4347 = vsel %vm4124, %v2603, 0.0
        %v4348 = vadd.f32 %v4346, %v4347
        %v4349 = vsel %vm4124, %v2669, 0.0
        %v4350 = vadd.f32 %v4348, %v4349
        %v4351 = vsel %vm4124, %v2735, 0.0
        %v4352 = vadd.f32 %v4350, %v4351
        %v4353 = vsel %vm4124, %v2801, 0.0
        %v4354 = vadd.f32 %v4352, %v4353
        %v4355 = vsel %vm4124, %v2867, 0.0
        %v4356 = vadd.f32 %v4354, %v4355
        %v4357 = vsel %vm4124, %v2933, 0.0
        %v4358 = vadd.f32 %v4356, %v4357
        %v4359 = vsel %vm4124, %v2999, 0.0
        %v4360 = vadd.f32 %v4358, %v4359
        %v4361 = vsel %vm4124, %v3065, 0.0
        %v4362 = vadd.f32 %v4360, %v4361
        %v4363 = vsel %vm4124, %v3131, 0.0
        %v4364 = vadd.f32 %v4362, %v4363
        %v4365 = vsel %vm4124, %v3197, 0.0
        %v4366 = vadd.f32 %v4364, %v4365
        %v4367 = vsel %vm4124, %v3263, 0.0
        %v4368 = vadd.f32 %v4366, %v4367
        %v4369 = vsel %vm4124, %v3329, 0.0
        %v4370 = vadd.f32 %v4368, %v4369
        %v4371 = vsel %vm4124, %v3395, 0.0
        %v4372 = vadd.f32 %v4370, %v4371
        %v4373 = vsel %vm4124, %v3461, 0.0
        %v4374 = vadd.f32 %v4372, %v4373
        %v4375 = vsel %vm4124, %v3527, 0.0
        %v4376 = vadd.f32 %v4374, %v4375
        %v4377 = vsel %vm4124, %v3593, 0.0
        %v4378 = vadd.f32 %v4376, %v4377
        %v4379 = vsel %vm4124, %v3659, 0.0
        %v4380 = vadd.f32 %v4378, %v4379
        %v4381 = vsel %vm4124, %v3725, 0.0
        %v4382 = vadd.f32 %v4380, %v4381
        %v4383 = vsel %vm4124, %v3791, 0.0
        %v4384 = vadd.f32 %v4382, %v4383
        %v4385 = vsel %vm4124, %v3857, 0.0
        %v4386 = vadd.f32 %v4384, %v4385
        %v4387 = vsel %vm4124, %v3923, 0.0
        %v4388 = vadd.f32 %v4386, %v4387
        %v4389 = vsel %vm4124, %v3989, 0.0
        %v4390 = vadd.f32 %v4388, %v4389
        %v4391 = vsel %vm4124, %v4055, 0.0
        %v4392 = vadd.f32 %v4390, %v4391
        %v4393 = vsel %vm4124, %v4121, 0.0
        %v4394 = vadd.f32 %v4392, %v4393
        %v4395 = vrot.slane %v4394, 4
        %v4396 = vadd.f32 %v4394, %v4395
        %v4397 = vrot.slane %v4396, 2
        %v4398 = vadd.f32 %v4396, %v4397
        %v4399 = vrot.slane %v4398, 1
        %v4400 = vadd.f32 %v4398, %v4399
        %v4401 = vsel %vm4124, %v2066, 0.0
        %v4402 = vsel %vm4124, %v2132, 0.0
        %v4403 = vadd.f32 %v4401, %v4402
        %v4404 = vsel %vm4124, %v2198, 0.0
        %v4405 = vadd.f32 %v4403, %v4404
        %v4406 = vsel %vm4124, %v2264, 0.0
        %v4407 = vadd.f32 %v4405, %v4406
        %v4408 = vsel %vm4124, %v2330, 0.0
        %v4409 = vadd.f32 %v4407, %v4408
        %v4410 = vsel %vm4124, %v2396, 0.0
        %v4411 = vadd.f32 %v4409, %v4410
        %v4412 = vsel %vm4124, %v2462, 0.0
        %v4413 = vadd.f32 %v4411, %v4412
        %v4414 = vsel %vm4124, %v2528, 0.0
        %v4415 = vadd.f32 %v4413, %v4414
        %v4416 = vsel %vm4124, %v2594, 0.0
        %v4417 = vadd.f32 %v4415, %v4416
        %v4418 = vsel %vm4124, %v2660, 0.0
        %v4419 = vadd.f32 %v4417, %v4418
        %v4420 = vsel %vm4124, %v2726, 0.0
        %v4421 = vadd.f32 %v4419, %v4420
        %v4422 = vsel %vm4124, %v2792, 0.0
        %v4423 = vadd.f32 %v4421, %v4422
        %v4424 = vsel %vm4124, %v2858, 0.0
        %v4425 = vadd.f32 %v4423, %v4424
        %v4426 = vsel %vm4124, %v2924, 0.0
        %v4427 = vadd.f32 %v4425, %v4426
        %v4428 = vsel %vm4124, %v2990, 0.0
        %v4429 = vadd.f32 %v4427, %v4428
        %v4430 = vsel %vm4124, %v3056, 0.0
        %v4431 = vadd.f32 %v4429, %v4430
        %v4432 = vsel %vm4124, %v3122, 0.0
        %v4433 = vadd.f32 %v4431, %v4432
        %v4434 = vsel %vm4124, %v3188, 0.0
        %v4435 = vadd.f32 %v4433, %v4434
        %v4436 = vsel %vm4124, %v3254, 0.0
        %v4437 = vadd.f32 %v4435, %v4436
        %v4438 = vsel %vm4124, %v3320, 0.0
        %v4439 = vadd.f32 %v4437, %v4438
        %v4440 = vsel %vm4124, %v3386, 0.0
        %v4441 = vadd.f32 %v4439, %v4440
        %v4442 = vsel %vm4124, %v3452, 0.0
        %v4443 = vadd.f32 %v4441, %v4442
        %v4444 = vsel %vm4124, %v3518, 0.0
        %v4445 = vadd.f32 %v4443, %v4444
        %v4446 = vsel %vm4124, %v3584, 0.0
        %v4447 = vadd.f32 %v4445, %v4446
        %v4448 = vsel %vm4124, %v3650, 0.0
        %v4449 = vadd.f32 %v4447, %v4448
        %v4450 = vsel %vm4124, %v3716, 0.0
        %v4451 = vadd.f32 %v4449, %v4450
        %v4452 = vsel %vm4124, %v3782, 0.0
        %v4453 = vadd.f32 %v4451, %v4452
        %v4454 = vsel %vm4124, %v3848, 0.0
        %v4455 = vadd.f32 %v4453, %v4454
        %v4456 = vsel %vm4124, %v3914, 0.0
        %v4457 = vadd.f32 %v4455, %v4456
        %v4458 = vsel %vm4124, %v3980, 0.0
        %v4459 = vadd.f32 %v4457, %v4458
        %v4460 = vsel %vm4124, %v4046, 0.0
        %v4461 = vadd.f32 %v4459, %v4460
        %v4462 = vsel %vm4124, %v4112, 0.0
        %v4463 = vadd.f32 %v4461, %v4462
        %v4464 = vrot.slane %v4463, 4
        %v4465 = vadd.f32 %v4463, %v4464
        %v4466 = vrot.slane %v4465, 2
        %v4467 = vadd.f32 %v4465, %v4466
        %v4468 = vrot.slane %v4467, 1
        %v4469 = vadd.f32 %v4467, %v4468
        %v4470 = vsel %vm4124, %v2076, 0.0
        %v4471 = vsel %vm4124, %v2142, 0.0
        %v4472 = vadd.f32 %v4470, %v4471
        %v4473 = vsel %vm4124, %v2208, 0.0
        %v4474 = vadd.f32 %v4472, %v4473
        %v4475 = vsel %vm4124, %v2274, 0.0
        %v4476 = vadd.f32 %v4474, %v4475
        %v4477 = vsel %vm4124, %v2340, 0.0
        %v4478 = vadd.f32 %v4476, %v4477
        %v4479 = vsel %vm4124, %v2406, 0.0
        %v4480 = vadd.f32 %v4478, %v4479
        %v4481 = vsel %vm4124, %v2472, 0.0
        %v4482 = vadd.f32 %v4480, %v4481
        %v4483 = vsel %vm4124, %v2538, 0.0
        %v4484 = vadd.f32 %v4482, %v4483
        %v4485 = vsel %vm4124, %v2604, 0.0
        %v4486 = vadd.f32 %v4484, %v4485
        %v4487 = vsel %vm4124, %v2670, 0.0
        %v4488 = vadd.f32 %v4486, %v4487
        %v4489 = vsel %vm4124, %v2736, 0.0
        %v4490 = vadd.f32 %v4488, %v4489
        %v4491 = vsel %vm4124, %v2802, 0.0
        %v4492 = vadd.f32 %v4490, %v4491
        %v4493 = vsel %vm4124, %v2868, 0.0
        %v4494 = vadd.f32 %v4492, %v4493
        %v4495 = vsel %vm4124, %v2934, 0.0
        %v4496 = vadd.f32 %v4494, %v4495
        %v4497 = vsel %vm4124, %v3000, 0.0
        %v4498 = vadd.f32 %v4496, %v4497
        %v4499 = vsel %vm4124, %v3066, 0.0
        %v4500 = vadd.f32 %v4498, %v4499
        %v4501 = vsel %vm4124, %v3132, 0.0
        %v4502 = vadd.f32 %v4500, %v4501
        %v4503 = vsel %vm4124, %v3198, 0.0
        %v4504 = vadd.f32 %v4502, %v4503
        %v4505 = vsel %vm4124, %v3264, 0.0
        %v4506 = vadd.f32 %v4504, %v4505
        %v4507 = vsel %vm4124, %v3330, 0.0
        %v4508 = vadd.f32 %v4506, %v4507
        %v4509 = vsel %vm4124, %v3396, 0.0
        %v4510 = vadd.f32 %v4508, %v4509
        %v4511 = vsel %vm4124, %v3462, 0.0
        %v4512 = vadd.f32 %v4510, %v4511
        %v4513 = vsel %vm4124, %v3528, 0.0
        %v4514 = vadd.f32 %v4512, %v4513
        %v4515 = vsel %vm4124, %v3594, 0.0
        %v4516 = vadd.f32 %v4514, %v4515
        %v4517 = vsel %vm4124, %v3660, 0.0
        %v4518 = vadd.f32 %v4516, %v4517
        %v4519 = vsel %vm4124, %v3726, 0.0
        %v4520 = vadd.f32 %v4518, %v4519
        %v4521 = vsel %vm4124, %v3792, 0.0
        %v4522 = vadd.f32 %v4520, %v4521
        %v4523 = vsel %vm4124, %v3858, 0.0
        %v4524 = vadd.f32 %v4522, %v4523
        %v4525 = vsel %vm4124, %v3924, 0.0
        %v4526 = vadd.f32 %v4524, %v4525
        %v4527 = vsel %vm4124, %v3990, 0.0
        %v4528 = vadd.f32 %v4526, %v4527
        %v4529 = vsel %vm4124, %v4056, 0.0
        %v4530 = vadd.f32 %v4528, %v4529
        %v4531 = vsel %vm4124, %v4122, 0.0
        %v4532 = vadd.f32 %v4530, %v4531
        %v4533 = vrot.slane %v4532, 4
        %v4534 = vadd.f32 %v4532, %v4533
        %v4535 = vrot.slane %v4534, 2
        %v4536 = vadd.f32 %v4534, %v4535
        %v4537 = vrot.slane %v4536, 1
        %v4538 = vadd.f32 %v4536, %v4537
        %v4539 = vsel %vm4124, %v2073, 0.0
        %v4540 = vsel %vm4124, %v2139, 0.0
        %v4541 = vadd.f32 %v4539, %v4540
        %v4542 = vsel %vm4124, %v2205, 0.0
        %v4543 = vadd.f32 %v4541, %v4542
        %v4544 = vsel %vm4124, %v2271, 0.0
        %v4545 = vadd.f32 %v4543, %v4544
        %v4546 = vsel %vm4124, %v2337, 0.0
        %v4547 = vadd.f32 %v4545, %v4546
        %v4548 = vsel %vm4124, %v2403, 0.0
        %v4549 = vadd.f32 %v4547, %v4548
        %v4550 = vsel %vm4124, %v2469, 0.0
        %v4551 = vadd.f32 %v4549, %v4550
        %v4552 = vsel %vm4124, %v2535, 0.0
        %v4553 = vadd.f32 %v4551, %v4552
        %v4554 = vsel %vm4124, %v2601, 0.0
        %v4555 = vadd.f32 %v4553, %v4554
        %v4556 = vsel %vm4124, %v2667, 0.0
        %v4557 = vadd.f32 %v4555, %v4556
        %v4558 = vsel %vm4124, %v2733, 0.0
        %v4559 = vadd.f32 %v4557, %v4558
        %v4560 = vsel %vm4124, %v2799, 0.0
        %v4561 = vadd.f32 %v4559, %v4560
        %v4562 = vsel %vm4124, %v2865, 0.0
        %v4563 = vadd.f32 %v4561, %v4562
        %v4564 = vsel %vm4124, %v2931, 0.0
        %v4565 = vadd.f32 %v4563, %v4564
        %v4566 = vsel %vm4124, %v2997, 0.0
        %v4567 = vadd.f32 %v4565, %v4566
        %v4568 = vsel %vm4124, %v3063, 0.0
        %v4569 = vadd.f32 %v4567, %v4568
        %v4570 = vsel %vm4124, %v3129, 0.0
        %v4571 = vadd.f32 %v4569, %v4570
        %v4572 = vsel %vm4124, %v3195, 0.0
        %v4573 = vadd.f32 %v4571, %v4572
        %v4574 = vsel %vm4124, %v3261, 0.0
        %v4575 = vadd.f32 %v4573, %v4574
        %v4576 = vsel %vm4124, %v3327, 0.0
        %v4577 = vadd.f32 %v4575, %v4576
        %v4578 = vsel %vm4124, %v3393, 0.0
        %v4579 = vadd.f32 %v4577, %v4578
        %v4580 = vsel %vm4124, %v3459, 0.0
        %v4581 = vadd.f32 %v4579, %v4580
        %v4582 = vsel %vm4124, %v3525, 0.0
        %v4583 = vadd.f32 %v4581, %v4582
        %v4584 = vsel %vm4124, %v3591, 0.0
        %v4585 = vadd.f32 %v4583, %v4584
        %v4586 = vsel %vm4124, %v3657, 0.0
        %v4587 = vadd.f32 %v4585, %v4586
        %v4588 = vsel %vm4124, %v3723, 0.0
        %v4589 = vadd.f32 %v4587, %v4588
        %v4590 = vsel %vm4124, %v3789, 0.0
        %v4591 = vadd.f32 %v4589, %v4590
        %v4592 = vsel %vm4124, %v3855, 0.0
        %v4593 = vadd.f32 %v4591, %v4592
        %v4594 = vsel %vm4124, %v3921, 0.0
        %v4595 = vadd.f32 %v4593, %v4594
        %v4596 = vsel %vm4124, %v3987, 0.0
        %v4597 = vadd.f32 %v4595, %v4596
        %v4598 = vsel %vm4124, %v4053, 0.0
        %v4599 = vadd.f32 %v4597, %v4598
        %v4600 = vsel %vm4124, %v4119, 0.0
        %v4601 = vadd.f32 %v4599, %v4600
        %v4602 = vrot.slane %v4601, 4
        %v4603 = vadd.f32 %v4601, %v4602
        %v4604 = vrot.slane %v4603, 2
        %v4605 = vadd.f32 %v4603, %v4604
        %v4606 = vrot.slane %v4605, 1
        %v4607 = vadd.f32 %v4605, %v4606
        %v4608 = vsel %vm4124, %v2077, 0.0
        %v4609 = vsel %vm4124, %v2143, 0.0
        %v4610 = vadd.f32 %v4608, %v4609
        %v4611 = vsel %vm4124, %v2209, 0.0
        %v4612 = vadd.f32 %v4610, %v4611
        %v4613 = vsel %vm4124, %v2275, 0.0
        %v4614 = vadd.f32 %v4612, %v4613
        %v4615 = vsel %vm4124, %v2341, 0.0
        %v4616 = vadd.f32 %v4614, %v4615
        %v4617 = vsel %vm4124, %v2407, 0.0
        %v4618 = vadd.f32 %v4616, %v4617
        %v4619 = vsel %vm4124, %v2473, 0.0
        %v4620 = vadd.f32 %v4618, %v4619
        %v4621 = vsel %vm4124, %v2539, 0.0
        %v4622 = vadd.f32 %v4620, %v4621
        %v4623 = vsel %vm4124, %v2605, 0.0
        %v4624 = vadd.f32 %v4622, %v4623
        %v4625 = vsel %vm4124, %v2671, 0.0
        %v4626 = vadd.f32 %v4624, %v4625
        %v4627 = vsel %vm4124, %v2737, 0.0
        %v4628 = vadd.f32 %v4626, %v4627
        %v4629 = vsel %vm4124, %v2803, 0.0
        %v4630 = vadd.f32 %v4628, %v4629
        %v4631 = vsel %vm4124, %v2869, 0.0
        %v4632 = vadd.f32 %v4630, %v4631
        %v4633 = vsel %vm4124, %v2935, 0.0
        %v4634 = vadd.f32 %v4632, %v4633
        %v4635 = vsel %vm4124, %v3001, 0.0
        %v4636 = vadd.f32 %v4634, %v4635
        %v4637 = vsel %vm4124, %v3067, 0.0
        %v4638 = vadd.f32 %v4636, %v4637
        %v4639 = vsel %vm4124, %v3133, 0.0
        %v4640 = vadd.f32 %v4638, %v4639
        %v4641 = vsel %vm4124, %v3199, 0.0
        %v4642 = vadd.f32 %v4640, %v4641
        %v4643 = vsel %vm4124, %v3265, 0.0
        %v4644 = vadd.f32 %v4642, %v4643
        %v4645 = vsel %vm4124, %v3331, 0.0
        %v4646 = vadd.f32 %v4644, %v4645
        %v4647 = vsel %vm4124, %v3397, 0.0
        %v4648 = vadd.f32 %v4646, %v4647
        %v4649 = vsel %vm4124, %v3463, 0.0
        %v4650 = vadd.f32 %v4648, %v4649
        %v4651 = vsel %vm4124, %v3529, 0.0
        %v4652 = vadd.f32 %v4650, %v4651
        %v4653 = vsel %vm4124, %v3595, 0.0
        %v4654 = vadd.f32 %v4652, %v4653
        %v4655 = vsel %vm4124, %v3661, 0.0
        %v4656 = vadd.f32 %v4654, %v4655
        %v4657 = vsel %vm4124, %v3727, 0.0
        %v4658 = vadd.f32 %v4656, %v4657
        %v4659 = vsel %vm4124, %v3793, 0.0
        %v4660 = vadd.f32 %v4658, %v4659
        %v4661 = vsel %vm4124, %v3859, 0.0
        %v4662 = vadd.f32 %v4660, %v4661
        %v4663 = vsel %vm4124, %v3925, 0.0
        %v4664 = vadd.f32 %v4662, %v4663
        %v4665 = vsel %vm4124, %v3991, 0.0
        %v4666 = vadd.f32 %v4664, %v4665
        %v4667 = vsel %vm4124, %v4057, 0.0
        %v4668 = vadd.f32 %v4666, %v4667
        %v4669 = vsel %vm4124, %v4123, 0.0
        %v4670 = vadd.f32 %v4668, %v4669
        %v4671 = vrot.slane %v4670, 4
        %v4672 = vadd.f32 %v4670, %v4671
        %v4673 = vrot.slane %v4672, 2
        %v4674 = vadd.f32 %v4672, %v4673
        %v4675 = vrot.slane %v4674, 1
        %v4676 = vadd.f32 %v4674, %v4675
        %v4677 = vld [vmem:[%s489] sm:$0xff]
        %vm4686 = vcmask 1041409
        %v4687 = vsel %vm4686, %v4262, %v4193
        %vm4688 = vcmask 1042434
        %v4689 = vsel %vm4688, %v4331, %v4687
        %vm4690 = vcmask 1043459
        %v4691 = vsel %vm4690, %v4400, %v4689
        %vm4692 = vcmask 1044484
        %v4693 = vsel %vm4692, %v4469, %v4691
        %vm4694 = vcmask 1045509
        %v4695 = vsel %vm4694, %v4538, %v4693
        %vm4696 = vcmask 1046534
        %v4697 = vsel %vm4696, %v4607, %v4695
        %vm4698 = vcmask 1047559
        %v4699 = vsel %vm4698, %v4676, %v4697
        %v4701 = vadd.f32 %v4677, %v4699
        %4702 = vst [vmem:[%s489] sm:$0xff] %v4701
        %s4703 = sand.u32 %s207, 1
        %s4704 = scalar_lea.sflag [#allocation4], %s4703
        %s4705 = sand.u32 %s207, 1
        %s4706 = smul.addr %s4705, 8
        %s4707 = scalar_lea.vmem [#allocation12], %s4706
        // Predicated region
        $region69: #{tpu_custom_call.1} parent=43 // pred_check
          %p4708 = pneg %p217
        $region70: #{tpu_custom_call.1} parent=43 // pred_check_branch
          %4710 = sbr.rel (%p4708) target = $region72
        $region71: #{tpu_custom_call.1} parent=43 // pred_region
          %s4712 = ssub.s32 128, 128
          %4713 = vsyncadd %s4704, %s4712
          %s4714 = smul.addr %s34, 128
          %s4715 = scalar_lea.hbm %s6, %s4714
          %s4717 = sshll.u32 %s4707, 4
          %s4718 = int_to_ptr.vmem [resolvable:$true] %s4717
          %4720 = dma.vmem_to_hbm [thread:$0]  %s4718, 128, %s4715, %s4704
        $region72: #{tpu_custom_call.1} parent=43 // pred_fallthru
          _
      $region44: #{tpu_custom_call.1} parent=5 // pred_fallthru
        _
      %p4721 = scmp.le.s32.totalorder 2, %s25
      // Predicated region
      $region73: #{tpu_custom_call.1} parent=5 // pred_check
        %p4722 = pneg %p4721
      $region74: #{tpu_custom_call.1} parent=5 // pred_check_branch
        %4724 = sbr.rel (%p4722) target = $region76
      $region75: #{tpu_custom_call.1} parent=5 // pred_region
        %s4725 = ssub.s32 %s25, 2
        // Predicated region
        $region77: #{tpu_custom_call.1} parent=75 // pred_check
          %p4726 = pneg %p223
        $region78: #{tpu_custom_call.1} parent=75 // pred_check_branch
          %4728 = sbr.rel (%p4726) target = $region80
        $region79: #{tpu_custom_call.1} parent=75 // pred_region
          %s4729 = sand.u32 %s208, 1
          %s4730 = scalar_lea.sflag [#allocation4], %s4729
          %s4731 = sand.u32 %s208, 1
          %s4732 = smul.addr %s4731, 8
          %s4733 = scalar_lea.vmem [#allocation12], %s4732
          %4734 = dma.done %s4730, 128
        $region80: #{tpu_custom_call.1} parent=75 // pred_fallthru
          _
      $region76: #{tpu_custom_call.1} parent=5 // pred_fallthru
        _
    $region6: #{tpu_custom_call.1} parent=1 // loop_footer
      %s29 = sadd.s32 1, %s25
    $region7: #{tpu_custom_call.1} parent=1 // loop_footer_branch
      %24 = sbr.rel target = $region3
    $region8: #{tpu_custom_call.1} parent=1 // loop_exit
      _
    %4735 = vsyncpa [#allocation3], 1
    %s4736 = scalar_lea.sflag [#allocation3], 1
    %4737 = vsyncpa %s4736, 1
    %4738 = vsyncpa [#allocation8], 1
    %s4739 = scalar_lea.sflag [#allocation8], 1
    %4740 = vsyncpa %s4739, 1
    %4741 = vsyncpa [#allocation11], 1
    %s4742 = scalar_lea.sflag [#allocation11], 1
    %4743 = vsyncpa %s4742, 1
    %4744 = vsyncpa [#allocation4], 1
    %s4745 = scalar_lea.sflag [#allocation4], 1
    %4746 = vsyncpa %s4745, 1
    %4747 = vsyncpa [#allocation5], 1
    %s4748 = scalar_lea.sflag [#allocation5], 1
    %4749 = vsyncpa %s4748, 1

</llo_original>
